<compile_context>
chip_gen: v6e
topology: v6e:2x2x1
jax: 0.10.0
libtpu: 0.0.40
codegen_flags: <defaults>
</compile_context>

<pallas_src>
import functools
import math

import jax
import jax.numpy as jnp
from jax.experimental import pallas as pl
from jax.experimental.pallas import tpu as pltpu

LN_EPS = 1e-5


def _layer_norm(x, gamma, beta):
    # x: (tq, D); gamma/beta: (1, D)
    mean = jnp.mean(x, axis=-1, keepdims=True)
    var = jnp.mean((x - mean) ** 2, axis=-1, keepdims=True)
    inv = jax.lax.rsqrt(var + LN_EPS)
    return (x - mean) * inv * gamma + beta


def _encoder_layer_kernel(
    x_ref, npm_ref,
    wq_ref, bq_ref, wk_ref, bk_ref, wv_ref, bv_ref,
    wo_ref, bo_ref, ln1_g_ref, ln1_b_ref,
    w1_ref, b1_ref, w2_ref, b2_ref, ln2_g_ref, ln2_b_ref,
    out_ref, *rest,
    n_head, d_k, d_v, tq, n_q, return_attn, exp_dtype, exact_probs,
    bf16_relayout,
):
    if return_attn:
        attn_ref, kh_scr, vh_scr = rest
    else:
        attn_ref = None
        kh_scr, vh_scr = rest

    qi = pl.program_id(1)
    S = x_ref.shape[1]

    # ---- K/V projections: once per batch (q-tile axis is the inner
    # 'arbitrary' grid dim); kept as bf16 (H, S, d) blocks in VMEM scratch. ---
    @pl.when(qi == 0)
    def _():
        xkv_b = x_ref[0].astype(jnp.bfloat16)                       # (S, D)
        k = jnp.dot(xkv_b, wk_ref[...],
                    preferred_element_type=jnp.float32) + bk_ref[...]
        v = jnp.dot(xkv_b, wv_ref[...],
                    preferred_element_type=jnp.float32) + bv_ref[...]
        if bf16_relayout:
            kh_scr[...] = k.astype(jnp.bfloat16).reshape(
                S, n_head, d_k).transpose(1, 0, 2)
            vh_scr[...] = v.astype(jnp.bfloat16).reshape(
                S, n_head, d_v).transpose(1, 0, 2)
        else:
            kh_scr[...] = k.reshape(S, n_head, d_k).transpose(
                1, 0, 2).astype(jnp.bfloat16)
            vh_scr[...] = v.reshape(S, n_head, d_v).transpose(
                1, 0, 2).astype(jnp.bfloat16)

    # ---- query rows of this tile (also the MHA residual), sliced from the
    # already-resident (S, D) block: no separate xq input / DMA. -------------
    if n_q == 1:
        xq = x_ref[0]                                                # (tq, D)
    else:
        row0 = pl.multiple_of(qi * tq, tq)
        xq = x_ref[0, pl.ds(row0, tq), :]
    npm = npm_ref[0]                                                 # (tq, 1)

    # ---- multi-head self-attention ------------------------------------
    q = jnp.dot(xq.astype(jnp.bfloat16), wq_ref[...],
                preferred_element_type=jnp.float32) + bq_ref[...]
    q = q * (1.0 / math.sqrt(d_k))          # fold 1/sqrt(d_k) into q once
    if bf16_relayout:
        qh = q.astype(jnp.bfloat16).reshape(tq, n_head, d_k).transpose(1, 0, 2)
    else:
        qh = q.reshape(tq, n_head, d_k).transpose(1, 0, 2).astype(jnp.bfloat16)

    kh = kh_scr[...]                                                 # (H,S,dk)
    vh = vh_scr[...]                                                 # (H,S,dv)

    # Batched head scores: (H, tq, S), f32 accumulate.
    scores = jnp.einsum("hqd,hkd->hqk", qh, kh,
                        preferred_element_type=jnp.float32)

    # TODO(synk): slf_attn_mask (masked_fill(-inf)) would be applied here.
    # softmax(dim=-1), numerically stable; denominator accumulated in f32.
    m = jnp.max(scores, axis=-1, keepdims=True)
    p = jnp.exp((scores - m).astype(exp_dtype)).astype(jnp.float32)
    denom = jnp.sum(p, axis=-1, keepdims=True)
    inv = pl.reciprocal(denom, approx=not exact_probs)
    probs = p * inv                                                  # (H,tq,S)

    if return_attn:
        attn_ref[:, 0] = probs.astype(attn_ref.dtype)

    # Batched attn @ V, bf16 inputs, f32 accumulate: (H, tq, d_v).
    ctx = jnp.einsum("hqk,hkd->hqd", probs.astype(jnp.bfloat16), vh,
                     preferred_element_type=jnp.float32)
    # Head-major concat to match PyTorch permute(1,2,0,3).view(...): (tq,H*dv)
    if bf16_relayout:
        concat = ctx.astype(jnp.bfloat16).transpose(1, 0, 2).reshape(
            tq, n_head * d_v)
    else:
        concat = ctx.transpose(1, 0, 2).reshape(
            tq, n_head * d_v).astype(jnp.bfloat16)

    proj = jnp.dot(concat, wo_ref[...],
                   preferred_element_type=jnp.float32) + bo_ref[...]
    attn_out = _layer_norm(proj + xq, ln1_g_ref[...], ln1_b_ref[...])

    # enc_output *= non_pad_mask
    attn_out = attn_out * npm

    # ---- position-wise feed-forward ------------------------------------
    hidden = jnp.dot(attn_out.astype(jnp.bfloat16), w1_ref[...],
                     preferred_element_type=jnp.float32) + b1_ref[...]
    hidden = jnp.maximum(hidden, 0.0)
    ffn = jnp.dot(hidden.astype(jnp.bfloat16), w2_ref[...],
                  preferred_element_type=jnp.float32) + b2_ref[...]
    ffn_out = _layer_norm(ffn + attn_out, ln2_g_ref[...], ln2_b_ref[...])

    # enc_output *= non_pad_mask
    out_ref[0] = (ffn_out * npm).astype(out_ref.dtype)


def _tpu_generation_defaults():
    """Returns (tq_cap, vmem_limit_bytes, bf16_softmax_ok), defensively."""
    tq_cap, vmem_limit, bf16_sm = 256, 64 * 1024 * 1024, False
    try:
        info = pltpu.get_tpu_info()
        vmem = int(getattr(info, "vmem_capacity_bytes", 0) or 0)
        name = str(getattr(info, "chip_version", "")).lower()
        if vmem and vmem <= 80 * 1024 * 1024:
            # v7x-like (64 MiB VMEM / TC): smaller q tiles + scratch headroom.
            tq_cap, vmem_limit = 128, 48 * 1024 * 1024
        elif vmem:
            # 128 MiB parts (v5e/v6e): raise the scoped-VMEM limit.
            vmem_limit = 96 * 1024 * 1024
        if "v5" in name:
            # v5e: 128x128 MXU, no bf16 VPU/EUP -> small tiles, f32 softmax.
            tq_cap, bf16_sm = 128, False
        elif vmem:
            bf16_sm = True
    except Exception:
        pass
    return tq_cap, vmem_limit, bf16_sm


def _pick_tq(S, cap=256):
    # Largest query tile <= cap that divides S; fall back to full S for
    # tiny / odd sequence lengths (e.g. the toy example).
    if S <= cap:
        return S
    for t in (cap, 128):
        if S % t == 0:
            return t
    return S


def encoder_layer(x, non_pad_mask, params, *, n_head, d_k, d_v,
                  tq=None, return_attn=True, attn_dtype=jnp.bfloat16,
                  optimized=True):
    B, S, D = x.shape

    tq_cap, vmem_limit, bf16_softmax = _tpu_generation_defaults()
    if not optimized:
        vmem_limit = 64 * 1024 * 1024          # proven-safe baseline

    if tq is None:
        tq = _pick_tq(S, tq_cap)
    assert S % tq == 0, "query tile must divide the sequence length"
    n_q = S // tq

    # Matmul weights in bf16 (halves weight DMA + VMEM, MXU is bf16-native);
    # biases and LayerNorm params stay f32.
    bf = lambda a: a.astype(jnp.bfloat16)
    weight_args = [
        bf(params["wq"]), params["bq"], bf(params["wk"]), params["bk"],
        bf(params["wv"]), params["bv"],
        bf(params["wo"]), params["bo"], params["ln1_g"], params["ln1_b"],
        bf(params["w1"]), params["b1"], bf(params["w2"]), params["b2"],
        params["ln2_g"], params["ln2_b"],
    ]

    # Grid-invariant weight/bias blocks: single-buffered (their block index
    # never changes, so double-buffering is pure VMEM waste).
    weight_mode = pl.Buffered(1) if optimized else None

    def full_spec(shape):
        nd = len(shape)
        idx = lambda b, qi, _nd=nd: (0,) * _nd
        if weight_mode is None:
            return pl.BlockSpec(shape, idx)
        return pl.BlockSpec(shape, idx, pipeline_mode=weight_mode)

    in_specs = [
        # x: full sequence (K/V at qi==0, query rows sliced in-kernel).
        pl.BlockSpec((1, S, D), lambda b, qi: (b, 0, 0)),
        pl.BlockSpec((1, tq, 1), lambda b, qi: (b, qi, 0)),   # non_pad_mask
    ] + [full_spec(w.shape) for w in weight_args]

    out_spec_x = pl.BlockSpec((1, tq, D), lambda b, qi: (b, qi, 0))
    if return_attn:
        out_specs = [
            out_spec_x,
            pl.BlockSpec((n_head, 1, tq, S), lambda b, qi: (0, b, qi, 0)),
        ]
        out_shape = (
            jax.ShapeDtypeStruct((B, S, D), x.dtype),
            jax.ShapeDtypeStruct((n_head, B, S, S), attn_dtype),
        )
    else:
        out_specs = out_spec_x
        out_shape = jax.ShapeDtypeStruct((B, S, D), x.dtype)

    scratch_shapes = [
        pltpu.VMEM((n_head, S, d_k), jnp.bfloat16),   # kh (per-batch, hoisted)
        pltpu.VMEM((n_head, S, d_v), jnp.bfloat16),   # vh
    ]

    # Returned probs: f32 exp + exact reciprocal (rows sum to 1).
    # No-probs fast path: approx EUP reciprocal, bf16 exp on bf16-EUP parts.
    exp_dtype = jnp.float32
    exact_probs = True
    if not return_attn:
        exact_probs = False
        if optimized and bf16_softmax:
            exp_dtype = jnp.bfloat16

    kernel = functools.partial(
        _encoder_layer_kernel,
        n_head=n_head, d_k=d_k, d_v=d_v, tq=tq, n_q=n_q,
        return_attn=return_attn, exp_dtype=exp_dtype, exact_probs=exact_probs,
        bf16_relayout=optimized,
    )

    result = pl.pallas_call(
        kernel,
        grid=(B, n_q),
        in_specs=in_specs,
        out_specs=out_specs,
        out_shape=out_shape,
        scratch_shapes=scratch_shapes,
        compiler_params=pltpu.CompilerParams(
            # q-tile axis carries the K/V scratch dependence -> 'arbitrary';
            # batch axis stays 'parallel' for megacore sharding.
            dimension_semantics=("parallel", "arbitrary"),
            vmem_limit_bytes=vmem_limit,
        ),
    )(x, non_pad_mask, *weight_args)

    if return_attn:
        enc_out, attn = result
        # PyTorch returns attn with shape (n_head * B, S, S), head-major.
        return enc_out, attn.reshape(n_head * B, S, S)
    return result, None


def encoder_layer_ref(x, non_pad_mask, params, *, n_head, d_k, d_v):
    """Pure-JAX f32 reference mirroring the PyTorch EncoderLayer (eval mode)."""
    B, S, D = x.shape
    q = x @ params["wq"] + params["bq"]
    k = x @ params["wk"] + params["bk"]
    v = x @ params["wv"] + params["bv"]
    qh = q.reshape(B, S, n_head, d_k).transpose(2, 0, 1, 3)   # (H,B,S,dk)
    kh = k.reshape(B, S, n_head, d_k).transpose(2, 0, 1, 3)
    vh = v.reshape(B, S, n_head, d_v).transpose(2, 0, 1, 3)
    scores = jnp.einsum("hbqd,hbkd->hbqk", qh, kh) / (d_k ** 0.5)
    probs = jax.nn.softmax(scores, axis=-1)
    ctx = jnp.einsum("hbqk,hbkd->hbqd", probs, vh)            # (H,B,S,dv)
    concat = ctx.transpose(1, 2, 0, 3).reshape(B, S, n_head * d_v)
    proj = concat @ params["wo"] + params["bo"]

    def ln(y, g, b):
        mu = y.mean(-1, keepdims=True)
        var = ((y - mu) ** 2).mean(-1, keepdims=True)
        return (y - mu) * jax.lax.rsqrt(var + LN_EPS) * g + b

    a = ln(proj + x, params["ln1_g"], params["ln1_b"]) * non_pad_mask
    h = jnp.maximum(a @ params["w1"] + params["b1"], 0.0)
    f = ln(h @ params["w2"] + params["b2"] + a,
           params["ln2_g"], params["ln2_b"]) * non_pad_mask
    return f, probs.reshape(n_head * B, S, S)


def init_params(key, d_model, d_inner, n_head, d_k, d_v):
    ks = jax.random.split(key, 10)
    std_qk = (2.0 / (d_model + d_k)) ** 0.5
    std_v = (2.0 / (d_model + d_v)) ** 0.5
    std_fc = (2.0 / (n_head * d_v + d_model)) ** 0.5  # xavier_normal
    params = {
        # Linear weights stored pre-transposed: (in, out)
        "wq": std_qk * jax.random.normal(ks[0], (d_model, n_head * d_k), jnp.float32),
        "bq": 0.01 * jax.random.normal(ks[1], (1, n_head * d_k), jnp.float32),
        "wk": std_qk * jax.random.normal(ks[2], (d_model, n_head * d_k), jnp.float32),
        "bk": 0.01 * jax.random.normal(ks[3], (1, n_head * d_k), jnp.float32),
        "wv": std_v * jax.random.normal(ks[4], (d_model, n_head * d_v), jnp.float32),
        "bv": 0.01 * jax.random.normal(ks[5], (1, n_head * d_v), jnp.float32),
        "wo": std_fc * jax.random.normal(ks[6], (n_head * d_v, d_model), jnp.float32),
        "bo": jnp.zeros((1, d_model), jnp.float32),
        "ln1_g": jnp.ones((1, d_model), jnp.float32),
        "ln1_b": jnp.zeros((1, d_model), jnp.float32),
        "w1": (1.0 / d_model ** 0.5) * jax.random.normal(ks[7], (d_model, d_inner), jnp.float32),
        "b1": 0.01 * jax.random.normal(ks[8], (1, d_inner), jnp.float32),
        "w2": (1.0 / d_inner ** 0.5) * jax.random.normal(ks[9], (d_inner, d_model), jnp.float32),
        "b2": jnp.zeros((1, d_model), jnp.float32),
        "ln2_g": jnp.ones((1, d_model), jnp.float32),
        "ln2_b": jnp.zeros((1, d_model), jnp.float32),
    }
    return params


if __name__ == "__main__":
    # Small shapes consistent with the module.
    B, S = 2, 8
    d_model, d_inner = 32, 64
    n_head, d_k, d_v = 4, 8, 8

    key = jax.random.PRNGKey(0)
    k_x, k_p = jax.random.split(key)

    x = jax.random.normal(k_x, (B, S, d_model), jnp.float32)
    # non_pad_mask: (B, S, 1); mark the last position of batch 1 as padding.
    non_pad_mask = jnp.ones((B, S, 1), jnp.float32).at[1, -1, 0].set(0.0)

    params = init_params(k_p, d_model, d_inner, n_head, d_k, d_v)

    def call(**kw):
        return encoder_layer(x, non_pad_mask, params,
                             n_head=n_head, d_k=d_k, d_v=d_v, **kw)

    # Main path (matches the PyTorch module: returns enc_output + attn probs).
    try:
        enc_out, attn = call(optimized=True)
        jax.block_until_ready((enc_out, attn))
    except Exception:
        # TODO(synk): pl.Buffered(1) weight single-buffering / bf16 relayouts
        # unsupported on this jax/Mosaic build; fall back to the baseline
        # double-buffered, f32-relayout configuration.
        enc_out, attn = call(optimized=False)
        jax.block_until_ready((enc_out, attn))

    assert enc_out.shape == (B, S, d_model)
    assert attn.shape == (n_head * B, S, S)
    assert bool(jnp.all(jnp.isfinite(enc_out)))
    assert bool(jnp.all(jnp.isfinite(attn.astype(jnp.float32))))

    # Correctness check against a full-precision pure-JAX reference.  Loose
    # tolerance: the kernel feeds bf16 into the MXU and returns bf16 probs.
    with jax.default_matmul_precision("float32"):
        ref_out, ref_attn = encoder_layer_ref(
            x, non_pad_mask, params, n_head=n_head, d_k=d_k, d_v=d_v
        )
    assert bool(jnp.allclose(enc_out, ref_out, rtol=1e-1, atol=1e-1))
    assert bool(jnp.allclose(attn.astype(jnp.float32), ref_attn,
                             rtol=1e-1, atol=1e-1))

    # Fast path: drop the attention-probs output (the dominant HBM write for
    # long S); enc_output must stay numerically consistent.
    try:
        enc_out2, _ = call(optimized=True, return_attn=False)
        jax.block_until_ready(enc_out2)
    except Exception:
        enc_out2, _ = call(optimized=False, return_attn=False)
        jax.block_until_ready(enc_out2)
    assert enc_out2.shape == (B, S, d_model)
    assert bool(jnp.allclose(enc_out2, ref_out, rtol=1e-1, atol=1e-1))

    print("KERNEL_OK")
</pallas_src>

<mosaic_0001>
module attributes {stable_mosaic.version = 11 : i64} {
  func.func @_encoder_layer_kernel(%arg0: i32, %arg1: i32, %arg2: memref<1x8x32xf32, #tpu.memory_space<vmem>>, %arg3: memref<1x8x1xf32, #tpu.memory_space<vmem>>, %arg4: memref<32x32xbf16, #tpu.memory_space<vmem>>, %arg5: memref<1x32xf32, #tpu.memory_space<vmem>>, %arg6: memref<32x32xbf16, #tpu.memory_space<vmem>>, %arg7: memref<1x32xf32, #tpu.memory_space<vmem>>, %arg8: memref<32x32xbf16, #tpu.memory_space<vmem>>, %arg9: memref<1x32xf32, #tpu.memory_space<vmem>>, %arg10: memref<32x32xbf16, #tpu.memory_space<vmem>>, %arg11: memref<1x32xf32, #tpu.memory_space<vmem>>, %arg12: memref<1x32xf32, #tpu.memory_space<vmem>>, %arg13: memref<1x32xf32, #tpu.memory_space<vmem>>, %arg14: memref<32x64xbf16, #tpu.memory_space<vmem>>, %arg15: memref<1x64xf32, #tpu.memory_space<vmem>>, %arg16: memref<64x32xbf16, #tpu.memory_space<vmem>>, %arg17: memref<1x32xf32, #tpu.memory_space<vmem>>, %arg18: memref<1x32xf32, #tpu.memory_space<vmem>>, %arg19: memref<1x32xf32, #tpu.memory_space<vmem>>, %arg20: memref<1x8x32xf32, #tpu.memory_space<vmem>>, %arg21: memref<4x1x8x8xbf16, #tpu.memory_space<vmem>>, %arg22: memref<4x8x8xbf16, #tpu.memory_space<vmem>>, %arg23: memref<4x8x8xbf16, #tpu.memory_space<vmem>>) attributes {dimension_semantics = [#tpu.dimension_semantics<parallel>, #tpu.dimension_semantics<arbitrary>], iteration_bounds = array<i64: 2, 1>, scalar_prefetch = 0 : i64, scratch_operands = 2 : i64, tpu.core_type = #tpu.core_type<tc>, window_params = [{transform_indices = @transform_0, window_bounds = array<i64: 1, 8, 32>}, {transform_indices = @transform_1, window_bounds = array<i64: 1, 8, 1>}, {pipeline_mode = #tpu.pipeline_mode<synchronous>, transform_indices = @transform_2, window_bounds = array<i64: 32, 32>}, {pipeline_mode = #tpu.pipeline_mode<synchronous>, transform_indices = @transform_3, window_bounds = array<i64: 1, 32>}, {pipeline_mode = #tpu.pipeline_mode<synchronous>, transform_indices = @transform_4, window_bounds = array<i64: 32, 32>}, {pipeline_mode = #tpu.pipeline_mode<synchronous>, transform_indices = @transform_5, window_bounds = array<i64: 1, 32>}, {pipeline_mode = #tpu.pipeline_mode<synchronous>, transform_indices = @transform_6, window_bounds = array<i64: 32, 32>}, {pipeline_mode = #tpu.pipeline_mode<synchronous>, transform_indices = @transform_7, window_bounds = array<i64: 1, 32>}, {pipeline_mode = #tpu.pipeline_mode<synchronous>, transform_indices = @transform_8, window_bounds = array<i64: 32, 32>}, {pipeline_mode = #tpu.pipeline_mode<synchronous>, transform_indices = @transform_9, window_bounds = array<i64: 1, 32>}, {pipeline_mode = #tpu.pipeline_mode<synchronous>, transform_indices = @transform_10, window_bounds = array<i64: 1, 32>}, {pipeline_mode = #tpu.pipeline_mode<synchronous>, transform_indices = @transform_11, window_bounds = array<i64: 1, 32>}, {pipeline_mode = #tpu.pipeline_mode<synchronous>, transform_indices = @transform_12, window_bounds = array<i64: 32, 64>}, {pipeline_mode = #tpu.pipeline_mode<synchronous>, transform_indices = @transform_13, window_bounds = array<i64: 1, 64>}, {pipeline_mode = #tpu.pipeline_mode<synchronous>, transform_indices = @transform_14, window_bounds = array<i64: 64, 32>}, {pipeline_mode = #tpu.pipeline_mode<synchronous>, transform_indices = @transform_15, window_bounds = array<i64: 1, 32>}, {pipeline_mode = #tpu.pipeline_mode<synchronous>, transform_indices = @transform_16, window_bounds = array<i64: 1, 32>}, {pipeline_mode = #tpu.pipeline_mode<synchronous>, transform_indices = @transform_17, window_bounds = array<i64: 1, 32>}, {transform_indices = @transform_18, window_bounds = array<i64: 1, 8, 32>}, {transform_indices = @transform_19, window_bounds = array<i64: 4, 1, 8, 8>}]} {
    %c0_i32 = arith.constant 0 : i32
    %0 = arith.cmpi eq, %arg1, %c0_i32 : i32
    %1 = arith.extui %0 : i1 to i32
    %c0_i32_0 = arith.constant 0 : i32
    %2 = arith.cmpi ne, %1, %c0_i32_0 : i32
    scf.if %2 {
      %c0_62 = arith.constant 0 : index
      %c0_63 = arith.constant 0 : index
      %c0_64 = arith.constant 0 : index
      %116 = vector.load %arg2[%c0_62, %c0_63, %c0_64] : memref<1x8x32xf32, #tpu.memory_space<vmem>>, vector<1x8x32xf32>
      %117 = vector.shape_cast %116 : vector<1x8x32xf32> to vector<8x32xf32>
      %118 = arith.truncf %117 : vector<8x32xf32> to vector<8x32xbf16>
      %c0_65 = arith.constant 0 : index
      %c0_66 = arith.constant 0 : index
      %119 = vector.load %arg6[%c0_65, %c0_66] : memref<32x32xbf16, #tpu.memory_space<vmem>>, vector<32x32xbf16>
      %cst_67 = arith.constant dense<0.000000e+00> : vector<8x32xf32>
      %120 = tpu.matmul %118, %119, %cst_67 {dimension_numbers = #tpu.dot_dimension_numbers<[1], [0], [0], [1], [0, 0, 1, 1], [], []>} : vector<8x32xbf16>, vector<32x32xbf16>, vector<8x32xf32> -> vector<8x32xf32>
      %c0_68 = arith.constant 0 : index
      %c0_69 = arith.constant 0 : index
      %121 = vector.load %arg7[%c0_68, %c0_69] : memref<1x32xf32, #tpu.memory_space<vmem>>, vector<1x32xf32>
      %122 = vector.broadcast %121 : vector<1x32xf32> to vector<8x32xf32>
      %123 = arith.addf %120, %122 : vector<8x32xf32>
      %c0_70 = arith.constant 0 : index
      %c0_71 = arith.constant 0 : index
      %124 = vector.load %arg8[%c0_70, %c0_71] : memref<32x32xbf16, #tpu.memory_space<vmem>>, vector<32x32xbf16>
      %cst_72 = arith.constant dense<0.000000e+00> : vector<8x32xf32>
      %125 = tpu.matmul %118, %124, %cst_72 {dimension_numbers = #tpu.dot_dimension_numbers<[1], [0], [0], [1], [0, 0, 1, 1], [], []>} : vector<8x32xbf16>, vector<32x32xbf16>, vector<8x32xf32> -> vector<8x32xf32>
      %c0_73 = arith.constant 0 : index
      %c0_74 = arith.constant 0 : index
      %126 = vector.load %arg9[%c0_73, %c0_74] : memref<1x32xf32, #tpu.memory_space<vmem>>, vector<1x32xf32>
      %127 = vector.broadcast %126 : vector<1x32xf32> to vector<8x32xf32>
      %128 = arith.addf %125, %127 : vector<8x32xf32>
      %129 = arith.truncf %123 : vector<8x32xf32> to vector<8x32xbf16>
      %130 = vector.shape_cast %129 : vector<8x32xbf16> to vector<8x4x8xbf16>
      %131 = tpu.transpose %130, [1, 0, 2] : vector<8x4x8xbf16> -> vector<4x8x8xbf16>
      %c0_75 = arith.constant 0 : index
      %c0_76 = arith.constant 0 : index
      %c0_77 = arith.constant 0 : index
      %132 = vector.load %arg22[%c0_75, %c0_76, %c0_77] : memref<4x8x8xbf16, #tpu.memory_space<vmem>>, vector<4x8x8xbf16>
      tpu.vector_store %arg22[%c0_75, %c0_76, %c0_77], %131 {strides = array<i32>} : memref<4x8x8xbf16, #tpu.memory_space<vmem>>, vector<4x8x8xbf16>,
      %133 = arith.truncf %128 : vector<8x32xf32> to vector<8x32xbf16>
      %134 = vector.shape_cast %133 : vector<8x32xbf16> to vector<8x4x8xbf16>
      %135 = tpu.transpose %134, [1, 0, 2] : vector<8x4x8xbf16> -> vector<4x8x8xbf16>
      %c0_78 = arith.constant 0 : index
      %c0_79 = arith.constant 0 : index
      %c0_80 = arith.constant 0 : index
      %136 = vector.load %arg23[%c0_78, %c0_79, %c0_80] : memref<4x8x8xbf16, #tpu.memory_space<vmem>>, vector<4x8x8xbf16>
      tpu.vector_store %arg23[%c0_78, %c0_79, %c0_80], %135 {strides = array<i32>} : memref<4x8x8xbf16, #tpu.memory_space<vmem>>, vector<4x8x8xbf16>,
    } else {
    }
    %c0 = arith.constant 0 : index
    %c0_1 = arith.constant 0 : index
    %c0_2 = arith.constant 0 : index
    %3 = vector.load %arg2[%c0, %c0_1, %c0_2] : memref<1x8x32xf32, #tpu.memory_space<vmem>>, vector<1x8x32xf32>
    %4 = vector.shape_cast %3 : vector<1x8x32xf32> to vector<8x32xf32>
    %c0_3 = arith.constant 0 : index
    %c0_4 = arith.constant 0 : index
    %c0_5 = arith.constant 0 : index
    %5 = vector.load %arg3[%c0_3, %c0_4, %c0_5] : memref<1x8x1xf32, #tpu.memory_space<vmem>>, vector<1x8x1xf32>
    %6 = vector.shape_cast %5 : vector<1x8x1xf32> to vector<8x1xf32>
    %7 = arith.truncf %4 : vector<8x32xf32> to vector<8x32xbf16>
    %c0_6 = arith.constant 0 : index
    %c0_7 = arith.constant 0 : index
    %8 = vector.load %arg4[%c0_6, %c0_7] : memref<32x32xbf16, #tpu.memory_space<vmem>>, vector<32x32xbf16>
    %cst = arith.constant dense<0.000000e+00> : vector<8x32xf32>
    %9 = tpu.matmul %7, %8, %cst {dimension_numbers = #tpu.dot_dimension_numbers<[1], [0], [0], [1], [0, 0, 1, 1], [], []>} : vector<8x32xbf16>, vector<32x32xbf16>, vector<8x32xf32> -> vector<8x32xf32>
    %c0_8 = arith.constant 0 : index
    %c0_9 = arith.constant 0 : index
    %10 = vector.load %arg5[%c0_8, %c0_9] : memref<1x32xf32, #tpu.memory_space<vmem>>, vector<1x32xf32>
    %11 = vector.broadcast %10 : vector<1x32xf32> to vector<8x32xf32>
    %12 = arith.addf %9, %11 : vector<8x32xf32>
    %cst_10 = arith.constant 0.353553385 : f32
    %13 = vector.broadcast %cst_10 : f32 to vector<8x32xf32>
    %14 = arith.mulf %12, %13 : vector<8x32xf32>
    %15 = arith.truncf %14 : vector<8x32xf32> to vector<8x32xbf16>
    %16 = vector.shape_cast %15 : vector<8x32xbf16> to vector<8x4x8xbf16>
    %17 = tpu.transpose %16, [1, 0, 2] : vector<8x4x8xbf16> -> vector<4x8x8xbf16>
    %c0_11 = arith.constant 0 : index
    %c0_12 = arith.constant 0 : index
    %c0_13 = arith.constant 0 : index
    %18 = vector.load %arg22[%c0_11, %c0_12, %c0_13] : memref<4x8x8xbf16, #tpu.memory_space<vmem>>, vector<4x8x8xbf16>
    %c0_14 = arith.constant 0 : index
    %c0_15 = arith.constant 0 : index
    %c0_16 = arith.constant 0 : index
    %19 = vector.load %arg23[%c0_14, %c0_15, %c0_16] : memref<4x8x8xbf16, #tpu.memory_space<vmem>>, vector<4x8x8xbf16>
    "tpu.trace_start"() <{level = 10 : i32, message = "hqd,hkd->hqk"}> : () -> ()
    %cst_17 = arith.constant dense<0.000000e+00> : vector<4x8x8xf32>
    %20 = tpu.matmul %17, %18, %cst_17 {dimension_numbers = #tpu.dot_dimension_numbers<[2], [2], [1], [1], [0, 0, 0, 1, 1, 1], [0], [0]>} : vector<4x8x8xbf16>, vector<4x8x8xbf16>, vector<4x8x8xf32> -> vector<4x8x8xf32>
    "tpu.trace_stop"() : () -> ()
    %cst_18 = arith.constant dense<0xFF800000> : vector<4x8xf32>
    %21 = vector.multi_reduction <maximumf>, %20, %cst_18 [2] : vector<4x8x8xf32> to vector<4x8xf32>
    %22 = vector.shape_cast %21 : vector<4x8xf32> to vector<4x8x1xf32>
    %23 = vector.broadcast %22 : vector<4x8x1xf32> to vector<4x8x8xf32>
    %24 = arith.subf %20, %23 : vector<4x8x8xf32>
    %25 = math.exp %24 : vector<4x8x8xf32>
    %cst_19 = arith.constant dense<0.000000e+00> : vector<4x8xf32>
    %26 = vector.multi_reduction <add>, %25, %cst_19 [2] : vector<4x8x8xf32> to vector<4x8xf32>
    %27 = vector.shape_cast %26 : vector<4x8xf32> to vector<4x8x1xf32>
    %28 = tpu.reciprocal %27 : vector<4x8x1xf32> -> vector<4x8x1xf32>
    %29 = vector.broadcast %28 : vector<4x8x1xf32> to vector<4x8x8xf32>
    %30 = arith.mulf %25, %29 : vector<4x8x8xf32>
    %31 = arith.truncf %30 : vector<4x8x8xf32> to vector<4x8x8xbf16>
    %c0_20 = arith.constant 0 : index
    %c0_21 = arith.constant 0 : index
    %c0_22 = arith.constant 0 : index
    %c0_23 = arith.constant 0 : index
    %32 = vector.load %arg21[%c0_20, %c0_21, %c0_22, %c0_23] : memref<4x1x8x8xbf16, #tpu.memory_space<vmem>>, vector<4x1x8x8xbf16>
    %33 = vector.shape_cast %32 : vector<4x1x8x8xbf16> to vector<4x8x8xbf16>
    %34 = vector.shape_cast %31 : vector<4x8x8xbf16> to vector<4x1x8x8xbf16>
    tpu.vector_store %arg21[%c0_20, %c0_21, %c0_22, %c0_23], %34 {strides = array<i32>} : memref<4x1x8x8xbf16, #tpu.memory_space<vmem>>, vector<4x1x8x8xbf16>,
    %35 = arith.truncf %30 : vector<4x8x8xf32> to vector<4x8x8xbf16>
    "tpu.trace_start"() <{level = 10 : i32, message = "hqk,hkd->hqd"}> : () -> ()
    %cst_24 = arith.constant dense<0.000000e+00> : vector<4x8x8xf32>
    %36 = tpu.matmul %35, %19, %cst_24 {dimension_numbers = #tpu.dot_dimension_numbers<[2], [1], [1], [2], [0, 0, 0, 1, 1, 2], [0], [0]>} : vector<4x8x8xbf16>, vector<4x8x8xbf16>, vector<4x8x8xf32> -> vector<4x8x8xf32>
    "tpu.trace_stop"() : () -> ()
    %37 = arith.truncf %36 : vector<4x8x8xf32> to vector<4x8x8xbf16>
    %38 = tpu.transpose %37, [1, 0, 2] : vector<4x8x8xbf16> -> vector<8x4x8xbf16>
    %39 = vector.shape_cast %38 : vector<8x4x8xbf16> to vector<8x32xbf16>
    %c0_25 = arith.constant 0 : index
    %c0_26 = arith.constant 0 : index
    %40 = vector.load %arg10[%c0_25, %c0_26] : memref<32x32xbf16, #tpu.memory_space<vmem>>, vector<32x32xbf16>
    %cst_27 = arith.constant dense<0.000000e+00> : vector<8x32xf32>
    %41 = tpu.matmul %39, %40, %cst_27 {dimension_numbers = #tpu.dot_dimension_numbers<[1], [0], [0], [1], [0, 0, 1, 1], [], []>} : vector<8x32xbf16>, vector<32x32xbf16>, vector<8x32xf32> -> vector<8x32xf32>
    %c0_28 = arith.constant 0 : index
    %c0_29 = arith.constant 0 : index
    %42 = vector.load %arg11[%c0_28, %c0_29] : memref<1x32xf32, #tpu.memory_space<vmem>>, vector<1x32xf32>
    %43 = vector.broadcast %42 : vector<1x32xf32> to vector<8x32xf32>
    %44 = arith.addf %41, %43 : vector<8x32xf32>
    %45 = arith.addf %44, %4 : vector<8x32xf32>
    %c0_30 = arith.constant 0 : index
    %c0_31 = arith.constant 0 : index
    %46 = vector.load %arg12[%c0_30, %c0_31] : memref<1x32xf32, #tpu.memory_space<vmem>>, vector<1x32xf32>
    %c0_32 = arith.constant 0 : index
    %c0_33 = arith.constant 0 : index
    %47 = vector.load %arg13[%c0_32, %c0_33] : memref<1x32xf32, #tpu.memory_space<vmem>>, vector<1x32xf32>
    %cst_34 = arith.constant dense<0.000000e+00> : vector<8xf32>
    %48 = vector.multi_reduction <add>, %45, %cst_34 [1] : vector<8x32xf32> to vector<8xf32>
    %49 = vector.shape_cast %48 : vector<8xf32> to vector<8x1xf32>
    %cst_35 = arith.constant 3.200000e+01 : f32
    %50 = vector.broadcast %cst_35 : f32 to vector<8x1xf32>
    %51 = arith.divf %49, %50 : vector<8x1xf32>
    %52 = vector.broadcast %51 : vector<8x1xf32> to vector<8x32xf32>
    %53 = arith.subf %45, %52 : vector<8x32xf32>
    %54 = arith.mulf %53, %53 : vector<8x32xf32>
    %cst_36 = arith.constant dense<0.000000e+00> : vector<8xf32>
    %55 = vector.multi_reduction <add>, %54, %cst_36 [1] : vector<8x32xf32> to vector<8xf32>
    %56 = vector.shape_cast %55 : vector<8xf32> to vector<8x1xf32>
    %cst_37 = arith.constant 3.200000e+01 : f32
    %57 = vector.broadcast %cst_37 : f32 to vector<8x1xf32>
    %58 = arith.divf %56, %57 : vector<8x1xf32>
    %cst_38 = arith.constant 9.99999974E-6 : f32
    %59 = vector.broadcast %cst_38 : f32 to vector<8x1xf32>
    %60 = arith.addf %58, %59 : vector<8x1xf32>
    %61 = math.rsqrt %60 : vector<8x1xf32>
    %62 = vector.broadcast %51 : vector<8x1xf32> to vector<8x32xf32>
    %63 = arith.subf %45, %62 : vector<8x32xf32>
    %64 = vector.broadcast %61 : vector<8x1xf32> to vector<8x32xf32>
    %65 = arith.mulf %63, %64 : vector<8x32xf32>
    %66 = vector.broadcast %46 : vector<1x32xf32> to vector<8x32xf32>
    %67 = arith.mulf %65, %66 : vector<8x32xf32>
    %68 = vector.broadcast %47 : vector<1x32xf32> to vector<8x32xf32>
    %69 = arith.addf %67, %68 : vector<8x32xf32>
    %70 = vector.broadcast %6 : vector<8x1xf32> to vector<8x32xf32>
    %71 = arith.mulf %69, %70 : vector<8x32xf32>
    %72 = arith.truncf %71 : vector<8x32xf32> to vector<8x32xbf16>
    %c0_39 = arith.constant 0 : index
    %c0_40 = arith.constant 0 : index
    %73 = vector.load %arg14[%c0_39, %c0_40] : memref<32x64xbf16, #tpu.memory_space<vmem>>, vector<32x64xbf16>
    %cst_41 = arith.constant dense<0.000000e+00> : vector<8x64xf32>
    %74 = tpu.matmul %72, %73, %cst_41 {dimension_numbers = #tpu.dot_dimension_numbers<[1], [0], [0], [1], [0, 0, 1, 1], [], []>} : vector<8x32xbf16>, vector<32x64xbf16>, vector<8x64xf32> -> vector<8x64xf32>
    %c0_42 = arith.constant 0 : index
    %c0_43 = arith.constant 0 : index
    %75 = vector.load %arg15[%c0_42, %c0_43] : memref<1x64xf32, #tpu.memory_space<vmem>>, vector<1x64xf32>
    %76 = vector.broadcast %75 : vector<1x64xf32> to vector<8x64xf32>
    %77 = arith.addf %74, %76 : vector<8x64xf32>
    %cst_44 = arith.constant 0.000000e+00 : f32
    %78 = vector.broadcast %cst_44 : f32 to vector<8x64xf32>
    %79 = arith.maximumf %77, %78 : vector<8x64xf32>
    %80 = arith.truncf %79 : vector<8x64xf32> to vector<8x64xbf16>
    %c0_45 = arith.constant 0 : index
    %c0_46 = arith.constant 0 : index
    %81 = vector.load %arg16[%c0_45, %c0_46] : memref<64x32xbf16, #tpu.memory_space<vmem>>, vector<64x32xbf16>
    %cst_47 = arith.constant dense<0.000000e+00> : vector<8x32xf32>
    %82 = tpu.matmul %80, %81, %cst_47 {dimension_numbers = #tpu.dot_dimension_numbers<[1], [0], [0], [1], [0, 0, 1, 1], [], []>} : vector<8x64xbf16>, vector<64x32xbf16>, vector<8x32xf32> -> vector<8x32xf32>
    %c0_48 = arith.constant 0 : index
    %c0_49 = arith.constant 0 : index
    %83 = vector.load %arg17[%c0_48, %c0_49] : memref<1x32xf32, #tpu.memory_space<vmem>>, vector<1x32xf32>
    %84 = vector.broadcast %83 : vector<1x32xf32> to vector<8x32xf32>
    %85 = arith.addf %82, %84 : vector<8x32xf32>
    %86 = arith.addf %85, %71 : vector<8x32xf32>
    %c0_50 = arith.constant 0 : index
    %c0_51 = arith.constant 0 : index
    %87 = vector.load %arg18[%c0_50, %c0_51] : memref<1x32xf32, #tpu.memory_space<vmem>>, vector<1x32xf32>
    %c0_52 = arith.constant 0 : index
    %c0_53 = arith.constant 0 : index
    %88 = vector.load %arg19[%c0_52, %c0_53] : memref<1x32xf32, #tpu.memory_space<vmem>>, vector<1x32xf32>
    %cst_54 = arith.constant dense<0.000000e+00> : vector<8xf32>
    %89 = vector.multi_reduction <add>, %86, %cst_54 [1] : vector<8x32xf32> to vector<8xf32>
    %90 = vector.shape_cast %89 : vector<8xf32> to vector<8x1xf32>
    %cst_55 = arith.constant 3.200000e+01 : f32
    %91 = vector.broadcast %cst_55 : f32 to vector<8x1xf32>
    %92 = arith.divf %90, %91 : vector<8x1xf32>
    %93 = vector.broadcast %92 : vector<8x1xf32> to vector<8x32xf32>
    %94 = arith.subf %86, %93 : vector<8x32xf32>
    %95 = arith.mulf %94, %94 : vector<8x32xf32>
    %cst_56 = arith.constant dense<0.000000e+00> : vector<8xf32>
    %96 = vector.multi_reduction <add>, %95, %cst_56 [1] : vector<8x32xf32> to vector<8xf32>
    %97 = vector.shape_cast %96 : vector<8xf32> to vector<8x1xf32>
    %cst_57 = arith.constant 3.200000e+01 : f32
    %98 = vector.broadcast %cst_57 : f32 to vector<8x1xf32>
    %99 = arith.divf %97, %98 : vector<8x1xf32>
    %cst_58 = arith.constant 9.99999974E-6 : f32
    %100 = vector.broadcast %cst_58 : f32 to vector<8x1xf32>
    %101 = arith.addf %99, %100 : vector<8x1xf32>
    %102 = math.rsqrt %101 : vector<8x1xf32>
    %103 = vector.broadcast %92 : vector<8x1xf32> to vector<8x32xf32>
    %104 = arith.subf %86, %103 : vector<8x32xf32>
    %105 = vector.broadcast %102 : vector<8x1xf32> to vector<8x32xf32>
    %106 = arith.mulf %104, %105 : vector<8x32xf32>
    %107 = vector.broadcast %87 : vector<1x32xf32> to vector<8x32xf32>
    %108 = arith.mulf %106, %107 : vector<8x32xf32>
    %109 = vector.broadcast %88 : vector<1x32xf32> to vector<8x32xf32>
    %110 = arith.addf %108, %109 : vector<8x32xf32>
    %111 = vector.broadcast %6 : vector<8x1xf32> to vector<8x32xf32>
    %112 = arith.mulf %110, %111 : vector<8x32xf32>
    %c0_59 = arith.constant 0 : index
    %c0_60 = arith.constant 0 : index
    %c0_61 = arith.constant 0 : index
    %113 = vector.load %arg20[%c0_59, %c0_60, %c0_61] : memref<1x8x32xf32, #tpu.memory_space<vmem>>, vector<1x8x32xf32>
    %114 = vector.shape_cast %113 : vector<1x8x32xf32> to vector<8x32xf32>
    %115 = vector.shape_cast %112 : vector<8x32xf32> to vector<1x8x32xf32>
    tpu.vector_store %arg20[%c0_59, %c0_60, %c0_61], %115 {strides = array<i32>} : memref<1x8x32xf32, #tpu.memory_space<vmem>>, vector<1x8x32xf32>,
    return
  }
  func.func @transform_0(%arg0: i32, %arg1: i32) -> (i32, i32, i32) {
    %c0_i32 = arith.constant 0 : i32
    %c0_i32_0 = arith.constant 0 : i32
    %c0_i32_1 = arith.constant 0 : i32
    return %arg0, %c0_i32, %c0_i32_0 : i32, i32, i32
  }
  func.func @transform_1(%arg0: i32, %arg1: i32) -> (i32, i32, i32) {
    %c0_i32 = arith.constant 0 : i32
    %c0_i32_0 = arith.constant 0 : i32
    return %arg0, %arg1, %c0_i32 : i32, i32, i32
  }
  func.func @transform_2(%arg0: i32, %arg1: i32) -> (i32, i32) {
    %c0_i32 = arith.constant 0 : i32
    %c0_i32_0 = arith.constant 0 : i32
    %c0_i32_1 = arith.constant 0 : i32
    return %c0_i32, %c0_i32_0 : i32, i32
  }
  func.func @transform_3(%arg0: i32, %arg1: i32) -> (i32, i32) {
    %c0_i32 = arith.constant 0 : i32
    %c0_i32_0 = arith.constant 0 : i32
    %c0_i32_1 = arith.constant 0 : i32
    return %c0_i32, %c0_i32_0 : i32, i32
  }
  func.func @transform_4(%arg0: i32, %arg1: i32) -> (i32, i32) {
    %c0_i32 = arith.constant 0 : i32
    %c0_i32_0 = arith.constant 0 : i32
    %c0_i32_1 = arith.constant 0 : i32
    return %c0_i32, %c0_i32_0 : i32, i32
  }
  func.func @transform_5(%arg0: i32, %arg1: i32) -> (i32, i32) {
    %c0_i32 = arith.constant 0 : i32
    %c0_i32_0 = arith.constant 0 : i32
    %c0_i32_1 = arith.constant 0 : i32
    return %c0_i32, %c0_i32_0 : i32, i32
  }
  func.func @transform_6(%arg0: i32, %arg1: i32) -> (i32, i32) {
    %c0_i32 = arith.constant 0 : i32
    %c0_i32_0 = arith.constant 0 : i32
    %c0_i32_1 = arith.constant 0 : i32
    return %c0_i32, %c0_i32_0 : i32, i32
  }
  func.func @transform_7(%arg0: i32, %arg1: i32) -> (i32, i32) {
    %c0_i32 = arith.constant 0 : i32
    %c0_i32_0 = arith.constant 0 : i32
    %c0_i32_1 = arith.constant 0 : i32
    return %c0_i32, %c0_i32_0 : i32, i32
  }
  func.func @transform_8(%arg0: i32, %arg1: i32) -> (i32, i32) {
    %c0_i32 = arith.constant 0 : i32
    %c0_i32_0 = arith.constant 0 : i32
    %c0_i32_1 = arith.constant 0 : i32
    return %c0_i32, %c0_i32_0 : i32, i32
  }
  func.func @transform_9(%arg0: i32, %arg1: i32) -> (i32, i32) {
    %c0_i32 = arith.constant 0 : i32
    %c0_i32_0 = arith.constant 0 : i32
    %c0_i32_1 = arith.constant 0 : i32
    return %c0_i32, %c0_i32_0 : i32, i32
  }
  func.func @transform_10(%arg0: i32, %arg1: i32) -> (i32, i32) {
    %c0_i32 = arith.constant 0 : i32
    %c0_i32_0 = arith.constant 0 : i32
    %c0_i32_1 = arith.constant 0 : i32
    return %c0_i32, %c0_i32_0 : i32, i32
  }
  func.func @transform_11(%arg0: i32, %arg1: i32) -> (i32, i32) {
    %c0_i32 = arith.constant 0 : i32
    %c0_i32_0 = arith.constant 0 : i32
    %c0_i32_1 = arith.constant 0 : i32
    return %c0_i32, %c0_i32_0 : i32, i32
  }
  func.func @transform_12(%arg0: i32, %arg1: i32) -> (i32, i32) {
    %c0_i32 = arith.constant 0 : i32
    %c0_i32_0 = arith.constant 0 : i32
    %c0_i32_1 = arith.constant 0 : i32
    return %c0_i32, %c0_i32_0 : i32, i32
  }
  func.func @transform_13(%arg0: i32, %arg1: i32) -> (i32, i32) {
    %c0_i32 = arith.constant 0 : i32
    %c0_i32_0 = arith.constant 0 : i32
    %c0_i32_1 = arith.constant 0 : i32
    return %c0_i32, %c0_i32_0 : i32, i32
  }
  func.func @transform_14(%arg0: i32, %arg1: i32) -> (i32, i32) {
    %c0_i32 = arith.constant 0 : i32
    %c0_i32_0 = arith.constant 0 : i32
    %c0_i32_1 = arith.constant 0 : i32
    return %c0_i32, %c0_i32_0 : i32, i32
  }
  func.func @transform_15(%arg0: i32, %arg1: i32) -> (i32, i32) {
    %c0_i32 = arith.constant 0 : i32
    %c0_i32_0 = arith.constant 0 : i32
    %c0_i32_1 = arith.constant 0 : i32
    return %c0_i32, %c0_i32_0 : i32, i32
  }
  func.func @transform_16(%arg0: i32, %arg1: i32) -> (i32, i32) {
    %c0_i32 = arith.constant 0 : i32
    %c0_i32_0 = arith.constant 0 : i32
    %c0_i32_1 = arith.constant 0 : i32
    return %c0_i32, %c0_i32_0 : i32, i32
  }
  func.func @transform_17(%arg0: i32, %arg1: i32) -> (i32, i32) {
    %c0_i32 = arith.constant 0 : i32
    %c0_i32_0 = arith.constant 0 : i32
    %c0_i32_1 = arith.constant 0 : i32
    return %c0_i32, %c0_i32_0 : i32, i32
  }
  func.func @transform_18(%arg0: i32, %arg1: i32) -> (i32, i32, i32) {
    %c0_i32 = arith.constant 0 : i32
    %c0_i32_0 = arith.constant 0 : i32
    return %arg0, %arg1, %c0_i32 : i32, i32, i32
  }
  func.func @transform_19(%arg0: i32, %arg1: i32) -> (i32, i32, i32, i32) {
    %c0_i32 = arith.constant 0 : i32
    %c0_i32_0 = arith.constant 0 : i32
    %c0_i32_1 = arith.constant 0 : i32
    return %c0_i32, %arg0, %arg1, %c0_i32_0 : i32, i32, i32, i32
  }
}

module attributes {stable_mosaic.version = 11 : i64} {
  func.func @_encoder_layer_kernel(%arg0: i32, %arg1: i32, %arg2: memref<1x8x32xf32, #tpu.memory_space<vmem>>, %arg3: memref<1x8x1xf32, #tpu.memory_space<vmem>>, %arg4: memref<32x32xbf16, #tpu.memory_space<vmem>>, %arg5: memref<1x32xf32, #tpu.memory_space<vmem>>, %arg6: memref<32x32xbf16, #tpu.memory_space<vmem>>, %arg7: memref<1x32xf32, #tpu.memory_space<vmem>>, %arg8: memref<32x32xbf16, #tpu.memory_space<vmem>>, %arg9: memref<1x32xf32, #tpu.memory_space<vmem>>, %arg10: memref<32x32xbf16, #tpu.memory_space<vmem>>, %arg11: memref<1x32xf32, #tpu.memory_space<vmem>>, %arg12: memref<1x32xf32, #tpu.memory_space<vmem>>, %arg13: memref<1x32xf32, #tpu.memory_space<vmem>>, %arg14: memref<32x64xbf16, #tpu.memory_space<vmem>>, %arg15: memref<1x64xf32, #tpu.memory_space<vmem>>, %arg16: memref<64x32xbf16, #tpu.memory_space<vmem>>, %arg17: memref<1x32xf32, #tpu.memory_space<vmem>>, %arg18: memref<1x32xf32, #tpu.memory_space<vmem>>, %arg19: memref<1x32xf32, #tpu.memory_space<vmem>>, %arg20: memref<1x8x32xf32, #tpu.memory_space<vmem>>, %arg21: memref<4x1x8x8xbf16, #tpu.memory_space<vmem>>, %arg22: memref<4x8x8xbf16, #tpu.memory_space<vmem>>, %arg23: memref<4x8x8xbf16, #tpu.memory_space<vmem>>) attributes {dimension_semantics = [#tpu.dimension_semantics<parallel>, #tpu.dimension_semantics<arbitrary>], iteration_bounds = array<i64: 2, 1>, scalar_prefetch = 0 : i64, scratch_operands = 2 : i64, tpu.core_type = #tpu.core_type<tc>, window_params = [{transform_indices = @transform_0, window_bounds = array<i64: 1, 8, 32>}, {transform_indices = @transform_1, window_bounds = array<i64: 1, 8, 1>}, {pipeline_mode = #tpu.pipeline_mode<synchronous>, transform_indices = @transform_2, window_bounds = array<i64: 32, 32>}, {pipeline_mode = #tpu.pipeline_mode<synchronous>, transform_indices = @transform_3, window_bounds = array<i64: 1, 32>}, {pipeline_mode = #tpu.pipeline_mode<synchronous>, transform_indices = @transform_4, window_bounds = array<i64: 32, 32>}, {pipeline_mode = #tpu.pipeline_mode<synchronous>, transform_indices = @transform_5, window_bounds = array<i64: 1, 32>}, {pipeline_mode = #tpu.pipeline_mode<synchronous>, transform_indices = @transform_6, window_bounds = array<i64: 32, 32>}, {pipeline_mode = #tpu.pipeline_mode<synchronous>, transform_indices = @transform_7, window_bounds = array<i64: 1, 32>}, {pipeline_mode = #tpu.pipeline_mode<synchronous>, transform_indices = @transform_8, window_bounds = array<i64: 32, 32>}, {pipeline_mode = #tpu.pipeline_mode<synchronous>, transform_indices = @transform_9, window_bounds = array<i64: 1, 32>}, {pipeline_mode = #tpu.pipeline_mode<synchronous>, transform_indices = @transform_10, window_bounds = array<i64: 1, 32>}, {pipeline_mode = #tpu.pipeline_mode<synchronous>, transform_indices = @transform_11, window_bounds = array<i64: 1, 32>}, {pipeline_mode = #tpu.pipeline_mode<synchronous>, transform_indices = @transform_12, window_bounds = array<i64: 32, 64>}, {pipeline_mode = #tpu.pipeline_mode<synchronous>, transform_indices = @transform_13, window_bounds = array<i64: 1, 64>}, {pipeline_mode = #tpu.pipeline_mode<synchronous>, transform_indices = @transform_14, window_bounds = array<i64: 64, 32>}, {pipeline_mode = #tpu.pipeline_mode<synchronous>, transform_indices = @transform_15, window_bounds = array<i64: 1, 32>}, {pipeline_mode = #tpu.pipeline_mode<synchronous>, transform_indices = @transform_16, window_bounds = array<i64: 1, 32>}, {pipeline_mode = #tpu.pipeline_mode<synchronous>, transform_indices = @transform_17, window_bounds = array<i64: 1, 32>}, {transform_indices = @transform_18, window_bounds = array<i64: 1, 8, 32>}, {transform_indices = @transform_19, window_bounds = array<i64: 4, 1, 8, 8>}]} {
    %c0_i32 = arith.constant 0 : i32
    %0 = arith.cmpi eq, %arg1, %c0_i32 : i32
    %1 = arith.extui %0 : i1 to i32
    %c0_i32_0 = arith.constant 0 : i32
    %2 = arith.cmpi ne, %1, %c0_i32_0 : i32
    scf.if %2 {
      %c0_62 = arith.constant 0 : index
      %c0_63 = arith.constant 0 : index
      %c0_64 = arith.constant 0 : index
      %116 = vector.load %arg2[%c0_62, %c0_63, %c0_64] : memref<1x8x32xf32, #tpu.memory_space<vmem>>, vector<1x8x32xf32>
      %117 = vector.shape_cast %116 : vector<1x8x32xf32> to vector<8x32xf32>
      %118 = arith.truncf %117 : vector<8x32xf32> to vector<8x32xbf16>
      %c0_65 = arith.constant 0 : index
      %c0_66 = arith.constant 0 : index
      %119 = vector.load %arg6[%c0_65, %c0_66] : memref<32x32xbf16, #tpu.memory_space<vmem>>, vector<32x32xbf16>
      %cst_67 = arith.constant dense<0.000000e+00> : vector<8x32xf32>
      %120 = tpu.matmul %118, %119, %cst_67 {dimension_numbers = #tpu.dot_dimension_numbers<[1], [0], [0], [1], [0, 0, 1, 1], [], []>} : vector<8x32xbf16>, vector<32x32xbf16>, vector<8x32xf32> -> vector<8x32xf32>
      %c0_68 = arith.constant 0 : index
      %c0_69 = arith.constant 0 : index
      %121 = vector.load %arg7[%c0_68, %c0_69] : memref<1x32xf32, #tpu.memory_space<vmem>>, vector<1x32xf32>
      %122 = vector.broadcast %121 : vector<1x32xf32> to vector<8x32xf32>
      %123 = arith.addf %120, %122 : vector<8x32xf32>
      %c0_70 = arith.constant 0 : index
      %c0_71 = arith.constant 0 : index
      %124 = vector.load %arg8[%c0_70, %c0_71] : memref<32x32xbf16, #tpu.memory_space<vmem>>, vector<32x32xbf16>
      %cst_72 = arith.constant dense<0.000000e+00> : vector<8x32xf32>
      %125 = tpu.matmul %118, %124, %cst_72 {dimension_numbers = #tpu.dot_dimension_numbers<[1], [0], [0], [1], [0, 0, 1, 1], [], []>} : vector<8x32xbf16>, vector<32x32xbf16>, vector<8x32xf32> -> vector<8x32xf32>
      %c0_73 = arith.constant 0 : index
      %c0_74 = arith.constant 0 : index
      %126 = vector.load %arg9[%c0_73, %c0_74] : memref<1x32xf32, #tpu.memory_space<vmem>>, vector<1x32xf32>
      %127 = vector.broadcast %126 : vector<1x32xf32> to vector<8x32xf32>
      %128 = arith.addf %125, %127 : vector<8x32xf32>
      %129 = vector.shape_cast %123 : vector<8x32xf32> to vector<8x4x8xf32>
      %130 = tpu.transpose %129, [1, 0, 2] : vector<8x4x8xf32> -> vector<4x8x8xf32>
      %131 = arith.truncf %130 : vector<4x8x8xf32> to vector<4x8x8xbf16>
      %c0_75 = arith.constant 0 : index
      %c0_76 = arith.constant 0 : index
      %c0_77 = arith.constant 0 : index
      %132 = vector.load %arg22[%c0_75, %c0_76, %c0_77] : memref<4x8x8xbf16, #tpu.memory_space<vmem>>, vector<4x8x8xbf16>
      tpu.vector_store %arg22[%c0_75, %c0_76, %c0_77], %131 {strides = array<i32>} : memref<4x8x8xbf16, #tpu.memory_space<vmem>>, vector<4x8x8xbf16>,
      %133 = vector.shape_cast %128 : vector<8x32xf32> to vector<8x4x8xf32>
      %134 = tpu.transpose %133, [1, 0, 2] : vector<8x4x8xf32> -> vector<4x8x8xf32>
      %135 = arith.truncf %134 : vector<4x8x8xf32> to vector<4x8x8xbf16>
      %c0_78 = arith.constant 0 : index
      %c0_79 = arith.constant 0 : index
      %c0_80 = arith.constant 0 : index
      %136 = vector.load %arg23[%c0_78, %c0_79, %c0_80] : memref<4x8x8xbf16, #tpu.memory_space<vmem>>, vector<4x8x8xbf16>
      tpu.vector_store %arg23[%c0_78, %c0_79, %c0_80], %135 {strides = array<i32>} : memref<4x8x8xbf16, #tpu.memory_space<vmem>>, vector<4x8x8xbf16>,
    } else {
    }
    %c0 = arith.constant 0 : index
    %c0_1 = arith.constant 0 : index
    %c0_2 = arith.constant 0 : index
    %3 = vector.load %arg2[%c0, %c0_1, %c0_2] : memref<1x8x32xf32, #tpu.memory_space<vmem>>, vector<1x8x32xf32>
    %4 = vector.shape_cast %3 : vector<1x8x32xf32> to vector<8x32xf32>
    %c0_3 = arith.constant 0 : index
    %c0_4 = arith.constant 0 : index
    %c0_5 = arith.constant 0 : index
    %5 = vector.load %arg3[%c0_3, %c0_4, %c0_5] : memref<1x8x1xf32, #tpu.memory_space<vmem>>, vector<1x8x1xf32>
    %6 = vector.shape_cast %5 : vector<1x8x1xf32> to vector<8x1xf32>
    %7 = arith.truncf %4 : vector<8x32xf32> to vector<8x32xbf16>
    %c0_6 = arith.constant 0 : index
    %c0_7 = arith.constant 0 : index
    %8 = vector.load %arg4[%c0_6, %c0_7] : memref<32x32xbf16, #tpu.memory_space<vmem>>, vector<32x32xbf16>
    %cst = arith.constant dense<0.000000e+00> : vector<8x32xf32>
    %9 = tpu.matmul %7, %8, %cst {dimension_numbers = #tpu.dot_dimension_numbers<[1], [0], [0], [1], [0, 0, 1, 1], [], []>} : vector<8x32xbf16>, vector<32x32xbf16>, vector<8x32xf32> -> vector<8x32xf32>
    %c0_8 = arith.constant 0 : index
    %c0_9 = arith.constant 0 : index
    %10 = vector.load %arg5[%c0_8, %c0_9] : memref<1x32xf32, #tpu.memory_space<vmem>>, vector<1x32xf32>
    %11 = vector.broadcast %10 : vector<1x32xf32> to vector<8x32xf32>
    %12 = arith.addf %9, %11 : vector<8x32xf32>
    %cst_10 = arith.constant 0.353553385 : f32
    %13 = vector.broadcast %cst_10 : f32 to vector<8x32xf32>
    %14 = arith.mulf %12, %13 : vector<8x32xf32>
    %15 = vector.shape_cast %14 : vector<8x32xf32> to vector<8x4x8xf32>
    %16 = tpu.transpose %15, [1, 0, 2] : vector<8x4x8xf32> -> vector<4x8x8xf32>
    %17 = arith.truncf %16 : vector<4x8x8xf32> to vector<4x8x8xbf16>
    %c0_11 = arith.constant 0 : index
    %c0_12 = arith.constant 0 : index
    %c0_13 = arith.constant 0 : index
    %18 = vector.load %arg22[%c0_11, %c0_12, %c0_13] : memref<4x8x8xbf16, #tpu.memory_space<vmem>>, vector<4x8x8xbf16>
    %c0_14 = arith.constant 0 : index
    %c0_15 = arith.constant 0 : index
    %c0_16 = arith.constant 0 : index
    %19 = vector.load %arg23[%c0_14, %c0_15, %c0_16] : memref<4x8x8xbf16, #tpu.memory_space<vmem>>, vector<4x8x8xbf16>
    "tpu.trace_start"() <{level = 10 : i32, message = "hqd,hkd->hqk"}> : () -> ()
    %cst_17 = arith.constant dense<0.000000e+00> : vector<4x8x8xf32>
    %20 = tpu.matmul %17, %18, %cst_17 {dimension_numbers = #tpu.dot_dimension_numbers<[2], [2], [1], [1], [0, 0, 0, 1, 1, 1], [0], [0]>} : vector<4x8x8xbf16>, vector<4x8x8xbf16>, vector<4x8x8xf32> -> vector<4x8x8xf32>
    "tpu.trace_stop"() : () -> ()
    %cst_18 = arith.constant dense<0xFF800000> : vector<4x8xf32>
    %21 = vector.multi_reduction <maximumf>, %20, %cst_18 [2] : vector<4x8x8xf32> to vector<4x8xf32>
    %22 = vector.shape_cast %21 : vector<4x8xf32> to vector<4x8x1xf32>
    %23 = vector.broadcast %22 : vector<4x8x1xf32> to vector<4x8x8xf32>
    %24 = arith.subf %20, %23 : vector<4x8x8xf32>
    %25 = math.exp %24 : vector<4x8x8xf32>
    %cst_19 = arith.constant dense<0.000000e+00> : vector<4x8xf32>
    %26 = vector.multi_reduction <add>, %25, %cst_19 [2] : vector<4x8x8xf32> to vector<4x8xf32>
    %27 = vector.shape_cast %26 : vector<4x8xf32> to vector<4x8x1xf32>
    %28 = tpu.reciprocal %27 : vector<4x8x1xf32> -> vector<4x8x1xf32>
    %29 = vector.broadcast %28 : vector<4x8x1xf32> to vector<4x8x8xf32>
    %30 = arith.mulf %25, %29 : vector<4x8x8xf32>
    %31 = arith.truncf %30 : vector<4x8x8xf32> to vector<4x8x8xbf16>
    %c0_20 = arith.constant 0 : index
    %c0_21 = arith.constant 0 : index
    %c0_22 = arith.constant 0 : index
    %c0_23 = arith.constant 0 : index
    %32 = vector.load %arg21[%c0_20, %c0_21, %c0_22, %c0_23] : memref<4x1x8x8xbf16, #tpu.memory_space<vmem>>, vector<4x1x8x8xbf16>
    %33 = vector.shape_cast %32 : vector<4x1x8x8xbf16> to vector<4x8x8xbf16>
    %34 = vector.shape_cast %31 : vector<4x8x8xbf16> to vector<4x1x8x8xbf16>
    tpu.vector_store %arg21[%c0_20, %c0_21, %c0_22, %c0_23], %34 {strides = array<i32>} : memref<4x1x8x8xbf16, #tpu.memory_space<vmem>>, vector<4x1x8x8xbf16>,
    %35 = arith.truncf %30 : vector<4x8x8xf32> to vector<4x8x8xbf16>
    "tpu.trace_start"() <{level = 10 : i32, message = "hqk,hkd->hqd"}> : () -> ()
    %cst_24 = arith.constant dense<0.000000e+00> : vector<4x8x8xf32>
    %36 = tpu.matmul %35, %19, %cst_24 {dimension_numbers = #tpu.dot_dimension_numbers<[2], [1], [1], [2], [0, 0, 0, 1, 1, 2], [0], [0]>} : vector<4x8x8xbf16>, vector<4x8x8xbf16>, vector<4x8x8xf32> -> vector<4x8x8xf32>
    "tpu.trace_stop"() : () -> ()
    %37 = tpu.transpose %36, [1, 0, 2] : vector<4x8x8xf32> -> vector<8x4x8xf32>
    %38 = vector.shape_cast %37 : vector<8x4x8xf32> to vector<8x32xf32>
    %39 = arith.truncf %38 : vector<8x32xf32> to vector<8x32xbf16>
    %c0_25 = arith.constant 0 : index
    %c0_26 = arith.constant 0 : index
    %40 = vector.load %arg10[%c0_25, %c0_26] : memref<32x32xbf16, #tpu.memory_space<vmem>>, vector<32x32xbf16>
    %cst_27 = arith.constant dense<0.000000e+00> : vector<8x32xf32>
    %41 = tpu.matmul %39, %40, %cst_27 {dimension_numbers = #tpu.dot_dimension_numbers<[1], [0], [0], [1], [0, 0, 1, 1], [], []>} : vector<8x32xbf16>, vector<32x32xbf16>, vector<8x32xf32> -> vector<8x32xf32>
    %c0_28 = arith.constant 0 : index
    %c0_29 = arith.constant 0 : index
    %42 = vector.load %arg11[%c0_28, %c0_29] : memref<1x32xf32, #tpu.memory_space<vmem>>, vector<1x32xf32>
    %43 = vector.broadcast %42 : vector<1x32xf32> to vector<8x32xf32>
    %44 = arith.addf %41, %43 : vector<8x32xf32>
    %45 = arith.addf %44, %4 : vector<8x32xf32>
    %c0_30 = arith.constant 0 : index
    %c0_31 = arith.constant 0 : index
    %46 = vector.load %arg12[%c0_30, %c0_31] : memref<1x32xf32, #tpu.memory_space<vmem>>, vector<1x32xf32>
    %c0_32 = arith.constant 0 : index
    %c0_33 = arith.constant 0 : index
    %47 = vector.load %arg13[%c0_32, %c0_33] : memref<1x32xf32, #tpu.memory_space<vmem>>, vector<1x32xf32>
    %cst_34 = arith.constant dense<0.000000e+00> : vector<8xf32>
    %48 = vector.multi_reduction <add>, %45, %cst_34 [1] : vector<8x32xf32> to vector<8xf32>
    %49 = vector.shape_cast %48 : vector<8xf32> to vector<8x1xf32>
    %cst_35 = arith.constant 3.200000e+01 : f32
    %50 = vector.broadcast %cst_35 : f32 to vector<8x1xf32>
    %51 = arith.divf %49, %50 : vector<8x1xf32>
    %52 = vector.broadcast %51 : vector<8x1xf32> to vector<8x32xf32>
    %53 = arith.subf %45, %52 : vector<8x32xf32>
    %54 = arith.mulf %53, %53 : vector<8x32xf32>
    %cst_36 = arith.constant dense<0.000000e+00> : vector<8xf32>
    %55 = vector.multi_reduction <add>, %54, %cst_36 [1] : vector<8x32xf32> to vector<8xf32>
    %56 = vector.shape_cast %55 : vector<8xf32> to vector<8x1xf32>
    %cst_37 = arith.constant 3.200000e+01 : f32
    %57 = vector.broadcast %cst_37 : f32 to vector<8x1xf32>
    %58 = arith.divf %56, %57 : vector<8x1xf32>
    %cst_38 = arith.constant 9.99999974E-6 : f32
    %59 = vector.broadcast %cst_38 : f32 to vector<8x1xf32>
    %60 = arith.addf %58, %59 : vector<8x1xf32>
    %61 = math.rsqrt %60 : vector<8x1xf32>
    %62 = vector.broadcast %51 : vector<8x1xf32> to vector<8x32xf32>
    %63 = arith.subf %45, %62 : vector<8x32xf32>
    %64 = vector.broadcast %61 : vector<8x1xf32> to vector<8x32xf32>
    %65 = arith.mulf %63, %64 : vector<8x32xf32>
    %66 = vector.broadcast %46 : vector<1x32xf32> to vector<8x32xf32>
    %67 = arith.mulf %65, %66 : vector<8x32xf32>
    %68 = vector.broadcast %47 : vector<1x32xf32> to vector<8x32xf32>
    %69 = arith.addf %67, %68 : vector<8x32xf32>
    %70 = vector.broadcast %6 : vector<8x1xf32> to vector<8x32xf32>
    %71 = arith.mulf %69, %70 : vector<8x32xf32>
    %72 = arith.truncf %71 : vector<8x32xf32> to vector<8x32xbf16>
    %c0_39 = arith.constant 0 : index
    %c0_40 = arith.constant 0 : index
    %73 = vector.load %arg14[%c0_39, %c0_40] : memref<32x64xbf16, #tpu.memory_space<vmem>>, vector<32x64xbf16>
    %cst_41 = arith.constant dense<0.000000e+00> : vector<8x64xf32>
    %74 = tpu.matmul %72, %73, %cst_41 {dimension_numbers = #tpu.dot_dimension_numbers<[1], [0], [0], [1], [0, 0, 1, 1], [], []>} : vector<8x32xbf16>, vector<32x64xbf16>, vector<8x64xf32> -> vector<8x64xf32>
    %c0_42 = arith.constant 0 : index
    %c0_43 = arith.constant 0 : index
    %75 = vector.load %arg15[%c0_42, %c0_43] : memref<1x64xf32, #tpu.memory_space<vmem>>, vector<1x64xf32>
    %76 = vector.broadcast %75 : vector<1x64xf32> to vector<8x64xf32>
    %77 = arith.addf %74, %76 : vector<8x64xf32>
    %cst_44 = arith.constant 0.000000e+00 : f32
    %78 = vector.broadcast %cst_44 : f32 to vector<8x64xf32>
    %79 = arith.maximumf %77, %78 : vector<8x64xf32>
    %80 = arith.truncf %79 : vector<8x64xf32> to vector<8x64xbf16>
    %c0_45 = arith.constant 0 : index
    %c0_46 = arith.constant 0 : index
    %81 = vector.load %arg16[%c0_45, %c0_46] : memref<64x32xbf16, #tpu.memory_space<vmem>>, vector<64x32xbf16>
    %cst_47 = arith.constant dense<0.000000e+00> : vector<8x32xf32>
    %82 = tpu.matmul %80, %81, %cst_47 {dimension_numbers = #tpu.dot_dimension_numbers<[1], [0], [0], [1], [0, 0, 1, 1], [], []>} : vector<8x64xbf16>, vector<64x32xbf16>, vector<8x32xf32> -> vector<8x32xf32>
    %c0_48 = arith.constant 0 : index
    %c0_49 = arith.constant 0 : index
    %83 = vector.load %arg17[%c0_48, %c0_49] : memref<1x32xf32, #tpu.memory_space<vmem>>, vector<1x32xf32>
    %84 = vector.broadcast %83 : vector<1x32xf32> to vector<8x32xf32>
    %85 = arith.addf %82, %84 : vector<8x32xf32>
    %86 = arith.addf %85, %71 : vector<8x32xf32>
    %c0_50 = arith.constant 0 : index
    %c0_51 = arith.constant 0 : index
    %87 = vector.load %arg18[%c0_50, %c0_51] : memref<1x32xf32, #tpu.memory_space<vmem>>, vector<1x32xf32>
    %c0_52 = arith.constant 0 : index
    %c0_53 = arith.constant 0 : index
    %88 = vector.load %arg19[%c0_52, %c0_53] : memref<1x32xf32, #tpu.memory_space<vmem>>, vector<1x32xf32>
    %cst_54 = arith.constant dense<0.000000e+00> : vector<8xf32>
    %89 = vector.multi_reduction <add>, %86, %cst_54 [1] : vector<8x32xf32> to vector<8xf32>
    %90 = vector.shape_cast %89 : vector<8xf32> to vector<8x1xf32>
    %cst_55 = arith.constant 3.200000e+01 : f32
    %91 = vector.broadcast %cst_55 : f32 to vector<8x1xf32>
    %92 = arith.divf %90, %91 : vector<8x1xf32>
    %93 = vector.broadcast %92 : vector<8x1xf32> to vector<8x32xf32>
    %94 = arith.subf %86, %93 : vector<8x32xf32>
    %95 = arith.mulf %94, %94 : vector<8x32xf32>
    %cst_56 = arith.constant dense<0.000000e+00> : vector<8xf32>
    %96 = vector.multi_reduction <add>, %95, %cst_56 [1] : vector<8x32xf32> to vector<8xf32>
    %97 = vector.shape_cast %96 : vector<8xf32> to vector<8x1xf32>
    %cst_57 = arith.constant 3.200000e+01 : f32
    %98 = vector.broadcast %cst_57 : f32 to vector<8x1xf32>
    %99 = arith.divf %97, %98 : vector<8x1xf32>
    %cst_58 = arith.constant 9.99999974E-6 : f32
    %100 = vector.broadcast %cst_58 : f32 to vector<8x1xf32>
    %101 = arith.addf %99, %100 : vector<8x1xf32>
    %102 = math.rsqrt %101 : vector<8x1xf32>
    %103 = vector.broadcast %92 : vector<8x1xf32> to vector<8x32xf32>
    %104 = arith.subf %86, %103 : vector<8x32xf32>
    %105 = vector.broadcast %102 : vector<8x1xf32> to vector<8x32xf32>
    %106 = arith.mulf %104, %105 : vector<8x32xf32>
    %107 = vector.broadcast %87 : vector<1x32xf32> to vector<8x32xf32>
    %108 = arith.mulf %106, %107 : vector<8x32xf32>
    %109 = vector.broadcast %88 : vector<1x32xf32> to vector<8x32xf32>
    %110 = arith.addf %108, %109 : vector<8x32xf32>
    %111 = vector.broadcast %6 : vector<8x1xf32> to vector<8x32xf32>
    %112 = arith.mulf %110, %111 : vector<8x32xf32>
    %c0_59 = arith.constant 0 : index
    %c0_60 = arith.constant 0 : index
    %c0_61 = arith.constant 0 : index
    %113 = vector.load %arg20[%c0_59, %c0_60, %c0_61] : memref<1x8x32xf32, #tpu.memory_space<vmem>>, vector<1x8x32xf32>
    %114 = vector.shape_cast %113 : vector<1x8x32xf32> to vector<8x32xf32>
    %115 = vector.shape_cast %112 : vector<8x32xf32> to vector<1x8x32xf32>
    tpu.vector_store %arg20[%c0_59, %c0_60, %c0_61], %115 {strides = array<i32>} : memref<1x8x32xf32, #tpu.memory_space<vmem>>, vector<1x8x32xf32>,
    return
  }
  func.func @transform_0(%arg0: i32, %arg1: i32) -> (i32, i32, i32) {
    %c0_i32 = arith.constant 0 : i32
    %c0_i32_0 = arith.constant 0 : i32
    %c0_i32_1 = arith.constant 0 : i32
    return %arg0, %c0_i32, %c0_i32_0 : i32, i32, i32
  }
  func.func @transform_1(%arg0: i32, %arg1: i32) -> (i32, i32, i32) {
    %c0_i32 = arith.constant 0 : i32
    %c0_i32_0 = arith.constant 0 : i32
    return %arg0, %arg1, %c0_i32 : i32, i32, i32
  }
  func.func @transform_2(%arg0: i32, %arg1: i32) -> (i32, i32) {
    %c0_i32 = arith.constant 0 : i32
    %c0_i32_0 = arith.constant 0 : i32
    %c0_i32_1 = arith.constant 0 : i32
    return %c0_i32, %c0_i32_0 : i32, i32
  }
  func.func @transform_3(%arg0: i32, %arg1: i32) -> (i32, i32) {
    %c0_i32 = arith.constant 0 : i32
    %c0_i32_0 = arith.constant 0 : i32
    %c0_i32_1 = arith.constant 0 : i32
    return %c0_i32, %c0_i32_0 : i32, i32
  }
  func.func @transform_4(%arg0: i32, %arg1: i32) -> (i32, i32) {
    %c0_i32 = arith.constant 0 : i32
    %c0_i32_0 = arith.constant 0 : i32
    %c0_i32_1 = arith.constant 0 : i32
    return %c0_i32, %c0_i32_0 : i32, i32
  }
  func.func @transform_5(%arg0: i32, %arg1: i32) -> (i32, i32) {
    %c0_i32 = arith.constant 0 : i32
    %c0_i32_0 = arith.constant 0 : i32
    %c0_i32_1 = arith.constant 0 : i32
    return %c0_i32, %c0_i32_0 : i32, i32
  }
  func.func @transform_6(%arg0: i32, %arg1: i32) -> (i32, i32) {
    %c0_i32 = arith.constant 0 : i32
    %c0_i32_0 = arith.constant 0 : i32
    %c0_i32_1 = arith.constant 0 : i32
    return %c0_i32, %c0_i32_0 : i32, i32
  }
  func.func @transform_7(%arg0: i32, %arg1: i32) -> (i32, i32) {
    %c0_i32 = arith.constant 0 : i32
    %c0_i32_0 = arith.constant 0 : i32
    %c0_i32_1 = arith.constant 0 : i32
    return %c0_i32, %c0_i32_0 : i32, i32
  }
  func.func @transform_8(%arg0: i32, %arg1: i32) -> (i32, i32) {
    %c0_i32 = arith.constant 0 : i32
    %c0_i32_0 = arith.constant 0 : i32
    %c0_i32_1 = arith.constant 0 : i32
    return %c0_i32, %c0_i32_0 : i32, i32
  }
  func.func @transform_9(%arg0: i32, %arg1: i32) -> (i32, i32) {
    %c0_i32 = arith.constant 0 : i32
    %c0_i32_0 = arith.constant 0 : i32
    %c0_i32_1 = arith.constant 0 : i32
    return %c0_i32, %c0_i32_0 : i32, i32
  }
  func.func @transform_10(%arg0: i32, %arg1: i32) -> (i32, i32) {
    %c0_i32 = arith.constant 0 : i32
    %c0_i32_0 = arith.constant 0 : i32
    %c0_i32_1 = arith.constant 0 : i32
    return %c0_i32, %c0_i32_0 : i32, i32
  }
  func.func @transform_11(%arg0: i32, %arg1: i32) -> (i32, i32) {
    %c0_i32 = arith.constant 0 : i32
    %c0_i32_0 = arith.constant 0 : i32
    %c0_i32_1 = arith.constant 0 : i32
    return %c0_i32, %c0_i32_0 : i32, i32
  }
  func.func @transform_12(%arg0: i32, %arg1: i32) -> (i32, i32) {
    %c0_i32 = arith.constant 0 : i32
    %c0_i32_0 = arith.constant 0 : i32
    %c0_i32_1 = arith.constant 0 : i32
    return %c0_i32, %c0_i32_0 : i32, i32
  }
  func.func @transform_13(%arg0: i32, %arg1: i32) -> (i32, i32) {
    %c0_i32 = arith.constant 0 : i32
    %c0_i32_0 = arith.constant 0 : i32
    %c0_i32_1 = arith.constant 0 : i32
    return %c0_i32, %c0_i32_0 : i32, i32
  }
  func.func @transform_14(%arg0: i32, %arg1: i32) -> (i32, i32) {
    %c0_i32 = arith.constant 0 : i32
    %c0_i32_0 = arith.constant 0 : i32
    %c0_i32_1 = arith.constant 0 : i32
    return %c0_i32, %c0_i32_0 : i32, i32
  }
  func.func @transform_15(%arg0: i32, %arg1: i32) -> (i32, i32) {
    %c0_i32 = arith.constant 0 : i32
    %c0_i32_0 = arith.constant 0 : i32
    %c0_i32_1 = arith.constant 0 : i32
    return %c0_i32, %c0_i32_0 : i32, i32
  }
  func.func @transform_16(%arg0: i32, %arg1: i32) -> (i32, i32) {
    %c0_i32 = arith.constant 0 : i32
    %c0_i32_0 = arith.constant 0 : i32
    %c0_i32_1 = arith.constant 0 : i32
    return %c0_i32, %c0_i32_0 : i32, i32
  }
  func.func @transform_17(%arg0: i32, %arg1: i32) -> (i32, i32) {
    %c0_i32 = arith.constant 0 : i32
    %c0_i32_0 = arith.constant 0 : i32
    %c0_i32_1 = arith.constant 0 : i32
    return %c0_i32, %c0_i32_0 : i32, i32
  }
  func.func @transform_18(%arg0: i32, %arg1: i32) -> (i32, i32, i32) {
    %c0_i32 = arith.constant 0 : i32
    %c0_i32_0 = arith.constant 0 : i32
    return %arg0, %arg1, %c0_i32 : i32, i32, i32
  }
  func.func @transform_19(%arg0: i32, %arg1: i32) -> (i32, i32, i32, i32) {
    %c0_i32 = arith.constant 0 : i32
    %c0_i32_0 = arith.constant 0 : i32
    %c0_i32_1 = arith.constant 0 : i32
    return %c0_i32, %arg0, %arg1, %c0_i32_0 : i32, i32, i32, i32
  }
}

</mosaic_0001>

<llo_original>
// kernel: tpu_custom_call.1
$region0: #{tpu_custom_call.1}
  #allocation0 [shape = 'u32[]', space=smem, size = 0x4, offset = 0x4, fixed_abs, tag = 'smem constant byte address 0x4 - core index']
  #allocation1 [shape = 'u32[144,128]{1,0:T(1,128)}', space=vmem, size = 0x12000, scoped, tag = 'internal scratch']
  #allocation2 [shape = 'bf16[4,8,8]{2,1,0:T(8,128)(2,1)}', space=vmem, size = 0x2000, scoped, tag = 'scratch operand']
  #allocation3 [shape = 'bf16[4,8,8]{2,1,0:T(8,128)(2,1)}', space=vmem, size = 0x2000, scoped, tag = 'scratch operand']
  %s0 = inlined_call_operand.vmem [shape: f32[2,8,32], index: 0, kind: input, shape index: {}]
  %s1 = inlined_call_operand.vmem [shape: f32[2,8,1], index: 1, kind: input, shape index: {}]
  %s2 = inlined_call_operand.vmem [shape: bf16[32,32], index: 2, kind: input, shape index: {}]
  %s3 = inlined_call_operand.hbm [shape: f32[1,32], index: 3, kind: input, shape index: {}]
  %s4 = inlined_call_operand.vmem [shape: bf16[32,32], index: 4, kind: input, shape index: {}]
  %s5 = inlined_call_operand.hbm [shape: f32[1,32], index: 5, kind: input, shape index: {}]
  %s6 = inlined_call_operand.vmem [shape: bf16[32,32], index: 6, kind: input, shape index: {}]
  %s7 = inlined_call_operand.hbm [shape: f32[1,32], index: 7, kind: input, shape index: {}]
  %s8 = inlined_call_operand.hbm [shape: bf16[32,32], index: 8, kind: input, shape index: {}]
  %s9 = inlined_call_operand.vmem [shape: f32[1,32], index: 9, kind: input, shape index: {}]
  %s10 = inlined_call_operand.vmem [shape: f32[1,32], index: 10, kind: input, shape index: {}]
  %s11 = inlined_call_operand.vmem [shape: f32[1,32], index: 11, kind: input, shape index: {}]
  %s12 = inlined_call_operand.hbm [shape: bf16[32,64], index: 12, kind: input, shape index: {}]
  %s13 = inlined_call_operand.vmem [shape: f32[1,64], index: 13, kind: input, shape index: {}]
  %s14 = inlined_call_operand.vmem [shape: bf16[64,32], index: 14, kind: input, shape index: {}]
  %s15 = inlined_call_operand.vmem [shape: f32[1,32], index: 15, kind: input, shape index: {}]
  %s16 = inlined_call_operand.vmem [shape: f32[1,32], index: 16, kind: input, shape index: {}]
  %s17 = inlined_call_operand.vmem [shape: f32[1,32], index: 17, kind: input, shape index: {}]
  %s18 = inlined_call_operand.hbm [shape: f32[2,8,32], index: 18, kind: output, shape index: {0}]
  %s19 = inlined_call_operand.hbm [shape: bf16[4,2,8,8], index: 19, kind: output, shape index: {1}]
  %20 = xla_tuple %s18, %s19
  %s21 = sld [smem:[#allocation0]]
  $region137: #{tpu_custom_call.1} parent=0
    _
  %s23 = ssub.s32 1, %s21
  %s24 = scalar_select 0, %s23, %s21
  $region1: #{tpu_custom_call.1} parent=0
    #allocation4 [shape = 'u8[512]{0}', space=vmem, size = 0x400, scoped, tag = 'input window, operand 3, single buffered']
    #allocation5 [shape = 's32[2]{0}', space=sflag, size = 0x8, scoped, tag = 'scoped memory for tpu_custom_call.1']
    #allocation6 [shape = 's32[2]{0}', space=sflag, size = 0x8, scoped, tag = 'scoped memory for tpu_custom_call.1']
    #allocation7 [shape = 'u8[512]{0}', space=vmem, size = 0x400, scoped, tag = 'input window, operand 5, single buffered']
    #allocation8 [shape = 's32[1]{0}', space=sflag, size = 0x4, scoped, tag = 'scoped memory for tpu_custom_call.1']
    #allocation9 [shape = 'u8[512]{0}', space=vmem, size = 0x400, scoped, tag = 'input window, operand 7, single buffered']
    #allocation10 [shape = 'u8[8192]{0}', space=vmem, size = 0x2000, scoped, tag = 'input window, operand 8, single buffered']
    #allocation11 [shape = 's32[1]{0}', space=sflag, size = 0x4, scoped, tag = 'scoped memory for tpu_custom_call.1']
    #allocation12 [shape = 'u8[8192]{0}', space=vmem, size = 0x2000, scoped, tag = 'input window, operand 12, single buffered']
    #allocation13 [shape = 'u8[8192]{0}', space=vmem, size = 0x2000, scoped, tag = 'output window, operand 0']
    #allocation14 [shape = 'u8[16384]{0}', space=vmem, size = 0x4000, scoped, tag = 'output window, operand 1']
    #allocation15 [shape = 's32[2]{0}', space=sflag, size = 0x8, scoped, tag = 'scoped memory for tpu_custom_call.1']
    %25 = vsyncpa [#allocation5], 0
    %26 = vsyncpa [#allocation8], 0
    %27 = vsyncpa [#allocation11], 0
    %28 = vsyncpa [#allocation6], 0
    %s29 = scalar_lea.sflag [#allocation6], 1
    %30 = vsyncpa %s29, 0
    %31 = vsyncpa [#allocation15], 0
    %s32 = scalar_lea.sflag [#allocation15], 1
    %33 = vsyncpa %s32, 0
    loop: start=0, step=1, limit=4
    $region2: #{tpu_custom_call.1} parent=1 // loop_pre_header
      _
    $region3: #{tpu_custom_call.1} parent=1 // loop_header
      %s35 = sphi 0, %s39
      %p36 = scmp.ge.s32.totalorder %s35, 4
      %s42 = sphi 0, %s54
      %s43 = sphi 0, %s50
      %s44 = sphi 0, %s42
      %s45 = sphi 0, %s43
      %s46 = sphi 0, %s44
      %s47 = sphi 0, %s45
      %s57 = sphi 0, %s59
      %s60 = sphi 0, %s57
      %s61 = sphi 0, %s60
      %s77 = sphi 0, %s61
      %s85 = sphi 0, %s87
      %s88 = sphi 0, %s85
      %s89 = sphi 0, %s88
      %s105 = sphi 0, %s89
      %s109 = sphi 0, %s109
      %s111 = sphi 0, %s109
      %s112 = sphi 0, %s111
      %s126 = sphi 0, %s112
      %s130 = sphi 0, %s130
      %s132 = sphi 0, %s130
      %s133 = sphi 0, %s132
      %s147 = sphi 0, %s133
      %s151 = sphi 0, %s151
      %s153 = sphi 0, %s151
      %s154 = sphi 0, %s153
      %s168 = sphi 0, %s154
      %s172 = sphi 0, %s172
      %s174 = sphi 0, %s172
      %s175 = sphi 0, %s174
      %s189 = sphi 0, %s175
      %s193 = sphi 0, %s193
      %s195 = sphi 0, %s193
      %s196 = sphi 0, %s195
      %s210 = sphi 0, %s196
      %s214 = sphi 0, %s214
      %s216 = sphi 0, %s214
      %s217 = sphi 0, %s216
      %s231 = sphi 0, %s217
      %s235 = sphi 0, %s235
      %s237 = sphi 0, %s235
      %s238 = sphi 0, %s237
      %s252 = sphi 0, %s238
      %s256 = sphi 0, %s256
      %s258 = sphi 0, %s256
      %s259 = sphi 0, %s258
      %s273 = sphi 0, %s259
      %s277 = sphi 0, %s277
      %s279 = sphi 0, %s277
      %s280 = sphi 0, %s279
      %s294 = sphi 0, %s280
      %s298 = sphi 0, %s298
      %s300 = sphi 0, %s298
      %s301 = sphi 0, %s300
      %s315 = sphi 0, %s301
      %s319 = sphi 0, %s319
      %s321 = sphi 0, %s319
      %s322 = sphi 0, %s321
      %s336 = sphi 0, %s322
      %s340 = sphi 0, %s340
      %s342 = sphi 0, %s340
      %s343 = sphi 0, %s342
      %s357 = sphi 0, %s343
      %s361 = sphi 0, %s361
      %s363 = sphi 0, %s361
      %s364 = sphi 0, %s363
      %s378 = sphi 0, %s364
      %s382 = sphi 0, %s382
      %s384 = sphi 0, %s382
      %s385 = sphi 0, %s384
      %s399 = sphi 0, %s385
      %s403 = sphi 0, %s403
      %s405 = sphi 0, %s403
      %s406 = sphi 0, %s405
      %s420 = sphi 0, %s406
      %s424 = sphi 0, %s424
      %s426 = sphi 0, %s424
      %s427 = sphi 0, %s426
      %s441 = sphi 0, %s427
      %s449 = sphi 0, %s451
      %s452 = sphi 0, %s449
      %s453 = sphi 0, %s452
      %s469 = sphi 0, %s453
      %s477 = sphi 0, %s479
      %s480 = sphi 0, %s477
      %s481 = sphi 0, %s480
      %s497 = sphi 0, %s481
    $region4: #{tpu_custom_call.1} parent=1 // loop_header_branch
      %38 = sbr.rel (%p36) target = $region8
    $region5: #{tpu_custom_call.1} parent=1 // loop_body
      %s40 = ssub.s32 %s35, 1
      %s41 = ssub.s32 %s35, 2
      %s48 = sadd.s32 1, %s43
      %p49 = scmp.ge.s32.totalorder %s48, 1
      %s50 = scalar_select %p49, 0, %s48
      %s51 = sadd.s32 1, %s42
      %s52 = scalar_select %p49, %s51, %s42
      %p53 = scmp.ge.s32.totalorder %s52, 2
      %s54 = scalar_select %p53, 0, %s52
      %s55 = ssub.s32 %s42, %s54
      %p56 = scmp.eq.s32.totalorder %s55, 0
      %s58 = sadd.s32 %s57, 1
      %s59 = scalar_select %p56, %s57, %s58
      %p62 = pneg %p56
      %p63 = scmp.eq.s32.totalorder %s35, 1
      %p64 = por %p62, %p63
      %p65 = scmp.ne.s32.totalorder %s57, %s60
      %p66 = scmp.eq.s32.totalorder %s35, 0
      %p67 = por %p65, %p66
      %p68 = scmp.ne.s32.totalorder %s57, %s60
      %p69 = scmp.eq.s32.totalorder %s40, 1
      %p70 = por %p68, %p69
      %p71 = scmp.ne.s32.totalorder %s60, %s61
      %p72 = scmp.eq.s32.totalorder %s40, 0
      %p73 = por %p71, %p72
      %p74 = scmp.ne.s32.totalorder %s60, %s61
      %p75 = scmp.eq.s32.totalorder %s41, 1
      %p76 = por %p74, %p75
      %p78 = scmp.ne.s32.totalorder %s61, %s77
      %p79 = scmp.eq.s32.totalorder %s41, 0
      %p80 = por %p78, %p79
      %s81 = ssub.s32 %s42, %s54
      %s82 = ssub.s32 %s43, %s50
      %s83 = sor.u32 %s81, %s82
      %p84 = scmp.eq.s32.totalorder %s83, 0
      %s86 = sadd.s32 %s85, 1
      %s87 = scalar_select %p84, %s85, %s86
      %p90 = pneg %p84
      %p91 = scmp.eq.s32.totalorder %s35, 1
      %p92 = por %p90, %p91
      %p93 = scmp.ne.s32.totalorder %s85, %s88
      %p94 = scmp.eq.s32.totalorder %s35, 0
      %p95 = por %p93, %p94
      %p96 = scmp.ne.s32.totalorder %s85, %s88
      %p97 = scmp.eq.s32.totalorder %s40, 1
      %p98 = por %p96, %p97
      %p99 = scmp.ne.s32.totalorder %s88, %s89
      %p100 = scmp.eq.s32.totalorder %s40, 0
      %p101 = por %p99, %p100
      %p102 = scmp.ne.s32.totalorder %s88, %s89
      %p103 = scmp.eq.s32.totalorder %s41, 1
      %p104 = por %p102, %p103
      %p106 = scmp.ne.s32.totalorder %s89, %s105
      %p107 = scmp.eq.s32.totalorder %s41, 0
      %p108 = por %p106, %p107
      %s110 = sadd.s32 %s109, 1
      %p113 = scmp.eq.s32.totalorder %s35, 1
      %p114 = scmp.ne.s32.totalorder %s109, %s111
      %p115 = scmp.eq.s32.totalorder %s35, 0
      %p116 = por %p114, %p115
      %p117 = scmp.ne.s32.totalorder %s109, %s111
      %p118 = scmp.eq.s32.totalorder %s40, 1
      %p119 = por %p117, %p118
      %p120 = scmp.ne.s32.totalorder %s111, %s112
      %p121 = scmp.eq.s32.totalorder %s40, 0
      %p122 = por %p120, %p121
      %p123 = scmp.ne.s32.totalorder %s111, %s112
      %p124 = scmp.eq.s32.totalorder %s41, 1
      %p125 = por %p123, %p124
      %p127 = scmp.ne.s32.totalorder %s112, %s126
      %p128 = scmp.eq.s32.totalorder %s41, 0
      %p129 = por %p127, %p128
      %s131 = sadd.s32 %s130, 1
      %p134 = scmp.eq.s32.totalorder %s35, 1
      %p135 = scmp.ne.s32.totalorder %s130, %s132
      %p136 = scmp.eq.s32.totalorder %s35, 0
      %p137 = por %p135, %p136
      %p138 = scmp.ne.s32.totalorder %s130, %s132
      %p139 = scmp.eq.s32.totalorder %s40, 1
      %p140 = por %p138, %p139
      %p141 = scmp.ne.s32.totalorder %s132, %s133
      %p142 = scmp.eq.s32.totalorder %s40, 0
      %p143 = por %p141, %p142
      %p144 = scmp.ne.s32.totalorder %s132, %s133
      %p145 = scmp.eq.s32.totalorder %s41, 1
      %p146 = por %p144, %p145
      %p148 = scmp.ne.s32.totalorder %s133, %s147
      %p149 = scmp.eq.s32.totalorder %s41, 0
      %p150 = por %p148, %p149
      %s152 = sadd.s32 %s151, 1
      %p155 = scmp.eq.s32.totalorder %s35, 1
      %p156 = scmp.ne.s32.totalorder %s151, %s153
      %p157 = scmp.eq.s32.totalorder %s35, 0
      %p158 = por %p156, %p157
      %p159 = scmp.ne.s32.totalorder %s151, %s153
      %p160 = scmp.eq.s32.totalorder %s40, 1
      %p161 = por %p159, %p160
      %p162 = scmp.ne.s32.totalorder %s153, %s154
      %p163 = scmp.eq.s32.totalorder %s40, 0
      %p164 = por %p162, %p163
      %p165 = scmp.ne.s32.totalorder %s153, %s154
      %p166 = scmp.eq.s32.totalorder %s41, 1
      %p167 = por %p165, %p166
      %p169 = scmp.ne.s32.totalorder %s154, %s168
      %p170 = scmp.eq.s32.totalorder %s41, 0
      %p171 = por %p169, %p170
      %s173 = sadd.s32 %s172, 1
      %p176 = scmp.eq.s32.totalorder %s35, 1
      %p177 = scmp.ne.s32.totalorder %s172, %s174
      %p178 = scmp.eq.s32.totalorder %s35, 0
      %p179 = por %p177, %p178
      %p180 = scmp.ne.s32.totalorder %s172, %s174
      %p181 = scmp.eq.s32.totalorder %s40, 1
      %p182 = por %p180, %p181
      %p183 = scmp.ne.s32.totalorder %s174, %s175
      %p184 = scmp.eq.s32.totalorder %s40, 0
      %p185 = por %p183, %p184
      %p186 = scmp.ne.s32.totalorder %s174, %s175
      %p187 = scmp.eq.s32.totalorder %s41, 1
      %p188 = por %p186, %p187
      %p190 = scmp.ne.s32.totalorder %s175, %s189
      %p191 = scmp.eq.s32.totalorder %s41, 0
      %p192 = por %p190, %p191
      %s194 = sadd.s32 %s193, 1
      %p197 = scmp.eq.s32.totalorder %s35, 1
      %p198 = scmp.ne.s32.totalorder %s193, %s195
      %p199 = scmp.eq.s32.totalorder %s35, 0
      %p200 = por %p198, %p199
      %p201 = scmp.ne.s32.totalorder %s193, %s195
      %p202 = scmp.eq.s32.totalorder %s40, 1
      %p203 = por %p201, %p202
      %p204 = scmp.ne.s32.totalorder %s195, %s196
      %p205 = scmp.eq.s32.totalorder %s40, 0
      %p206 = por %p204, %p205
      %p207 = scmp.ne.s32.totalorder %s195, %s196
      %p208 = scmp.eq.s32.totalorder %s41, 1
      %p209 = por %p207, %p208
      %p211 = scmp.ne.s32.totalorder %s196, %s210
      %p212 = scmp.eq.s32.totalorder %s41, 0
      %p213 = por %p211, %p212
      %s215 = sadd.s32 %s214, 1
      %p218 = scmp.eq.s32.totalorder %s35, 1
      %p219 = scmp.ne.s32.totalorder %s214, %s216
      %p220 = scmp.eq.s32.totalorder %s35, 0
      %p221 = por %p219, %p220
      %p222 = scmp.ne.s32.totalorder %s214, %s216
      %p223 = scmp.eq.s32.totalorder %s40, 1
      %p224 = por %p222, %p223
      %p225 = scmp.ne.s32.totalorder %s216, %s217
      %p226 = scmp.eq.s32.totalorder %s40, 0
      %p227 = por %p225, %p226
      %p228 = scmp.ne.s32.totalorder %s216, %s217
      %p229 = scmp.eq.s32.totalorder %s41, 1
      %p230 = por %p228, %p229
      %p232 = scmp.ne.s32.totalorder %s217, %s231
      %p233 = scmp.eq.s32.totalorder %s41, 0
      %p234 = por %p232, %p233
      %s236 = sadd.s32 %s235, 1
      %p239 = scmp.eq.s32.totalorder %s35, 1
      %p240 = scmp.ne.s32.totalorder %s235, %s237
      %p241 = scmp.eq.s32.totalorder %s35, 0
      %p242 = por %p240, %p241
      %p243 = scmp.ne.s32.totalorder %s235, %s237
      %p244 = scmp.eq.s32.totalorder %s40, 1
      %p245 = por %p243, %p244
      %p246 = scmp.ne.s32.totalorder %s237, %s238
      %p247 = scmp.eq.s32.totalorder %s40, 0
      %p248 = por %p246, %p247
      %p249 = scmp.ne.s32.totalorder %s237, %s238
      %p250 = scmp.eq.s32.totalorder %s41, 1
      %p251 = por %p249, %p250
      %p253 = scmp.ne.s32.totalorder %s238, %s252
      %p254 = scmp.eq.s32.totalorder %s41, 0
      %p255 = por %p253, %p254
      %s257 = sadd.s32 %s256, 1
      %p260 = scmp.eq.s32.totalorder %s35, 1
      %p261 = scmp.ne.s32.totalorder %s256, %s258
      %p262 = scmp.eq.s32.totalorder %s35, 0
      %p263 = por %p261, %p262
      %p264 = scmp.ne.s32.totalorder %s256, %s258
      %p265 = scmp.eq.s32.totalorder %s40, 1
      %p266 = por %p264, %p265
      %p267 = scmp.ne.s32.totalorder %s258, %s259
      %p268 = scmp.eq.s32.totalorder %s40, 0
      %p269 = por %p267, %p268
      %p270 = scmp.ne.s32.totalorder %s258, %s259
      %p271 = scmp.eq.s32.totalorder %s41, 1
      %p272 = por %p270, %p271
      %p274 = scmp.ne.s32.totalorder %s259, %s273
      %p275 = scmp.eq.s32.totalorder %s41, 0
      %p276 = por %p274, %p275
      %s278 = sadd.s32 %s277, 1
      %p281 = scmp.eq.s32.totalorder %s35, 1
      %p282 = scmp.ne.s32.totalorder %s277, %s279
      %p283 = scmp.eq.s32.totalorder %s35, 0
      %p284 = por %p282, %p283
      %p285 = scmp.ne.s32.totalorder %s277, %s279
      %p286 = scmp.eq.s32.totalorder %s40, 1
      %p287 = por %p285, %p286
      %p288 = scmp.ne.s32.totalorder %s279, %s280
      %p289 = scmp.eq.s32.totalorder %s40, 0
      %p290 = por %p288, %p289
      %p291 = scmp.ne.s32.totalorder %s279, %s280
      %p292 = scmp.eq.s32.totalorder %s41, 1
      %p293 = por %p291, %p292
      %p295 = scmp.ne.s32.totalorder %s280, %s294
      %p296 = scmp.eq.s32.totalorder %s41, 0
      %p297 = por %p295, %p296
      %s299 = sadd.s32 %s298, 1
      %p302 = scmp.eq.s32.totalorder %s35, 1
      %p303 = scmp.ne.s32.totalorder %s298, %s300
      %p304 = scmp.eq.s32.totalorder %s35, 0
      %p305 = por %p303, %p304
      %p306 = scmp.ne.s32.totalorder %s298, %s300
      %p307 = scmp.eq.s32.totalorder %s40, 1
      %p308 = por %p306, %p307
      %p309 = scmp.ne.s32.totalorder %s300, %s301
      %p310 = scmp.eq.s32.totalorder %s40, 0
      %p311 = por %p309, %p310
      %p312 = scmp.ne.s32.totalorder %s300, %s301
      %p313 = scmp.eq.s32.totalorder %s41, 1
      %p314 = por %p312, %p313
      %p316 = scmp.ne.s32.totalorder %s301, %s315
      %p317 = scmp.eq.s32.totalorder %s41, 0
      %p318 = por %p316, %p317
      %s320 = sadd.s32 %s319, 1
      %p323 = scmp.eq.s32.totalorder %s35, 1
      %p324 = scmp.ne.s32.totalorder %s319, %s321
      %p325 = scmp.eq.s32.totalorder %s35, 0
      %p326 = por %p324, %p325
      %p327 = scmp.ne.s32.totalorder %s319, %s321
      %p328 = scmp.eq.s32.totalorder %s40, 1
      %p329 = por %p327, %p328
      %p330 = scmp.ne.s32.totalorder %s321, %s322
      %p331 = scmp.eq.s32.totalorder %s40, 0
      %p332 = por %p330, %p331
      %p333 = scmp.ne.s32.totalorder %s321, %s322
      %p334 = scmp.eq.s32.totalorder %s41, 1
      %p335 = por %p333, %p334
      %p337 = scmp.ne.s32.totalorder %s322, %s336
      %p338 = scmp.eq.s32.totalorder %s41, 0
      %p339 = por %p337, %p338
      %s341 = sadd.s32 %s340, 1
      %p344 = scmp.eq.s32.totalorder %s35, 1
      %p345 = scmp.ne.s32.totalorder %s340, %s342
      %p346 = scmp.eq.s32.totalorder %s35, 0
      %p347 = por %p345, %p346
      %p348 = scmp.ne.s32.totalorder %s340, %s342
      %p349 = scmp.eq.s32.totalorder %s40, 1
      %p350 = por %p348, %p349
      %p351 = scmp.ne.s32.totalorder %s342, %s343
      %p352 = scmp.eq.s32.totalorder %s40, 0
      %p353 = por %p351, %p352
      %p354 = scmp.ne.s32.totalorder %s342, %s343
      %p355 = scmp.eq.s32.totalorder %s41, 1
      %p356 = por %p354, %p355
      %p358 = scmp.ne.s32.totalorder %s343, %s357
      %p359 = scmp.eq.s32.totalorder %s41, 0
      %p360 = por %p358, %p359
      %s362 = sadd.s32 %s361, 1
      %p365 = scmp.eq.s32.totalorder %s35, 1
      %p366 = scmp.ne.s32.totalorder %s361, %s363
      %p367 = scmp.eq.s32.totalorder %s35, 0
      %p368 = por %p366, %p367
      %p369 = scmp.ne.s32.totalorder %s361, %s363
      %p370 = scmp.eq.s32.totalorder %s40, 1
      %p371 = por %p369, %p370
      %p372 = scmp.ne.s32.totalorder %s363, %s364
      %p373 = scmp.eq.s32.totalorder %s40, 0
      %p374 = por %p372, %p373
      %p375 = scmp.ne.s32.totalorder %s363, %s364
      %p376 = scmp.eq.s32.totalorder %s41, 1
      %p377 = por %p375, %p376
      %p379 = scmp.ne.s32.totalorder %s364, %s378
      %p380 = scmp.eq.s32.totalorder %s41, 0
      %p381 = por %p379, %p380
      %s383 = sadd.s32 %s382, 1
      %p386 = scmp.eq.s32.totalorder %s35, 1
      %p387 = scmp.ne.s32.totalorder %s382, %s384
      %p388 = scmp.eq.s32.totalorder %s35, 0
      %p389 = por %p387, %p388
      %p390 = scmp.ne.s32.totalorder %s382, %s384
      %p391 = scmp.eq.s32.totalorder %s40, 1
      %p392 = por %p390, %p391
      %p393 = scmp.ne.s32.totalorder %s384, %s385
      %p394 = scmp.eq.s32.totalorder %s40, 0
      %p395 = por %p393, %p394
      %p396 = scmp.ne.s32.totalorder %s384, %s385
      %p397 = scmp.eq.s32.totalorder %s41, 1
      %p398 = por %p396, %p397
      %p400 = scmp.ne.s32.totalorder %s385, %s399
      %p401 = scmp.eq.s32.totalorder %s41, 0
      %p402 = por %p400, %p401
      %s404 = sadd.s32 %s403, 1
      %p407 = scmp.eq.s32.totalorder %s35, 1
      %p408 = scmp.ne.s32.totalorder %s403, %s405
      %p409 = scmp.eq.s32.totalorder %s35, 0
      %p410 = por %p408, %p409
      %p411 = scmp.ne.s32.totalorder %s403, %s405
      %p412 = scmp.eq.s32.totalorder %s40, 1
      %p413 = por %p411, %p412
      %p414 = scmp.ne.s32.totalorder %s405, %s406
      %p415 = scmp.eq.s32.totalorder %s40, 0
      %p416 = por %p414, %p415
      %p417 = scmp.ne.s32.totalorder %s405, %s406
      %p418 = scmp.eq.s32.totalorder %s41, 1
      %p419 = por %p417, %p418
      %p421 = scmp.ne.s32.totalorder %s406, %s420
      %p422 = scmp.eq.s32.totalorder %s41, 0
      %p423 = por %p421, %p422
      %s425 = sadd.s32 %s424, 1
      %p428 = scmp.eq.s32.totalorder %s35, 1
      %p429 = scmp.ne.s32.totalorder %s424, %s426
      %p430 = scmp.eq.s32.totalorder %s35, 0
      %p431 = por %p429, %p430
      %p432 = scmp.ne.s32.totalorder %s424, %s426
      %p433 = scmp.eq.s32.totalorder %s40, 1
      %p434 = por %p432, %p433
      %p435 = scmp.ne.s32.totalorder %s426, %s427
      %p436 = scmp.eq.s32.totalorder %s40, 0
      %p437 = por %p435, %p436
      %p438 = scmp.ne.s32.totalorder %s426, %s427
      %p439 = scmp.eq.s32.totalorder %s41, 1
      %p440 = por %p438, %p439
      %p442 = scmp.ne.s32.totalorder %s427, %s441
      %p443 = scmp.eq.s32.totalorder %s41, 0
      %p444 = por %p442, %p443
      %s445 = ssub.s32 %s42, %s54
      %s446 = ssub.s32 %s43, %s50
      %s447 = sor.u32 %s445, %s446
      %p448 = scmp.eq.s32.totalorder %s447, 0
      %s450 = sadd.s32 %s449, 1
      %s451 = scalar_select %p448, %s449, %s450
      %p454 = pneg %p448
      %p455 = scmp.eq.s32.totalorder %s35, 1
      %p456 = por %p454, %p455
      %p457 = scmp.ne.s32.totalorder %s449, %s452
      %p458 = scmp.eq.s32.totalorder %s35, 0
      %p459 = por %p457, %p458
      %p460 = scmp.ne.s32.totalorder %s449, %s452
      %p461 = scmp.eq.s32.totalorder %s40, 1
      %p462 = por %p460, %p461
      %p463 = scmp.ne.s32.totalorder %s452, %s453
      %p464 = scmp.eq.s32.totalorder %s40, 0
      %p465 = por %p463, %p464
      %p466 = scmp.ne.s32.totalorder %s452, %s453
      %p467 = scmp.eq.s32.totalorder %s41, 1
      %p468 = por %p466, %p467
      %p470 = scmp.ne.s32.totalorder %s453, %s469
      %p471 = scmp.eq.s32.totalorder %s41, 0
      %p472 = por %p470, %p471
      %s473 = ssub.s32 %s42, %s54
      %s474 = ssub.s32 %s43, %s50
      %s475 = sor.u32 %s473, %s474
      %p476 = scmp.eq.s32.totalorder %s475, 0
      %s478 = sadd.s32 %s477, 1
      %s479 = scalar_select %p476, %s477, %s478
      %p482 = pneg %p476
      %p483 = scmp.eq.s32.totalorder %s35, 1
      %p484 = por %p482, %p483
      %p485 = scmp.ne.s32.totalorder %s477, %s480
      %p486 = scmp.eq.s32.totalorder %s35, 0
      %p487 = por %p485, %p486
      %p488 = scmp.ne.s32.totalorder %s477, %s480
      %p489 = scmp.eq.s32.totalorder %s40, 1
      %p490 = por %p488, %p489
      %p491 = scmp.ne.s32.totalorder %s480, %s481
      %p492 = scmp.eq.s32.totalorder %s40, 0
      %p493 = por %p491, %p492
      %p494 = scmp.ne.s32.totalorder %s480, %s481
      %p495 = scmp.eq.s32.totalorder %s41, 1
      %p496 = por %p494, %p495
      %p498 = scmp.ne.s32.totalorder %s481, %s497
      %p499 = scmp.eq.s32.totalorder %s41, 0
      %p500 = por %p498, %p499
      %p501 = scmp.le.s32.totalorder 1, %s35
      %p502 = scmp.lt.s32.totalorder %s35, 3
      %p503 = pnand %p501, %p502
      %p504 = pneg %p503
      // Predicated region
      $region9: #{tpu_custom_call.1} parent=5 // pred_check
        _
      $region10: #{tpu_custom_call.1} parent=5 // pred_check_branch
        %506 = sbr.rel (%p503) target = $region12
      $region11: #{tpu_custom_call.1} parent=5 // pred_region
        %s507 = ssub.s32 %s35, 1
        // Predicated region
        $region13: #{tpu_custom_call.1} parent=11 // pred_check
          %p508 = pneg %p122
        $region14: #{tpu_custom_call.1} parent=11 // pred_check_branch
          %510 = sbr.rel (%p508) target = $region16
        $region15: #{tpu_custom_call.1} parent=11 // pred_region
          _
        $region16: #{tpu_custom_call.1} parent=11 // pred_fallthru
          _
        // Predicated region
        $region17: #{tpu_custom_call.1} parent=11 // pred_check
          %p511 = pneg %p143
        $region18: #{tpu_custom_call.1} parent=11 // pred_check_branch
          %513 = sbr.rel (%p511) target = $region20
        $region19: #{tpu_custom_call.1} parent=11 // pred_region
          %s515 = ssub.s32 16, 16
          %516 = vsyncadd [#allocation5], %s515
          %s518 = sshll.u32 [#allocation4], 4
          %s519 = int_to_ptr.vmem [resolvable:$true] %s518
          %521 = dma.hbm_to_vmem [thread:$0]  %s3, 16, %s519, [#allocation5]
        $region20: #{tpu_custom_call.1} parent=11 // pred_fallthru
          _
        // Predicated region
        $region21: #{tpu_custom_call.1} parent=11 // pred_check
          %p522 = pneg %p164
        $region22: #{tpu_custom_call.1} parent=11 // pred_check_branch
          %524 = sbr.rel (%p522) target = $region24
        $region23: #{tpu_custom_call.1} parent=11 // pred_region
          _
        $region24: #{tpu_custom_call.1} parent=11 // pred_fallthru
          _
        // Predicated region
        $region25: #{tpu_custom_call.1} parent=11 // pred_check
          %p525 = pneg %p185
        $region26: #{tpu_custom_call.1} parent=11 // pred_check_branch
          %527 = sbr.rel (%p525) target = $region28
        $region27: #{tpu_custom_call.1} parent=11 // pred_region
          %s529 = ssub.s32 16, 16
          %530 = vsyncadd [#allocation8], %s529
          %s532 = sshll.u32 [#allocation7], 4
          %s533 = int_to_ptr.vmem [resolvable:$true] %s532
          %535 = dma.hbm_to_vmem [thread:$0]  %s5, 16, %s533, [#allocation8]
        $region28: #{tpu_custom_call.1} parent=11 // pred_fallthru
          _
        // Predicated region
        $region29: #{tpu_custom_call.1} parent=11 // pred_check
          %p536 = pneg %p206
        $region30: #{tpu_custom_call.1} parent=11 // pred_check_branch
          %538 = sbr.rel (%p536) target = $region32
        $region31: #{tpu_custom_call.1} parent=11 // pred_region
          _
        $region32: #{tpu_custom_call.1} parent=11 // pred_fallthru
          _
        // Predicated region
        $region33: #{tpu_custom_call.1} parent=11 // pred_check
          %p539 = pneg %p227
        $region34: #{tpu_custom_call.1} parent=11 // pred_check_branch
          %541 = sbr.rel (%p539) target = $region36
        $region35: #{tpu_custom_call.1} parent=11 // pred_region
          %s543 = ssub.s32 16, 16
          %544 = vsyncadd [#allocation8], %s543
          %s546 = sshll.u32 [#allocation9], 4
          %s547 = int_to_ptr.vmem [resolvable:$true] %s546
          %549 = dma.hbm_to_vmem [thread:$0]  %s7, 16, %s547, [#allocation8]
        $region36: #{tpu_custom_call.1} parent=11 // pred_fallthru
          _
        // Predicated region
        $region37: #{tpu_custom_call.1} parent=11 // pred_check
          %p550 = pneg %p248
        $region38: #{tpu_custom_call.1} parent=11 // pred_check_branch
          %552 = sbr.rel (%p550) target = $region40
        $region39: #{tpu_custom_call.1} parent=11 // pred_region
          %s554 = ssub.s32 256, 256
          %555 = vsyncadd [#allocation11], %s554
          %s556 = sshll.u32 [#allocation10], 4
          %s557 = int_to_ptr.vmem [resolvable:$true] %s556
          %562 = dma.hbm_to_vmem [thread:$0]  %s8, 256, %s557, [#allocation11], 64, 64, 4
        $region40: #{tpu_custom_call.1} parent=11 // pred_fallthru
          _
        // Predicated region
        $region41: #{tpu_custom_call.1} parent=11 // pred_check
          %p563 = pneg %p269
        $region42: #{tpu_custom_call.1} parent=11 // pred_check_branch
          %565 = sbr.rel (%p563) target = $region44
        $region43: #{tpu_custom_call.1} parent=11 // pred_region
          _
        $region44: #{tpu_custom_call.1} parent=11 // pred_fallthru
          _
        // Predicated region
        $region45: #{tpu_custom_call.1} parent=11 // pred_check
          %p566 = pneg %p290
        $region46: #{tpu_custom_call.1} parent=11 // pred_check_branch
          %568 = sbr.rel (%p566) target = $region48
        $region47: #{tpu_custom_call.1} parent=11 // pred_region
          _
        $region48: #{tpu_custom_call.1} parent=11 // pred_fallthru
          _
        // Predicated region
        $region49: #{tpu_custom_call.1} parent=11 // pred_check
          %p569 = pneg %p311
        $region50: #{tpu_custom_call.1} parent=11 // pred_check_branch
          %571 = sbr.rel (%p569) target = $region52
        $region51: #{tpu_custom_call.1} parent=11 // pred_region
          _
        $region52: #{tpu_custom_call.1} parent=11 // pred_fallthru
          _
        // Predicated region
        $region53: #{tpu_custom_call.1} parent=11 // pred_check
          %p572 = pneg %p332
        $region54: #{tpu_custom_call.1} parent=11 // pred_check_branch
          %574 = sbr.rel (%p572) target = $region56
        $region55: #{tpu_custom_call.1} parent=11 // pred_region
          %s576 = ssub.s32 256, 256
          %577 = vsyncadd [#allocation11], %s576
          %s578 = sshll.u32 [#allocation12], 4
          %s579 = int_to_ptr.vmem [resolvable:$true] %s578
          %584 = dma.hbm_to_vmem [thread:$0]  %s12, 256, %s579, [#allocation11], 64, 64, 4
        $region56: #{tpu_custom_call.1} parent=11 // pred_fallthru
          _
        // Predicated region
        $region57: #{tpu_custom_call.1} parent=11 // pred_check
          %p585 = pneg %p353
        $region58: #{tpu_custom_call.1} parent=11 // pred_check_branch
          %587 = sbr.rel (%p585) target = $region60
        $region59: #{tpu_custom_call.1} parent=11 // pred_region
          _
        $region60: #{tpu_custom_call.1} parent=11 // pred_fallthru
          _
        // Predicated region
        $region61: #{tpu_custom_call.1} parent=11 // pred_check
          %p588 = pneg %p374
        $region62: #{tpu_custom_call.1} parent=11 // pred_check_branch
          %590 = sbr.rel (%p588) target = $region64
        $region63: #{tpu_custom_call.1} parent=11 // pred_region
          _
        $region64: #{tpu_custom_call.1} parent=11 // pred_fallthru
          _
        // Predicated region
        $region65: #{tpu_custom_call.1} parent=11 // pred_check
          %p591 = pneg %p395
        $region66: #{tpu_custom_call.1} parent=11 // pred_check_branch
          %593 = sbr.rel (%p591) target = $region68
        $region67: #{tpu_custom_call.1} parent=11 // pred_region
          _
        $region68: #{tpu_custom_call.1} parent=11 // pred_fallthru
          _
        // Predicated region
        $region69: #{tpu_custom_call.1} parent=11 // pred_check
          %p594 = pneg %p416
        $region70: #{tpu_custom_call.1} parent=11 // pred_check_branch
          %596 = sbr.rel (%p594) target = $region72
        $region71: #{tpu_custom_call.1} parent=11 // pred_region
          _
        $region72: #{tpu_custom_call.1} parent=11 // pred_fallthru
          _
        // Predicated region
        $region73: #{tpu_custom_call.1} parent=11 // pred_check
          %p597 = pneg %p437
        $region74: #{tpu_custom_call.1} parent=11 // pred_check_branch
          %599 = sbr.rel (%p597) target = $region76
        $region75: #{tpu_custom_call.1} parent=11 // pred_region
          _
        $region76: #{tpu_custom_call.1} parent=11 // pred_fallthru
          _
      $region12: #{tpu_custom_call.1} parent=5 // pred_fallthru
        _
      %p600 = scmp.lt.s32.totalorder %s35, 2
      // Predicated region
      $region77: #{tpu_custom_call.1} parent=5 // pred_check
        %p601 = pneg %p600
      $region78: #{tpu_custom_call.1} parent=5 // pred_check_branch
        %603 = sbr.rel (%p601) target = $region80
      $region79: #{tpu_custom_call.1} parent=5 // pred_region
        // Predicated region
        $region81: #{tpu_custom_call.1} parent=79 // pred_check
          %p604 = pneg %p67
        $region82: #{tpu_custom_call.1} parent=79 // pred_check_branch
          %606 = sbr.rel (%p604) target = $region84
        $region83: #{tpu_custom_call.1} parent=79 // pred_region
          %p607 = scmp.lt.s32.totalorder %s42, 1
          %s608 = scalar_select %p607, %s42, 1
          %s609 = smul.addr %s608, 8
          %s610 = scalar_lea.vmem %s0, %s609
        $region84: #{tpu_custom_call.1} parent=79 // pred_fallthru
          _
        // Predicated region
        $region85: #{tpu_custom_call.1} parent=79 // pred_check
          %p611 = pneg %p95
        $region86: #{tpu_custom_call.1} parent=79 // pred_check_branch
          %613 = sbr.rel (%p611) target = $region88
        $region87: #{tpu_custom_call.1} parent=79 // pred_region
          %p614 = scmp.lt.s32.totalorder %s42, 1
          %s615 = scalar_select %p614, %s42, 1
          %p616 = scmp.lt.s32.totalorder %s43, 0
          %s617 = scalar_select %p616, %s43, 0
          %s618 = sadd.s32 %s617, %s615
          %s619 = smul.addr %s618, 8
          %s620 = scalar_lea.vmem %s1, %s619
        $region88: #{tpu_custom_call.1} parent=79 // pred_fallthru
          _
      $region80: #{tpu_custom_call.1} parent=5 // pred_fallthru
        _
      %p621 = scmp.le.s32.totalorder 1, %s35
      %p622 = scmp.lt.s32.totalorder %s35, 3
      %p623 = pnand %p621, %p622
      %p624 = pneg %p623
      // Predicated region
      $region89: #{tpu_custom_call.1} parent=5 // pred_check
        _
      $region90: #{tpu_custom_call.1} parent=5 // pred_check_branch
        %626 = sbr.rel (%p623) target = $region92
      $region91: #{tpu_custom_call.1} parent=5 // pred_region
        %s627 = ssub.s32 %s35, 1
        // Predicated region
        $region93: #{tpu_custom_call.1} parent=91 // pred_check
          %p628 = pneg %p143
        $region94: #{tpu_custom_call.1} parent=91 // pred_check_branch
          %630 = sbr.rel (%p628) target = $region96
        $region95: #{tpu_custom_call.1} parent=91 // pred_region
          %631 = dma.done [#allocation5], 16
        $region96: #{tpu_custom_call.1} parent=91 // pred_fallthru
          _
        // Predicated region
        $region97: #{tpu_custom_call.1} parent=91 // pred_check
          %p632 = pneg %p185
        $region98: #{tpu_custom_call.1} parent=91 // pred_check_branch
          %634 = sbr.rel (%p632) target = $region100
        $region99: #{tpu_custom_call.1} parent=91 // pred_region
          %635 = dma.done [#allocation8], 16
        $region100: #{tpu_custom_call.1} parent=91 // pred_fallthru
          _
        // Predicated region
        $region101: #{tpu_custom_call.1} parent=91 // pred_check
          %p636 = pneg %p227
        $region102: #{tpu_custom_call.1} parent=91 // pred_check_branch
          %638 = sbr.rel (%p636) target = $region104
        $region103: #{tpu_custom_call.1} parent=91 // pred_region
          %639 = dma.done [#allocation8], 16
        $region104: #{tpu_custom_call.1} parent=91 // pred_fallthru
          _
        // Predicated region
        $region105: #{tpu_custom_call.1} parent=91 // pred_check
          %p640 = pneg %p248
        $region106: #{tpu_custom_call.1} parent=91 // pred_check_branch
          %642 = sbr.rel (%p640) target = $region108
        $region107: #{tpu_custom_call.1} parent=91 // pred_region
          %643 = dma.done [#allocation11], 256
        $region108: #{tpu_custom_call.1} parent=91 // pred_fallthru
          _
        // Predicated region
        $region109: #{tpu_custom_call.1} parent=91 // pred_check
          %p644 = pneg %p332
        $region110: #{tpu_custom_call.1} parent=91 // pred_check_branch
          %646 = sbr.rel (%p644) target = $region112
        $region111: #{tpu_custom_call.1} parent=91 // pred_region
          %647 = dma.done [#allocation11], 256
        $region112: #{tpu_custom_call.1} parent=91 // pred_fallthru
          _
        %p648 = scmp.lt.s32.totalorder %s44, 1
        %s649 = scalar_select %p648, %s44, 1
        %s650 = smul.addr %s649, 8
        %s651 = scalar_lea.vmem %s0, %s650
        %p652 = pneg %p73
        %p653 = pneg %p70
        %p654 = scmp.lt.s32.totalorder %s44, 1
        %s655 = scalar_select %p654, %s44, 1
        %p656 = scmp.lt.s32.totalorder %s45, 0
        %s657 = scalar_select %p656, %s45, 0
        %s658 = sadd.s32 %s657, %s655
        %s659 = smul.addr %s658, 8
        %s660 = scalar_lea.vmem %s1, %s659
        %p661 = pneg %p101
        %p662 = pneg %p98
        %p663 = pneg %p122
        %p664 = pneg %p119
        %p665 = pneg %p143
        %p666 = pneg %p140
        %p667 = pneg %p164
        %p668 = pneg %p161
        %p669 = pneg %p185
        %p670 = pneg %p182
        %p671 = pneg %p206
        %p672 = pneg %p203
        %p673 = pneg %p227
        %p674 = pneg %p224
        %p675 = pneg %p248
        %p676 = pneg %p245
        %p677 = pneg %p269
        %p678 = pneg %p266
        %p679 = pneg %p290
        %p680 = pneg %p287
        %p681 = pneg %p311
        %p682 = pneg %p308
        %p683 = pneg %p332
        %p684 = pneg %p329
        %p685 = pneg %p353
        %p686 = pneg %p350
        %p687 = pneg %p374
        %p688 = pneg %p371
        %p689 = pneg %p395
        %p690 = pneg %p392
        %p691 = pneg %p416
        %p692 = pneg %p413
        %p693 = pneg %p437
        %p694 = pneg %p434
        %p695 = pneg %p465
        %p696 = pneg %p462
        %s697 = sand.u32 %s452, 1
        %s698 = scalar_lea.sflag [#allocation6], %s697
        %s699 = sand.u32 %s452, 1
        %s700 = smul.addr %s699, 8
        %s701 = scalar_lea.vmem [#allocation13], %s700
        %p702 = pneg %p493
        %p703 = pneg %p490
        %s704 = sand.u32 %s480, 1
        %s705 = scalar_lea.sflag [#allocation15], %s704
        %s706 = sand.u32 %s480, 1
        %s707 = smul.addr %s706, 16
        %s708 = scalar_lea.vmem [#allocation14], %s707
        %p709 = scmp.lt.s32.totalorder %s44, 1
        %s710 = scalar_select %p709, %s44, 1
        %s711 = smul.addr %s710, 8
        %s712 = scalar_lea.vmem %s0, %s711
        %p713 = scmp.lt.s32.totalorder %s44, 1
        %s714 = scalar_select %p713, %s44, 1
        %p715 = scmp.lt.s32.totalorder %s45, 0
        %s716 = scalar_select %p715, %s45, 0
        %s717 = sadd.s32 %s716, %s714
        %s718 = smul.addr %s717, 8
        %s719 = scalar_lea.vmem %s1, %s718
        %p721 = scmp.eq.s32.totalorder %s45, 0
        // Predicated region
        $region113: #{tpu_custom_call.1} parent=91 // pred_check
          %p722 = pneg %p721
        $region114: #{tpu_custom_call.1} parent=91 // pred_check_branch
          %724 = sbr.rel (%p722) target = $region116
        $region115: #{tpu_custom_call.1} parent=91 // pred_region
          %v725 = vld [vmem:[%s712] sm:$0xff]
          %v726 = vpack.c.bf16 %v725, %v725
          %v727 = vld [vmem:[%s4] sm:$0xf]
          %v728 = vld [vmem:[%s4 + $0x4] sm:$0xf]
          %v729 = vld [vmem:[%s4 + $0x8] sm:$0xf]
          %v730 = vld [vmem:[%s4 + $0xc] sm:$0xf]
          %v731 = vld [vmem:[#allocation7] sm:$0x1]
          %v733 = vlaneseq
          %v734 = vshrl.u32 %v733, 7
          %v735 = vsub.s32 0, %v734
          %v736 = vrot.slane %v731, %v735
          %v742 = vunpack.c.l.b16 %v727
          %v743 = vunpack.c.l.b16 %v728
          %v744 = vunpack.c.l.b16 %v729
          %v745 = vunpack.c.l.b16 %v730
          %v746 = vpack.c.b16 %v743, %v742
          %v747 = vpack.c.b16 %v745, %v744
          %vm750 = vcmask 261120
          %v752 = vsel %vm750, %v726, 0
          %754 = vmatprep.subr.bf16.mxu0 0
          %755 = vmatpush1.bf16.msra.mxu0 0
          %756 = vmatprep.subr.bf16.mxu0 0
          %757 = vmatpush1.bf16.msra.mxu0 0
          %758 = vmatprep.subr.bf16.mxu0 0
          %759 = vmatpush1.bf16.msra.mxu0 0
          %760 = vmatprep.subr.bf16.mxu0 0
          %761 = vmatpush1.bf16.msra.mxu0 0
          %762 = vmatprep.subr.bf16.mxu0 0
          %763 = vmatpush1.bf16.msra.mxu0 0
          %764 = vmatprep.subr.bf16.mxu0 0
          %765 = vmatpush1.bf16.msra.mxu0 0
          %766 = vmatprep.subr.bf16.mxu0 0
          %767 = vmatpush1.bf16.msra.mxu0 %v747
          %768 = vmatprep.subr.bf16.mxu0 0
          %769 = vmatpush1.bf16.msra.mxu0 %v746
          %770 = vmatprep.subr.bf16.mxu0 0
          %771 = vmatpush2.bf16.msra.mxu0 0
          %772 = vmatprep.subr.bf16.mxu0 0
          %773 = vmatpush2.bf16.msra.mxu0 0
          %774 = vmatprep.subr.bf16.mxu0 0
          %775 = vmatpush2.bf16.msra.mxu0 0
          %776 = vmatprep.subr.bf16.mxu0 0
          %777 = vmatpush2.bf16.msra.mxu0 0
          %778 = vmatprep.subr.bf16.mxu0 0
          %779 = vmatpush2.bf16.msra.mxu0 0
          %780 = vmatprep.subr.bf16.mxu0 0
          %781 = vmatpush2.bf16.msra.mxu0 0
          %782 = vmatprep.subr.bf16.mxu0 0
          %783 = vmatpush2.bf16.msra.mxu0 0
          %784 = vmatprep.subr.bf16.mxu0 0
          %785 = vmatpush2.bf16.msra.mxu0 0
          %786 = vmatprep.mubr.bf16.mxu0 0
          %787 = vmatmul.mubr.bf16.gmra.mxu0 %v752
          %v788 = vpop.f32.mrf.mxu0
          %v789 = vadd.f32 %v736, %v788
          %v790 = vpop.f32.mrf.mxu0
          %v791 = vpop.f32.mrf.mxu0
          %v792 = vpop.f32.mrf.mxu0
          %793 = vdwg.mxu0
          %v794 = vld [vmem:[%s6] sm:$0xf]
          %v795 = vld [vmem:[%s6 + $0x4] sm:$0xf]
          %v796 = vld [vmem:[%s6 + $0x8] sm:$0xf]
          %v797 = vld [vmem:[%s6 + $0xc] sm:$0xf]
          %v798 = vld [vmem:[#allocation9] sm:$0x1]
          %v800 = vlaneseq
          %v801 = vshrl.u32 %v800, 7
          %v802 = vsub.s32 0, %v801
          %v803 = vrot.slane %v798, %v802
          %v809 = vunpack.c.l.b16 %v794
          %v810 = vunpack.c.l.b16 %v795
          %v811 = vunpack.c.l.b16 %v796
          %v812 = vunpack.c.l.b16 %v797
          %v813 = vpack.c.b16 %v810, %v809
          %v814 = vpack.c.b16 %v812, %v811
          %817 = vmatprep.subr.bf16.mxu0 0
          %818 = vmatpush1.bf16.msra.mxu0 0
          %819 = vmatprep.subr.bf16.mxu0 0
          %820 = vmatpush1.bf16.msra.mxu0 0
          %821 = vmatprep.subr.bf16.mxu0 0
          %822 = vmatpush1.bf16.msra.mxu0 0
          %823 = vmatprep.subr.bf16.mxu0 0
          %824 = vmatpush1.bf16.msra.mxu0 0
          %825 = vmatprep.subr.bf16.mxu0 0
          %826 = vmatpush1.bf16.msra.mxu0 0
          %827 = vmatprep.subr.bf16.mxu0 0
          %828 = vmatpush1.bf16.msra.mxu0 0
          %829 = vmatprep.subr.bf16.mxu0 0
          %830 = vmatpush1.bf16.msra.mxu0 %v814
          %831 = vmatprep.subr.bf16.mxu0 0
          %832 = vmatpush1.bf16.msra.mxu0 %v813
          %833 = vmatprep.subr.bf16.mxu0 0
          %834 = vmatpush2.bf16.msra.mxu0 0
          %835 = vmatprep.subr.bf16.mxu0 0
          %836 = vmatpush2.bf16.msra.mxu0 0
          %837 = vmatprep.subr.bf16.mxu0 0
          %838 = vmatpush2.bf16.msra.mxu0 0
          %839 = vmatprep.subr.bf16.mxu0 0
          %840 = vmatpush2.bf16.msra.mxu0 0
          %841 = vmatprep.subr.bf16.mxu0 0
          %842 = vmatpush2.bf16.msra.mxu0 0
          %843 = vmatprep.subr.bf16.mxu0 0
          %844 = vmatpush2.bf16.msra.mxu0 0
          %845 = vmatprep.subr.bf16.mxu0 0
          %846 = vmatpush2.bf16.msra.mxu0 0
          %847 = vmatprep.subr.bf16.mxu0 0
          %848 = vmatpush2.bf16.msra.mxu0 0
          %849 = vmatprep.mubr.bf16.mxu0 0
          %850 = vmatmul.mubr.bf16.gmra.mxu0 %v752
          %v851 = vpop.f32.mrf.mxu0
          %v852 = vadd.f32 %v803, %v851
          %v853 = vpop.f32.mrf.mxu0
          %v854 = vpop.f32.mrf.mxu0
          %v855 = vpop.f32.mrf.mxu0
          %856 = vdwg.mxu0
          %v857 = vpack.c.bf16 %v789, %v789
          %859 = vrot.lane.b32.xlu0 %v857, 120
          %v860 = vpop.permute.xlu0 %859
          %861 = vrot.lane.b32.xlu0 %v857, 112
          %v862 = vpop.permute.xlu0 %861
          %863 = vrot.lane.b32.xlu0 %v857, 104
          %v864 = vpop.permute.xlu0 %863
          %v866 = vunpack.c.l.s4 1983009808
          %v867 = vunpack.c.0.s8 %v866
          %v868 = vlaneseq
          %v869 = vshrl.u32 %v868, 7
          %v870 = vsub.s32 %v867, %v869
          %v871 = vrot.slane %v857, %v870
          %v874 = vunpack.c.l.s4 1983009808
          %v875 = vunpack.c.0.s8 %v874
          %v876 = vlaneseq
          %v877 = vshrl.u32 %v876, 7
          %v878 = vsub.s32 %v875, %v877
          %v879 = vrot.slane %v862, %v878
          %v880 = vcombine.low %v871, %v879
          %v881 = vcombine.high %v871, %v879
          %v883 = vunpack.c.l.s4 1934713408
          %v884 = vunpack.c.0.s8 %v883
          %v885 = vlaneseq
          %v886 = vshrl.u32 %v885, 7
          %v887 = vsub.s32 %v884, %v886
          %v888 = vrot.slane %v880, %v887
          %v890 = vunpack.c.l.s4 1934713408
          %v891 = vunpack.c.0.s8 %v890
          %v892 = vlaneseq
          %v893 = vshrl.u32 %v892, 7
          %v894 = vsub.s32 %v891, %v893
          %v895 = vrot.slane %v881, %v894
          %v896 = vcombine.high %v888, 0
          %v897 = vcombine.high %v895, 0
          %v900 = vunpack.c.l.s4 1983009808
          %v901 = vunpack.c.0.s8 %v900
          %v902 = vlaneseq
          %v903 = vshrl.u32 %v902, 7
          %v904 = vsub.s32 %v901, %v903
          %v905 = vrot.slane %v860, %v904
          %v908 = vunpack.c.l.s4 1983009808
          %v909 = vunpack.c.0.s8 %v908
          %v910 = vlaneseq
          %v911 = vshrl.u32 %v910, 7
          %v912 = vsub.s32 %v909, %v911
          %v913 = vrot.slane %v864, %v912
          %v914 = vcombine.low %v905, %v913
          %v915 = vcombine.high %v905, %v913
          %v917 = vunpack.c.l.s4 1934713408
          %v918 = vunpack.c.0.s8 %v917
          %v919 = vlaneseq
          %v920 = vshrl.u32 %v919, 7
          %v921 = vsub.s32 %v918, %v920
          %v922 = vrot.slane %v914, %v921
          %v924 = vunpack.c.l.s4 1934713408
          %v925 = vunpack.c.0.s8 %v924
          %v926 = vlaneseq
          %v927 = vshrl.u32 %v926, 7
          %v928 = vsub.s32 %v925, %v927
          %v929 = vrot.slane %v915, %v928
          %v930 = vcombine.high %v922, 0
          %v931 = vcombine.high %v929, 0
          %v934 = vpack.i.b16 %v922, %v888
          %v936 = vshrl.u32 %v888, 16
          %v937 = vshrl.u32 %v922, 16
          %v938 = vpack.i.b16 %v937, %v936
          %v942 = vpack.i.b16 %v930, %v896
          %v944 = vshrl.u32 %v896, 16
          %v945 = vshrl.u32 %v930, 16
          %v946 = vpack.i.b16 %v945, %v944
          %v950 = vpack.i.b16 %v929, %v895
          %v952 = vshrl.u32 %v895, 16
          %v953 = vshrl.u32 %v929, 16
          %v954 = vpack.i.b16 %v953, %v952
          %v958 = vpack.i.b16 %v931, %v897
          %v960 = vshrl.u32 %v897, 16
          %v961 = vshrl.u32 %v931, 16
          %v962 = vpack.i.b16 %v961, %v960
          %v964 = vcombine.low %v934, %v950
          %v966 = vunpack.c.l.s4 1983009808
          %v967 = vunpack.c.0.s8 %v966
          %v968 = vlaneseq
          %v969 = vshrl.u32 %v968, 7
          %v970 = vsub.s32 %v967, %v969
          %v971 = vrot.slane %v964, %v970
          %v972 = vcombine.low %v942, %v958
          %v974 = vunpack.c.l.s4 1983009808
          %v975 = vunpack.c.0.s8 %v974
          %v976 = vlaneseq
          %v977 = vshrl.u32 %v976, 7
          %v978 = vsub.s32 %v975, %v977
          %v979 = vrot.slane %v972, %v978
          %v980 = vcombine.low %v971, %v979
          %v982 = vunpack.c.l.s4 1934713408
          %v983 = vunpack.c.0.s8 %v982
          %v984 = vlaneseq
          %v985 = vshrl.u32 %v984, 7
          %v986 = vsub.s32 %v983, %v985
          %v987 = vrot.slane %v980, %v986
          %v988 = vcombine.high %v987, 0
          %v989 = vcombine.low %v938, %v954
          %v991 = vunpack.c.l.s4 1983009808
          %v992 = vunpack.c.0.s8 %v991
          %v993 = vlaneseq
          %v994 = vshrl.u32 %v993, 7
          %v995 = vsub.s32 %v992, %v994
          %v996 = vrot.slane %v989, %v995
          %v997 = vcombine.low %v946, %v962
          %v999 = vunpack.c.l.s4 1983009808
          %v1000 = vunpack.c.0.s8 %v999
          %v1001 = vlaneseq
          %v1002 = vshrl.u32 %v1001, 7
          %v1003 = vsub.s32 %v1000, %v1002
          %v1004 = vrot.slane %v997, %v1003
          %v1005 = vcombine.low %v996, %v1004
          %v1007 = vunpack.c.l.s4 1934713408
          %v1008 = vunpack.c.0.s8 %v1007
          %v1009 = vlaneseq
          %v1010 = vshrl.u32 %v1009, 7
          %v1011 = vsub.s32 %v1008, %v1010
          %v1012 = vrot.slane %v1005, %v1011
          %v1013 = vcombine.high %v1012, 0
          %v1016 = vpack.i.b16 %v1012, %v987
          %v1018 = vshrl.u32 %v987, 16
          %v1019 = vshrl.u32 %v1012, 16
          %v1020 = vpack.i.b16 %v1019, %v1018
          %v1024 = vpack.i.b16 %v1013, %v988
          %v1026 = vshrl.u32 %v988, 16
          %v1027 = vshrl.u32 %v1013, 16
          %v1028 = vpack.i.b16 %v1027, %v1026
          %vm1030 = vcmask 60416
          %1031 = vst.msk [vmem:[#allocation2] sm:$0xf] %vm1030, %v1016
          %1032 = vst.msk [vmem:[#allocation2 + $0x4] sm:$0xf] %vm1030, %v1020
          %1033 = vst.msk [vmem:[#allocation2 + $0x8] sm:$0xf] %vm1030, %v1024
          %1034 = vst.msk [vmem:[#allocation2 + $0xc] sm:$0xf] %vm1030, %v1028
          %v1035 = vpack.c.bf16 %v852, %v852
          %1037 = vrot.lane.b32.xlu0 %v1035, 120
          %v1038 = vpop.permute.xlu0 %1037
          %1039 = vrot.lane.b32.xlu0 %v1035, 112
          %v1040 = vpop.permute.xlu0 %1039
          %1041 = vrot.lane.b32.xlu0 %v1035, 104
          %v1042 = vpop.permute.xlu0 %1041
          %v1044 = vunpack.c.l.s4 1983009808
          %v1045 = vunpack.c.0.s8 %v1044
          %v1046 = vlaneseq
          %v1047 = vshrl.u32 %v1046, 7
          %v1048 = vsub.s32 %v1045, %v1047
          %v1049 = vrot.slane %v1035, %v1048
          %v1052 = vunpack.c.l.s4 1983009808
          %v1053 = vunpack.c.0.s8 %v1052
          %v1054 = vlaneseq
          %v1055 = vshrl.u32 %v1054, 7
          %v1056 = vsub.s32 %v1053, %v1055
          %v1057 = vrot.slane %v1040, %v1056
          %v1058 = vcombine.low %v1049, %v1057
          %v1059 = vcombine.high %v1049, %v1057
          %v1061 = vunpack.c.l.s4 1934713408
          %v1062 = vunpack.c.0.s8 %v1061
          %v1063 = vlaneseq
          %v1064 = vshrl.u32 %v1063, 7
          %v1065 = vsub.s32 %v1062, %v1064
          %v1066 = vrot.slane %v1058, %v1065
          %v1068 = vunpack.c.l.s4 1934713408
          %v1069 = vunpack.c.0.s8 %v1068
          %v1070 = vlaneseq
          %v1071 = vshrl.u32 %v1070, 7
          %v1072 = vsub.s32 %v1069, %v1071
          %v1073 = vrot.slane %v1059, %v1072
          %v1074 = vcombine.high %v1066, 0
          %v1075 = vcombine.high %v1073, 0
          %v1078 = vunpack.c.l.s4 1983009808
          %v1079 = vunpack.c.0.s8 %v1078
          %v1080 = vlaneseq
          %v1081 = vshrl.u32 %v1080, 7
          %v1082 = vsub.s32 %v1079, %v1081
          %v1083 = vrot.slane %v1038, %v1082
          %v1086 = vunpack.c.l.s4 1983009808
          %v1087 = vunpack.c.0.s8 %v1086
          %v1088 = vlaneseq
          %v1089 = vshrl.u32 %v1088, 7
          %v1090 = vsub.s32 %v1087, %v1089
          %v1091 = vrot.slane %v1042, %v1090
          %v1092 = vcombine.low %v1083, %v1091
          %v1093 = vcombine.high %v1083, %v1091
          %v1095 = vunpack.c.l.s4 1934713408
          %v1096 = vunpack.c.0.s8 %v1095
          %v1097 = vlaneseq
          %v1098 = vshrl.u32 %v1097, 7
          %v1099 = vsub.s32 %v1096, %v1098
          %v1100 = vrot.slane %v1092, %v1099
          %v1102 = vunpack.c.l.s4 1934713408
          %v1103 = vunpack.c.0.s8 %v1102
          %v1104 = vlaneseq
          %v1105 = vshrl.u32 %v1104, 7
          %v1106 = vsub.s32 %v1103, %v1105
          %v1107 = vrot.slane %v1093, %v1106
          %v1108 = vcombine.high %v1100, 0
          %v1109 = vcombine.high %v1107, 0
          %v1112 = vpack.i.b16 %v1100, %v1066
          %v1114 = vshrl.u32 %v1066, 16
          %v1115 = vshrl.u32 %v1100, 16
          %v1116 = vpack.i.b16 %v1115, %v1114
          %v1120 = vpack.i.b16 %v1108, %v1074
          %v1122 = vshrl.u32 %v1074, 16
          %v1123 = vshrl.u32 %v1108, 16
          %v1124 = vpack.i.b16 %v1123, %v1122
          %v1128 = vpack.i.b16 %v1107, %v1073
          %v1130 = vshrl.u32 %v1073, 16
          %v1131 = vshrl.u32 %v1107, 16
          %v1132 = vpack.i.b16 %v1131, %v1130
          %v1136 = vpack.i.b16 %v1109, %v1075
          %v1138 = vshrl.u32 %v1075, 16
          %v1139 = vshrl.u32 %v1109, 16
          %v1140 = vpack.i.b16 %v1139, %v1138
          %v1142 = vcombine.low %v1112, %v1128
          %v1144 = vunpack.c.l.s4 1983009808
          %v1145 = vunpack.c.0.s8 %v1144
          %v1146 = vlaneseq
          %v1147 = vshrl.u32 %v1146, 7
          %v1148 = vsub.s32 %v1145, %v1147
          %v1149 = vrot.slane %v1142, %v1148
          %v1150 = vcombine.low %v1120, %v1136
          %v1152 = vunpack.c.l.s4 1983009808
          %v1153 = vunpack.c.0.s8 %v1152
          %v1154 = vlaneseq
          %v1155 = vshrl.u32 %v1154, 7
          %v1156 = vsub.s32 %v1153, %v1155
          %v1157 = vrot.slane %v1150, %v1156
          %v1158 = vcombine.low %v1149, %v1157
          %v1160 = vunpack.c.l.s4 1934713408
          %v1161 = vunpack.c.0.s8 %v1160
          %v1162 = vlaneseq
          %v1163 = vshrl.u32 %v1162, 7
          %v1164 = vsub.s32 %v1161, %v1163
          %v1165 = vrot.slane %v1158, %v1164
          %v1166 = vcombine.high %v1165, 0
          %v1167 = vcombine.low %v1116, %v1132
          %v1169 = vunpack.c.l.s4 1983009808
          %v1170 = vunpack.c.0.s8 %v1169
          %v1171 = vlaneseq
          %v1172 = vshrl.u32 %v1171, 7
          %v1173 = vsub.s32 %v1170, %v1172
          %v1174 = vrot.slane %v1167, %v1173
          %v1175 = vcombine.low %v1124, %v1140
          %v1177 = vunpack.c.l.s4 1983009808
          %v1178 = vunpack.c.0.s8 %v1177
          %v1179 = vlaneseq
          %v1180 = vshrl.u32 %v1179, 7
          %v1181 = vsub.s32 %v1178, %v1180
          %v1182 = vrot.slane %v1175, %v1181
          %v1183 = vcombine.low %v1174, %v1182
          %v1185 = vunpack.c.l.s4 1934713408
          %v1186 = vunpack.c.0.s8 %v1185
          %v1187 = vlaneseq
          %v1188 = vshrl.u32 %v1187, 7
          %v1189 = vsub.s32 %v1186, %v1188
          %v1190 = vrot.slane %v1183, %v1189
          %v1191 = vcombine.high %v1190, 0
          %v1194 = vpack.i.b16 %v1190, %v1165
          %v1196 = vshrl.u32 %v1165, 16
          %v1197 = vshrl.u32 %v1190, 16
          %v1198 = vpack.i.b16 %v1197, %v1196
          %v1202 = vpack.i.b16 %v1191, %v1166
          %v1204 = vshrl.u32 %v1166, 16
          %v1205 = vshrl.u32 %v1191, 16
          %v1206 = vpack.i.b16 %v1205, %v1204
          %1208 = vst.msk [vmem:[#allocation3] sm:$0xf] %vm1030, %v1194
          %1209 = vst.msk [vmem:[#allocation3 + $0x4] sm:$0xf] %vm1030, %v1198
          %1210 = vst.msk [vmem:[#allocation3 + $0x8] sm:$0xf] %vm1030, %v1202
          %1211 = vst.msk [vmem:[#allocation3 + $0xc] sm:$0xf] %vm1030, %v1206
        $region116: #{tpu_custom_call.1} parent=91 // pred_fallthru
          _
        %v1212 = vld [vmem:[%s712] sm:$0xff]
        %v1213 = vld [vmem:[%s719] sm:$0xff]
        %v1214 = vpack.c.bf16 %v1212, %v1212
        %v1215 = vld [vmem:[%s2] sm:$0xf]
        %v1216 = vld [vmem:[%s2 + $0x4] sm:$0xf]
        %v1217 = vld [vmem:[%s2 + $0x8] sm:$0xf]
        %v1218 = vld [vmem:[%s2 + $0xc] sm:$0xf]
        %v1219 = vld [vmem:[#allocation4] sm:$0x1]
        %v1221 = vlaneseq
        %v1222 = vshrl.u32 %v1221, 7
        %v1223 = vsub.s32 0, %v1222
        %v1224 = vrot.slane %v1219, %v1223
        %v1230 = vunpack.c.l.b16 %v1215
        %v1231 = vunpack.c.l.b16 %v1216
        %v1232 = vunpack.c.l.b16 %v1217
        %v1233 = vunpack.c.l.b16 %v1218
        %v1234 = vpack.c.b16 %v1231, %v1230
        %v1235 = vpack.c.b16 %v1233, %v1232
        %vm1238 = vcmask 261120
        %v1240 = vsel %vm1238, %v1214, 0
        %1242 = vmatprep.subr.bf16.mxu0 0
        %1243 = vmatpush1.bf16.msra.mxu0 0
        %1244 = vmatprep.subr.bf16.mxu0 0
        %1245 = vmatpush1.bf16.msra.mxu0 0
        %1246 = vmatprep.subr.bf16.mxu0 0
        %1247 = vmatpush1.bf16.msra.mxu0 0
        %1248 = vmatprep.subr.bf16.mxu0 0
        %1249 = vmatpush1.bf16.msra.mxu0 0
        %1250 = vmatprep.subr.bf16.mxu0 0
        %1251 = vmatpush1.bf16.msra.mxu0 0
        %1252 = vmatprep.subr.bf16.mxu0 0
        %1253 = vmatpush1.bf16.msra.mxu0 0
        %1254 = vmatprep.subr.bf16.mxu0 0
        %1255 = vmatpush1.bf16.msra.mxu0 %v1235
        %1256 = vmatprep.subr.bf16.mxu0 0
        %1257 = vmatpush1.bf16.msra.mxu0 %v1234
        %1258 = vmatprep.subr.bf16.mxu0 0
        %1259 = vmatpush2.bf16.msra.mxu0 0
        %1260 = vmatprep.subr.bf16.mxu0 0
        %1261 = vmatpush2.bf16.msra.mxu0 0
        %1262 = vmatprep.subr.bf16.mxu0 0
        %1263 = vmatpush2.bf16.msra.mxu0 0
        %1264 = vmatprep.subr.bf16.mxu0 0
        %1265 = vmatpush2.bf16.msra.mxu0 0
        %1266 = vmatprep.subr.bf16.mxu0 0
        %1267 = vmatpush2.bf16.msra.mxu0 0
        %1268 = vmatprep.subr.bf16.mxu0 0
        %1269 = vmatpush2.bf16.msra.mxu0 0
        %1270 = vmatprep.subr.bf16.mxu0 0
        %1271 = vmatpush2.bf16.msra.mxu0 0
        %1272 = vmatprep.subr.bf16.mxu0 0
        %1273 = vmatpush2.bf16.msra.mxu0 0
        %1274 = vmatprep.mubr.bf16.mxu0 0
        %1275 = vmatmul.mubr.bf16.gmra.mxu0 %v1240
        %v1276 = vpop.f32.mrf.mxu0
        %v1277 = vadd.f32 %v1224, %v1276
        %v1278 = vpop.f32.mrf.mxu0
        %v1279 = vpop.f32.mrf.mxu0
        %v1280 = vpop.f32.mrf.mxu0
        %1281 = vdwg.mxu0
        %v1282 = vmul.f32 %v1277, 0.35355338
        %v1283 = vpack.c.bf16 %v1282, %v1282
        %1285 = vrot.lane.b32.xlu0 %v1283, 120
        %v1286 = vpop.permute.xlu0 %1285
        %1287 = vrot.lane.b32.xlu0 %v1283, 112
        %v1288 = vpop.permute.xlu0 %1287
        %1289 = vrot.lane.b32.xlu0 %v1283, 104
        %v1290 = vpop.permute.xlu0 %1289
        %v1292 = vunpack.c.l.s4 1983009808
        %v1293 = vunpack.c.0.s8 %v1292
        %v1294 = vlaneseq
        %v1295 = vshrl.u32 %v1294, 7
        %v1296 = vsub.s32 %v1293, %v1295
        %v1297 = vrot.slane %v1283, %v1296
        %v1300 = vunpack.c.l.s4 1983009808
        %v1301 = vunpack.c.0.s8 %v1300
        %v1302 = vlaneseq
        %v1303 = vshrl.u32 %v1302, 7
        %v1304 = vsub.s32 %v1301, %v1303
        %v1305 = vrot.slane %v1288, %v1304
        %v1306 = vcombine.low %v1297, %v1305
        %v1307 = vcombine.high %v1297, %v1305
        %v1309 = vunpack.c.l.s4 1934713408
        %v1310 = vunpack.c.0.s8 %v1309
        %v1311 = vlaneseq
        %v1312 = vshrl.u32 %v1311, 7
        %v1313 = vsub.s32 %v1310, %v1312
        %v1314 = vrot.slane %v1306, %v1313
        %v1316 = vunpack.c.l.s4 1934713408
        %v1317 = vunpack.c.0.s8 %v1316
        %v1318 = vlaneseq
        %v1319 = vshrl.u32 %v1318, 7
        %v1320 = vsub.s32 %v1317, %v1319
        %v1321 = vrot.slane %v1307, %v1320
        %v1322 = vcombine.high %v1314, 0
        %v1323 = vcombine.high %v1321, 0
        %v1326 = vunpack.c.l.s4 1983009808
        %v1327 = vunpack.c.0.s8 %v1326
        %v1328 = vlaneseq
        %v1329 = vshrl.u32 %v1328, 7
        %v1330 = vsub.s32 %v1327, %v1329
        %v1331 = vrot.slane %v1286, %v1330
        %v1334 = vunpack.c.l.s4 1983009808
        %v1335 = vunpack.c.0.s8 %v1334
        %v1336 = vlaneseq
        %v1337 = vshrl.u32 %v1336, 7
        %v1338 = vsub.s32 %v1335, %v1337
        %v1339 = vrot.slane %v1290, %v1338
        %v1340 = vcombine.low %v1331, %v1339
        %v1341 = vcombine.high %v1331, %v1339
        %v1343 = vunpack.c.l.s4 1934713408
        %v1344 = vunpack.c.0.s8 %v1343
        %v1345 = vlaneseq
        %v1346 = vshrl.u32 %v1345, 7
        %v1347 = vsub.s32 %v1344, %v1346
        %v1348 = vrot.slane %v1340, %v1347
        %v1350 = vunpack.c.l.s4 1934713408
        %v1351 = vunpack.c.0.s8 %v1350
        %v1352 = vlaneseq
        %v1353 = vshrl.u32 %v1352, 7
        %v1354 = vsub.s32 %v1351, %v1353
        %v1355 = vrot.slane %v1341, %v1354
        %v1356 = vcombine.high %v1348, 0
        %v1357 = vcombine.high %v1355, 0
        %v1360 = vpack.i.b16 %v1348, %v1314
        %v1362 = vshrl.u32 %v1314, 16
        %v1363 = vshrl.u32 %v1348, 16
        %v1364 = vpack.i.b16 %v1363, %v1362
        %v1368 = vpack.i.b16 %v1356, %v1322
        %v1370 = vshrl.u32 %v1322, 16
        %v1371 = vshrl.u32 %v1356, 16
        %v1372 = vpack.i.b16 %v1371, %v1370
        %v1376 = vpack.i.b16 %v1355, %v1321
        %v1378 = vshrl.u32 %v1321, 16
        %v1379 = vshrl.u32 %v1355, 16
        %v1380 = vpack.i.b16 %v1379, %v1378
        %v1384 = vpack.i.b16 %v1357, %v1323
        %v1386 = vshrl.u32 %v1323, 16
        %v1387 = vshrl.u32 %v1357, 16
        %v1388 = vpack.i.b16 %v1387, %v1386
        %v1390 = vcombine.low %v1360, %v1376
        %v1392 = vunpack.c.l.s4 1983009808
        %v1393 = vunpack.c.0.s8 %v1392
        %v1394 = vlaneseq
        %v1395 = vshrl.u32 %v1394, 7
        %v1396 = vsub.s32 %v1393, %v1395
        %v1397 = vrot.slane %v1390, %v1396
        %v1398 = vcombine.low %v1368, %v1384
        %v1400 = vunpack.c.l.s4 1983009808
        %v1401 = vunpack.c.0.s8 %v1400
        %v1402 = vlaneseq
        %v1403 = vshrl.u32 %v1402, 7
        %v1404 = vsub.s32 %v1401, %v1403
        %v1405 = vrot.slane %v1398, %v1404
        %v1406 = vcombine.low %v1397, %v1405
        %v1408 = vunpack.c.l.s4 1934713408
        %v1409 = vunpack.c.0.s8 %v1408
        %v1410 = vlaneseq
        %v1411 = vshrl.u32 %v1410, 7
        %v1412 = vsub.s32 %v1409, %v1411
        %v1413 = vrot.slane %v1406, %v1412
        %v1414 = vcombine.high %v1413, 0
        %v1415 = vcombine.low %v1364, %v1380
        %v1417 = vunpack.c.l.s4 1983009808
        %v1418 = vunpack.c.0.s8 %v1417
        %v1419 = vlaneseq
        %v1420 = vshrl.u32 %v1419, 7
        %v1421 = vsub.s32 %v1418, %v1420
        %v1422 = vrot.slane %v1415, %v1421
        %v1423 = vcombine.low %v1372, %v1388
        %v1425 = vunpack.c.l.s4 1983009808
        %v1426 = vunpack.c.0.s8 %v1425
        %v1427 = vlaneseq
        %v1428 = vshrl.u32 %v1427, 7
        %v1429 = vsub.s32 %v1426, %v1428
        %v1430 = vrot.slane %v1423, %v1429
        %v1431 = vcombine.low %v1422, %v1430
        %v1433 = vunpack.c.l.s4 1934713408
        %v1434 = vunpack.c.0.s8 %v1433
        %v1435 = vlaneseq
        %v1436 = vshrl.u32 %v1435, 7
        %v1437 = vsub.s32 %v1434, %v1436
        %v1438 = vrot.slane %v1431, %v1437
        %v1439 = vcombine.high %v1438, 0
        %v1442 = vpack.i.b16 %v1438, %v1413
        %v1443 = vshrl.u32 %v1413, 16
        %v1444 = vshrl.u32 %v1438, 16
        %v1445 = vpack.i.b16 %v1444, %v1443
        %v1448 = vpack.i.b16 %v1439, %v1414
        %v1449 = vshrl.u32 %v1414, 16
        %v1450 = vshrl.u32 %v1439, 16
        %v1451 = vpack.i.b16 %v1450, %v1449
        %v1452 = vld [vmem:[#allocation2] sm:$0xf]
        %v1453 = vld [vmem:[#allocation2 + $0x4] sm:$0xf]
        %v1454 = vld [vmem:[#allocation2 + $0x8] sm:$0xf]
        %v1455 = vld [vmem:[#allocation2 + $0xc] sm:$0xf]
        %v1456 = vld [vmem:[#allocation3] sm:$0xf]
        %v1457 = vld [vmem:[#allocation3 + $0x4] sm:$0xf]
        %v1458 = vld [vmem:[#allocation3 + $0x8] sm:$0xf]
        %v1459 = vld [vmem:[#allocation3 + $0xc] sm:$0xf]
        %vm1460 = vcmask 64512
        %v1462 = vsel %vm1460, %v1442, 0
        %v1465 = vsel %vm1460, %v1452, 0
        %1467 = vmatprep.subr.bf16.mxu0 0
        %1468 = vmatpush1.bf16.xpose.msra.mxu0 0
        %1469 = vmatprep.subr.bf16.mxu0 0
        %1470 = vmatpush1.bf16.xpose.msra.mxu0 0
        %1471 = vmatprep.subr.bf16.mxu0 0
        %1472 = vmatpush1.bf16.xpose.msra.mxu0 0
        %1473 = vmatprep.subr.bf16.mxu0 0
        %1474 = vmatpush1.bf16.xpose.msra.mxu0 0
        %1475 = vmatprep.subr.bf16.mxu0 0
        %1476 = vmatpush1.bf16.xpose.msra.mxu0 0
        %1477 = vmatprep.subr.bf16.mxu0 0
        %1478 = vmatpush1.bf16.xpose.msra.mxu0 0
        %1479 = vmatprep.subr.bf16.mxu0 0
        %1480 = vmatpush1.bf16.xpose.msra.mxu0 0
        %1481 = vmatprep.subr.bf16.mxu0 0
        %1482 = vmatpush1.bf16.xpose.msra.mxu0 %v1465
        %1483 = vmatprep.subr.bf16.mxu0 0
        %1484 = vmatpush2.bf16.xpose.msra.mxu0 0
        %1485 = vmatprep.subr.bf16.mxu0 0
        %1486 = vmatpush2.bf16.xpose.msra.mxu0 0
        %1487 = vmatprep.subr.bf16.mxu0 0
        %1488 = vmatpush2.bf16.xpose.msra.mxu0 0
        %1489 = vmatprep.subr.bf16.mxu0 0
        %1490 = vmatpush2.bf16.xpose.msra.mxu0 0
        %1491 = vmatprep.subr.bf16.mxu0 0
        %1492 = vmatpush2.bf16.xpose.msra.mxu0 0
        %1493 = vmatprep.subr.bf16.mxu0 0
        %1494 = vmatpush2.bf16.xpose.msra.mxu0 0
        %1495 = vmatprep.subr.bf16.mxu0 0
        %1496 = vmatpush2.bf16.xpose.msra.mxu0 0
        %1497 = vmatprep.subr.bf16.mxu0 0
        %1498 = vmatpush2.bf16.xpose.msra.mxu0 0
        %1499 = vmatprep.mubr.bf16.mxu0 0
        %1500 = vmatmul.mubr.bf16.gmra.mxu0 %v1462
        %v1501 = vpop.f32.mrf.mxu0
        %v1502 = vadd.f32 0.0, %v1501
        %v1503 = vpop.f32.mrf.mxu0
        %v1504 = vpop.f32.mrf.mxu0
        %v1505 = vpop.f32.mrf.mxu0
        %1506 = vdwg.mxu0
        %v1508 = vsel %vm1460, %v1445, 0
        %v1511 = vsel %vm1460, %v1453, 0
        %1513 = vmatprep.subr.bf16.mxu0 0
        %1514 = vmatpush1.bf16.xpose.msra.mxu0 0
        %1515 = vmatprep.subr.bf16.mxu0 0
        %1516 = vmatpush1.bf16.xpose.msra.mxu0 0
        %1517 = vmatprep.subr.bf16.mxu0 0
        %1518 = vmatpush1.bf16.xpose.msra.mxu0 0
        %1519 = vmatprep.subr.bf16.mxu0 0
        %1520 = vmatpush1.bf16.xpose.msra.mxu0 0
        %1521 = vmatprep.subr.bf16.mxu0 0
        %1522 = vmatpush1.bf16.xpose.msra.mxu0 0
        %1523 = vmatprep.subr.bf16.mxu0 0
        %1524 = vmatpush1.bf16.xpose.msra.mxu0 0
        %1525 = vmatprep.subr.bf16.mxu0 0
        %1526 = vmatpush1.bf16.xpose.msra.mxu0 0
        %1527 = vmatprep.subr.bf16.mxu0 0
        %1528 = vmatpush1.bf16.xpose.msra.mxu0 %v1511
        %1529 = vmatprep.subr.bf16.mxu0 0
        %1530 = vmatpush2.bf16.xpose.msra.mxu0 0
        %1531 = vmatprep.subr.bf16.mxu0 0
        %1532 = vmatpush2.bf16.xpose.msra.mxu0 0
        %1533 = vmatprep.subr.bf16.mxu0 0
        %1534 = vmatpush2.bf16.xpose.msra.mxu0 0
        %1535 = vmatprep.subr.bf16.mxu0 0
        %1536 = vmatpush2.bf16.xpose.msra.mxu0 0
        %1537 = vmatprep.subr.bf16.mxu0 0
        %1538 = vmatpush2.bf16.xpose.msra.mxu0 0
        %1539 = vmatprep.subr.bf16.mxu0 0
        %1540 = vmatpush2.bf16.xpose.msra.mxu0 0
        %1541 = vmatprep.subr.bf16.mxu0 0
        %1542 = vmatpush2.bf16.xpose.msra.mxu0 0
        %1543 = vmatprep.subr.bf16.mxu0 0
        %1544 = vmatpush2.bf16.xpose.msra.mxu0 0
        %1545 = vmatprep.mubr.bf16.mxu0 0
        %1546 = vmatmul.mubr.bf16.gmra.mxu0 %v1508
        %v1547 = vpop.f32.mrf.mxu0
        %v1548 = vadd.f32 0.0, %v1547
        %v1549 = vpop.f32.mrf.mxu0
        %v1550 = vpop.f32.mrf.mxu0
        %v1551 = vpop.f32.mrf.mxu0
        %1552 = vdwg.mxu0
        %v1554 = vsel %vm1460, %v1448, 0
        %v1557 = vsel %vm1460, %v1454, 0
        %1559 = vmatprep.subr.bf16.mxu0 0
        %1560 = vmatpush1.bf16.xpose.msra.mxu0 0
        %1561 = vmatprep.subr.bf16.mxu0 0
        %1562 = vmatpush1.bf16.xpose.msra.mxu0 0
        %1563 = vmatprep.subr.bf16.mxu0 0
        %1564 = vmatpush1.bf16.xpose.msra.mxu0 0
        %1565 = vmatprep.subr.bf16.mxu0 0
        %1566 = vmatpush1.bf16.xpose.msra.mxu0 0
        %1567 = vmatprep.subr.bf16.mxu0 0
        %1568 = vmatpush1.bf16.xpose.msra.mxu0 0
        %1569 = vmatprep.subr.bf16.mxu0 0
        %1570 = vmatpush1.bf16.xpose.msra.mxu0 0
        %1571 = vmatprep.subr.bf16.mxu0 0
        %1572 = vmatpush1.bf16.xpose.msra.mxu0 0
        %1573 = vmatprep.subr.bf16.mxu0 0
        %1574 = vmatpush1.bf16.xpose.msra.mxu0 %v1557
        %1575 = vmatprep.subr.bf16.mxu0 0
        %1576 = vmatpush2.bf16.xpose.msra.mxu0 0
        %1577 = vmatprep.subr.bf16.mxu0 0
        %1578 = vmatpush2.bf16.xpose.msra.mxu0 0
        %1579 = vmatprep.subr.bf16.mxu0 0
        %1580 = vmatpush2.bf16.xpose.msra.mxu0 0
        %1581 = vmatprep.subr.bf16.mxu0 0
        %1582 = vmatpush2.bf16.xpose.msra.mxu0 0
        %1583 = vmatprep.subr.bf16.mxu0 0
        %1584 = vmatpush2.bf16.xpose.msra.mxu0 0
        %1585 = vmatprep.subr.bf16.mxu0 0
        %1586 = vmatpush2.bf16.xpose.msra.mxu0 0
        %1587 = vmatprep.subr.bf16.mxu0 0
        %1588 = vmatpush2.bf16.xpose.msra.mxu0 0
        %1589 = vmatprep.subr.bf16.mxu0 0
        %1590 = vmatpush2.bf16.xpose.msra.mxu0 0
        %1591 = vmatprep.mubr.bf16.mxu0 0
        %1592 = vmatmul.mubr.bf16.gmra.mxu0 %v1554
        %v1593 = vpop.f32.mrf.mxu0
        %v1594 = vadd.f32 0.0, %v1593
        %v1595 = vpop.f32.mrf.mxu0
        %v1596 = vpop.f32.mrf.mxu0
        %v1597 = vpop.f32.mrf.mxu0
        %1598 = vdwg.mxu0
        %v1600 = vsel %vm1460, %v1451, 0
        %v1603 = vsel %vm1460, %v1455, 0
        %1605 = vmatprep.subr.bf16.mxu0 0
        %1606 = vmatpush1.bf16.xpose.msra.mxu0 0
        %1607 = vmatprep.subr.bf16.mxu0 0
        %1608 = vmatpush1.bf16.xpose.msra.mxu0 0
        %1609 = vmatprep.subr.bf16.mxu0 0
        %1610 = vmatpush1.bf16.xpose.msra.mxu0 0
        %1611 = vmatprep.subr.bf16.mxu0 0
        %1612 = vmatpush1.bf16.xpose.msra.mxu0 0
        %1613 = vmatprep.subr.bf16.mxu0 0
        %1614 = vmatpush1.bf16.xpose.msra.mxu0 0
        %1615 = vmatprep.subr.bf16.mxu0 0
        %1616 = vmatpush1.bf16.xpose.msra.mxu0 0
        %1617 = vmatprep.subr.bf16.mxu0 0
        %1618 = vmatpush1.bf16.xpose.msra.mxu0 0
        %1619 = vmatprep.subr.bf16.mxu0 0
        %1620 = vmatpush1.bf16.xpose.msra.mxu0 %v1603
        %1621 = vmatprep.subr.bf16.mxu0 0
        %1622 = vmatpush2.bf16.xpose.msra.mxu0 0
        %1623 = vmatprep.subr.bf16.mxu0 0
        %1624 = vmatpush2.bf16.xpose.msra.mxu0 0
        %1625 = vmatprep.subr.bf16.mxu0 0
        %1626 = vmatpush2.bf16.xpose.msra.mxu0 0
        %1627 = vmatprep.subr.bf16.mxu0 0
        %1628 = vmatpush2.bf16.xpose.msra.mxu0 0
        %1629 = vmatprep.subr.bf16.mxu0 0
        %1630 = vmatpush2.bf16.xpose.msra.mxu0 0
        %1631 = vmatprep.subr.bf16.mxu0 0
        %1632 = vmatpush2.bf16.xpose.msra.mxu0 0
        %1633 = vmatprep.subr.bf16.mxu0 0
        %1634 = vmatpush2.bf16.xpose.msra.mxu0 0
        %1635 = vmatprep.subr.bf16.mxu0 0
        %1636 = vmatpush2.bf16.xpose.msra.mxu0 0
        %1637 = vmatprep.mubr.bf16.mxu0 0
        %1638 = vmatmul.mubr.bf16.gmra.mxu0 %v1600
        %v1639 = vpop.f32.mrf.mxu0
        %v1640 = vadd.f32 0.0, %v1639
        %v1641 = vpop.f32.mrf.mxu0
        %v1642 = vpop.f32.mrf.mxu0
        %v1643 = vpop.f32.mrf.mxu0
        %1644 = vdwg.mxu0
        %v1645 = vsel %vm1460, %v1502, -inf
        %1646 = vmax.xlane.f32.xlu0 %v1645
        %v1647 = vpop.xlane.xlu0 %1646
        %v1648 = vsel %vm1460, %v1548, -inf
        %1649 = vmax.xlane.f32.xlu0 %v1648
        %v1650 = vpop.xlane.xlu0 %1649
        %v1651 = vsel %vm1460, %v1594, -inf
        %1652 = vmax.xlane.f32.xlu0 %v1651
        %v1653 = vpop.xlane.xlu0 %1652
        %v1654 = vsel %vm1460, %v1640, -inf
        %1655 = vmax.xlane.f32.xlu0 %v1654
        %v1656 = vpop.xlane.xlu0 %1655
        %v1657 = vsub.f32 %v1502, %v1647
        %v1658 = vsub.f32 %v1548, %v1650
        %v1659 = vsub.f32 %v1594, %v1653
        %v1660 = vsub.f32 %v1640, %v1656
        %v1661 = vmul.f32 %v1657, 1.442695
        %v1662 = vpow.pop %v1661
        %v1663 = vmul.f32 %v1658, 1.442695
        %v1664 = vpow.pop %v1663
        %v1665 = vmul.f32 %v1659, 1.442695
        %v1666 = vpow.pop %v1665
        %v1667 = vmul.f32 %v1660, 1.442695
        %v1668 = vpow.pop %v1667
        %v1669 = vsel %vm1460, %v1662, 0.0
        %1670 = vadd.xlane.f32.xlu0 %v1669
        %v1671 = vpop.xlane.xlu0 %1670
        %v1672 = vsel %vm1460, %v1664, 0.0
        %1673 = vadd.xlane.f32.xlu0 %v1672
        %v1674 = vpop.xlane.xlu0 %1673
        %v1675 = vsel %vm1460, %v1666, 0.0
        %1676 = vadd.xlane.f32.xlu0 %v1675
        %v1677 = vpop.xlane.xlu0 %1676
        %v1678 = vsel %vm1460, %v1668, 0.0
        %1679 = vadd.xlane.f32.xlu0 %v1678
        %v1680 = vpop.xlane.xlu0 %1679
        %v1681 = vrcp.pop %v1671
        %v1682 = vrcp.pop %v1674
        %v1683 = vrcp.pop %v1677
        %v1684 = vrcp.pop %v1680
        %v1685 = vmul.f32 %v1662, %v1681
        %v1686 = vmul.f32 %v1664, %v1682
        %v1687 = vmul.f32 %v1666, %v1683
        %v1688 = vmul.f32 %v1668, %v1684
        %v1689 = vpack.c.bf16 %v1685, %v1685
        %v1690 = vpack.c.bf16 %v1686, %v1686
        %v1691 = vpack.c.bf16 %v1687, %v1687
        %v1692 = vpack.c.bf16 %v1688, %v1688
        %vm1693 = vcmask 60416
        %1694 = vst.msk [vmem:[%s708] sm:$0xf] %vm1693, %v1689
        %1695 = vst.msk [vmem:[%s708 + $0x4] sm:$0xf] %vm1693, %v1690
        %1696 = vst.msk [vmem:[%s708 + $0x8] sm:$0xf] %vm1693, %v1691
        %1697 = vst.msk [vmem:[%s708 + $0xc] sm:$0xf] %vm1693, %v1692
        %v1699 = vsel %vm1460, %v1689, 0
        %vm1701 = vcmask 1043456
        %v1703 = vsel %vm1701, %v1456, 0
        %1705 = vmatprep.subr.bf16.mxu0 0
        %1706 = vmatpush1.bf16.msra.mxu0 0
        %1707 = vmatprep.subr.bf16.mxu0 0
        %1708 = vmatpush1.bf16.msra.mxu0 0
        %1709 = vmatprep.subr.bf16.mxu0 0
        %1710 = vmatpush1.bf16.msra.mxu0 0
        %1711 = vmatprep.subr.bf16.mxu0 0
        %1712 = vmatpush1.bf16.msra.mxu0 0
        %1713 = vmatprep.subr.bf16.mxu0 0
        %1714 = vmatpush1.bf16.msra.mxu0 0
        %1715 = vmatprep.subr.bf16.mxu0 0
        %1716 = vmatpush1.bf16.msra.mxu0 0
        %1717 = vmatprep.subr.bf16.mxu0 0
        %1718 = vmatpush1.bf16.msra.mxu0 0
        %1719 = vmatprep.subr.bf16.mxu0 0
        %1720 = vmatpush1.bf16.msra.mxu0 %v1703
        %1721 = vmatprep.subr.bf16.mxu0 0
        %1722 = vmatpush2.bf16.msra.mxu0 0
        %1723 = vmatprep.subr.bf16.mxu0 0
        %1724 = vmatpush2.bf16.msra.mxu0 0
        %1725 = vmatprep.subr.bf16.mxu0 0
        %1726 = vmatpush2.bf16.msra.mxu0 0
        %1727 = vmatprep.subr.bf16.mxu0 0
        %1728 = vmatpush2.bf16.msra.mxu0 0
        %1729 = vmatprep.subr.bf16.mxu0 0
        %1730 = vmatpush2.bf16.msra.mxu0 0
        %1731 = vmatprep.subr.bf16.mxu0 0
        %1732 = vmatpush2.bf16.msra.mxu0 0
        %1733 = vmatprep.subr.bf16.mxu0 0
        %1734 = vmatpush2.bf16.msra.mxu0 0
        %1735 = vmatprep.subr.bf16.mxu0 0
        %1736 = vmatpush2.bf16.msra.mxu0 0
        %1737 = vmatprep.mubr.bf16.mxu0 0
        %1738 = vmatmul.mubr.bf16.gmra.mxu0 %v1699
        %v1739 = vpop.f32.mrf.mxu0
        %v1740 = vadd.f32 0.0, %v1739
        %v1741 = vpop.f32.mrf.mxu0
        %v1742 = vpop.f32.mrf.mxu0
        %v1743 = vpop.f32.mrf.mxu0
        %1744 = vdwg.mxu0
        %v1746 = vsel %vm1460, %v1690, 0
        %v1749 = vsel %vm1701, %v1457, 0
        %1751 = vmatprep.subr.bf16.mxu0 0
        %1752 = vmatpush1.bf16.msra.mxu0 0
        %1753 = vmatprep.subr.bf16.mxu0 0
        %1754 = vmatpush1.bf16.msra.mxu0 0
        %1755 = vmatprep.subr.bf16.mxu0 0
        %1756 = vmatpush1.bf16.msra.mxu0 0
        %1757 = vmatprep.subr.bf16.mxu0 0
        %1758 = vmatpush1.bf16.msra.mxu0 0
        %1759 = vmatprep.subr.bf16.mxu0 0
        %1760 = vmatpush1.bf16.msra.mxu0 0
        %1761 = vmatprep.subr.bf16.mxu0 0
        %1762 = vmatpush1.bf16.msra.mxu0 0
        %1763 = vmatprep.subr.bf16.mxu0 0
        %1764 = vmatpush1.bf16.msra.mxu0 0
        %1765 = vmatprep.subr.bf16.mxu0 0
        %1766 = vmatpush1.bf16.msra.mxu0 %v1749
        %1767 = vmatprep.subr.bf16.mxu0 0
        %1768 = vmatpush2.bf16.msra.mxu0 0
        %1769 = vmatprep.subr.bf16.mxu0 0
        %1770 = vmatpush2.bf16.msra.mxu0 0
        %1771 = vmatprep.subr.bf16.mxu0 0
        %1772 = vmatpush2.bf16.msra.mxu0 0
        %1773 = vmatprep.subr.bf16.mxu0 0
        %1774 = vmatpush2.bf16.msra.mxu0 0
        %1775 = vmatprep.subr.bf16.mxu0 0
        %1776 = vmatpush2.bf16.msra.mxu0 0
        %1777 = vmatprep.subr.bf16.mxu0 0
        %1778 = vmatpush2.bf16.msra.mxu0 0
        %1779 = vmatprep.subr.bf16.mxu0 0
        %1780 = vmatpush2.bf16.msra.mxu0 0
        %1781 = vmatprep.subr.bf16.mxu0 0
        %1782 = vmatpush2.bf16.msra.mxu0 0
        %1783 = vmatprep.mubr.bf16.mxu0 0
        %1784 = vmatmul.mubr.bf16.gmra.mxu0 %v1746
        %v1785 = vpop.f32.mrf.mxu0
        %v1786 = vadd.f32 0.0, %v1785
        %v1787 = vpop.f32.mrf.mxu0
        %v1788 = vpop.f32.mrf.mxu0
        %v1789 = vpop.f32.mrf.mxu0
        %1790 = vdwg.mxu0
        %v1792 = vsel %vm1460, %v1691, 0
        %v1795 = vsel %vm1701, %v1458, 0
        %1797 = vmatprep.subr.bf16.mxu0 0
        %1798 = vmatpush1.bf16.msra.mxu0 0
        %1799 = vmatprep.subr.bf16.mxu0 0
        %1800 = vmatpush1.bf16.msra.mxu0 0
        %1801 = vmatprep.subr.bf16.mxu0 0
        %1802 = vmatpush1.bf16.msra.mxu0 0
        %1803 = vmatprep.subr.bf16.mxu0 0
        %1804 = vmatpush1.bf16.msra.mxu0 0
        %1805 = vmatprep.subr.bf16.mxu0 0
        %1806 = vmatpush1.bf16.msra.mxu0 0
        %1807 = vmatprep.subr.bf16.mxu0 0
        %1808 = vmatpush1.bf16.msra.mxu0 0
        %1809 = vmatprep.subr.bf16.mxu0 0
        %1810 = vmatpush1.bf16.msra.mxu0 0
        %1811 = vmatprep.subr.bf16.mxu0 0
        %1812 = vmatpush1.bf16.msra.mxu0 %v1795
        %1813 = vmatprep.subr.bf16.mxu0 0
        %1814 = vmatpush2.bf16.msra.mxu0 0
        %1815 = vmatprep.subr.bf16.mxu0 0
        %1816 = vmatpush2.bf16.msra.mxu0 0
        %1817 = vmatprep.subr.bf16.mxu0 0
        %1818 = vmatpush2.bf16.msra.mxu0 0
        %1819 = vmatprep.subr.bf16.mxu0 0
        %1820 = vmatpush2.bf16.msra.mxu0 0
        %1821 = vmatprep.subr.bf16.mxu0 0
        %1822 = vmatpush2.bf16.msra.mxu0 0
        %1823 = vmatprep.subr.bf16.mxu0 0
        %1824 = vmatpush2.bf16.msra.mxu0 0
        %1825 = vmatprep.subr.bf16.mxu0 0
        %1826 = vmatpush2.bf16.msra.mxu0 0
        %1827 = vmatprep.subr.bf16.mxu0 0
        %1828 = vmatpush2.bf16.msra.mxu0 0
        %1829 = vmatprep.mubr.bf16.mxu0 0
        %1830 = vmatmul.mubr.bf16.gmra.mxu0 %v1792
        %v1831 = vpop.f32.mrf.mxu0
        %v1832 = vadd.f32 0.0, %v1831
        %v1833 = vpop.f32.mrf.mxu0
        %v1834 = vpop.f32.mrf.mxu0
        %v1835 = vpop.f32.mrf.mxu0
        %1836 = vdwg.mxu0
        %v1838 = vsel %vm1460, %v1692, 0
        %v1841 = vsel %vm1701, %v1459, 0
        %1843 = vmatprep.subr.bf16.mxu0 0
        %1844 = vmatpush1.bf16.msra.mxu0 0
        %1845 = vmatprep.subr.bf16.mxu0 0
        %1846 = vmatpush1.bf16.msra.mxu0 0
        %1847 = vmatprep.subr.bf16.mxu0 0
        %1848 = vmatpush1.bf16.msra.mxu0 0
        %1849 = vmatprep.subr.bf16.mxu0 0
        %1850 = vmatpush1.bf16.msra.mxu0 0
        %1851 = vmatprep.subr.bf16.mxu0 0
        %1852 = vmatpush1.bf16.msra.mxu0 0
        %1853 = vmatprep.subr.bf16.mxu0 0
        %1854 = vmatpush1.bf16.msra.mxu0 0
        %1855 = vmatprep.subr.bf16.mxu0 0
        %1856 = vmatpush1.bf16.msra.mxu0 0
        %1857 = vmatprep.subr.bf16.mxu0 0
        %1858 = vmatpush1.bf16.msra.mxu0 %v1841
        %1859 = vmatprep.subr.bf16.mxu0 0
        %1860 = vmatpush2.bf16.msra.mxu0 0
        %1861 = vmatprep.subr.bf16.mxu0 0
        %1862 = vmatpush2.bf16.msra.mxu0 0
        %1863 = vmatprep.subr.bf16.mxu0 0
        %1864 = vmatpush2.bf16.msra.mxu0 0
        %1865 = vmatprep.subr.bf16.mxu0 0
        %1866 = vmatpush2.bf16.msra.mxu0 0
        %1867 = vmatprep.subr.bf16.mxu0 0
        %1868 = vmatpush2.bf16.msra.mxu0 0
        %1869 = vmatprep.subr.bf16.mxu0 0
        %1870 = vmatpush2.bf16.msra.mxu0 0
        %1871 = vmatprep.subr.bf16.mxu0 0
        %1872 = vmatpush2.bf16.msra.mxu0 0
        %1873 = vmatprep.subr.bf16.mxu0 0
        %1874 = vmatpush2.bf16.msra.mxu0 0
        %1875 = vmatprep.mubr.bf16.mxu0 0
        %1876 = vmatmul.mubr.bf16.gmra.mxu0 %v1838
        %v1877 = vpop.f32.mrf.mxu0
        %v1878 = vadd.f32 0.0, %v1877
        %v1879 = vpop.f32.mrf.mxu0
        %v1880 = vpop.f32.mrf.mxu0
        %v1881 = vpop.f32.mrf.mxu0
        %1882 = vdwg.mxu0
        %v1883 = vpack.c.bf16 %v1740, %v1740
        %v1885 = vunpack.c.l.s4 1983009808
        %v1886 = vunpack.c.0.s8 %v1885
        %v1887 = vlaneseq
        %v1888 = vshrl.u32 %v1887, 7
        %v1889 = vsub.s32 %v1886, %v1888
        %v1890 = vrot.slane %v1883, %v1889
        %v1891 = vpack.c.bf16 %v1832, %v1832
        %v1893 = vunpack.c.l.s4 1983009808
        %v1894 = vunpack.c.0.s8 %v1893
        %v1895 = vlaneseq
        %v1896 = vshrl.u32 %v1895, 7
        %v1897 = vsub.s32 %v1894, %v1896
        %v1898 = vrot.slane %v1891, %v1897
        %v1899 = vcombine.low %v1890, %v1898
        %v1900 = vcombine.high %v1890, %v1898
        %v1902 = vunpack.c.l.s4 1934713408
        %v1903 = vunpack.c.0.s8 %v1902
        %v1904 = vlaneseq
        %v1905 = vshrl.u32 %v1904, 7
        %v1906 = vsub.s32 %v1903, %v1905
        %v1907 = vrot.slane %v1899, %v1906
        %v1909 = vunpack.c.l.s4 1934713408
        %v1910 = vunpack.c.0.s8 %v1909
        %v1911 = vlaneseq
        %v1912 = vshrl.u32 %v1911, 7
        %v1913 = vsub.s32 %v1910, %v1912
        %v1914 = vrot.slane %v1900, %v1913
        %v1915 = vcombine.high %v1907, 0
        %v1916 = vcombine.high %v1914, 0
        %v1917 = vpack.c.bf16 %v1786, %v1786
        %v1919 = vunpack.c.l.s4 1983009808
        %v1920 = vunpack.c.0.s8 %v1919
        %v1921 = vlaneseq
        %v1922 = vshrl.u32 %v1921, 7
        %v1923 = vsub.s32 %v1920, %v1922
        %v1924 = vrot.slane %v1917, %v1923
        %v1925 = vpack.c.bf16 %v1878, %v1878
        %v1927 = vunpack.c.l.s4 1983009808
        %v1928 = vunpack.c.0.s8 %v1927
        %v1929 = vlaneseq
        %v1930 = vshrl.u32 %v1929, 7
        %v1931 = vsub.s32 %v1928, %v1930
        %v1932 = vrot.slane %v1925, %v1931
        %v1933 = vcombine.low %v1924, %v1932
        %v1934 = vcombine.high %v1924, %v1932
        %v1936 = vunpack.c.l.s4 1934713408
        %v1937 = vunpack.c.0.s8 %v1936
        %v1938 = vlaneseq
        %v1939 = vshrl.u32 %v1938, 7
        %v1940 = vsub.s32 %v1937, %v1939
        %v1941 = vrot.slane %v1933, %v1940
        %v1943 = vunpack.c.l.s4 1934713408
        %v1944 = vunpack.c.0.s8 %v1943
        %v1945 = vlaneseq
        %v1946 = vshrl.u32 %v1945, 7
        %v1947 = vsub.s32 %v1944, %v1946
        %v1948 = vrot.slane %v1934, %v1947
        %v1949 = vcombine.high %v1941, 0
        %v1950 = vcombine.high %v1948, 0
        %v1953 = vpack.i.b16 %v1941, %v1907
        %v1955 = vshrl.u32 %v1907, 16
        %v1956 = vshrl.u32 %v1941, 16
        %v1957 = vpack.i.b16 %v1956, %v1955
        %v1961 = vpack.i.b16 %v1949, %v1915
        %v1963 = vshrl.u32 %v1915, 16
        %v1964 = vshrl.u32 %v1949, 16
        %v1965 = vpack.i.b16 %v1964, %v1963
        %v1969 = vpack.i.b16 %v1948, %v1914
        %v1971 = vshrl.u32 %v1914, 16
        %v1972 = vshrl.u32 %v1948, 16
        %v1973 = vpack.i.b16 %v1972, %v1971
        %v1977 = vpack.i.b16 %v1950, %v1916
        %v1979 = vshrl.u32 %v1916, 16
        %v1980 = vshrl.u32 %v1950, 16
        %v1981 = vpack.i.b16 %v1980, %v1979
        %v1983 = vcombine.low %v1953, %v1969
        %v1985 = vunpack.c.l.s4 1983009808
        %v1986 = vunpack.c.0.s8 %v1985
        %v1987 = vlaneseq
        %v1988 = vshrl.u32 %v1987, 7
        %v1989 = vsub.s32 %v1986, %v1988
        %v1990 = vrot.slane %v1983, %v1989
        %v1991 = vcombine.low %v1961, %v1977
        %v1993 = vunpack.c.l.s4 1983009808
        %v1994 = vunpack.c.0.s8 %v1993
        %v1995 = vlaneseq
        %v1996 = vshrl.u32 %v1995, 7
        %v1997 = vsub.s32 %v1994, %v1996
        %v1998 = vrot.slane %v1991, %v1997
        %v1999 = vcombine.low %v1990, %v1998
        %v2001 = vunpack.c.l.s4 1934713408
        %v2002 = vunpack.c.0.s8 %v2001
        %v2003 = vlaneseq
        %v2004 = vshrl.u32 %v2003, 7
        %v2005 = vsub.s32 %v2002, %v2004
        %v2006 = vrot.slane %v1999, %v2005
        %v2007 = vcombine.high %v2006, 0
        %v2008 = vcombine.low %v1957, %v1973
        %v2010 = vunpack.c.l.s4 1983009808
        %v2011 = vunpack.c.0.s8 %v2010
        %v2012 = vlaneseq
        %v2013 = vshrl.u32 %v2012, 7
        %v2014 = vsub.s32 %v2011, %v2013
        %v2015 = vrot.slane %v2008, %v2014
        %v2016 = vcombine.low %v1965, %v1981
        %v2018 = vunpack.c.l.s4 1983009808
        %v2019 = vunpack.c.0.s8 %v2018
        %v2020 = vlaneseq
        %v2021 = vshrl.u32 %v2020, 7
        %v2022 = vsub.s32 %v2019, %v2021
        %v2023 = vrot.slane %v2016, %v2022
        %v2024 = vcombine.low %v2015, %v2023
        %v2026 = vunpack.c.l.s4 1934713408
        %v2027 = vunpack.c.0.s8 %v2026
        %v2028 = vlaneseq
        %v2029 = vshrl.u32 %v2028, 7
        %v2030 = vsub.s32 %v2027, %v2029
        %v2031 = vrot.slane %v2024, %v2030
        %v2032 = vcombine.high %v2031, 0
        %v2035 = vpack.i.b16 %v2031, %v2006
        %v2036 = vshrl.u32 %v2006, 16
        %v2037 = vshrl.u32 %v2031, 16
        %v2038 = vpack.i.b16 %v2037, %v2036
        %v2041 = vpack.i.b16 %v2032, %v2007
        %v2042 = vshrl.u32 %v2007, 16
        %v2043 = vshrl.u32 %v2032, 16
        %v2044 = vpack.i.b16 %v2043, %v2042
        %2045 = vrot.lane.b32.xlu0 %v2038, 8
        %v2046 = vpop.permute.xlu0 %2045
        %2047 = vrot.lane.b32.xlu0 %v2041, 16
        %v2048 = vpop.permute.xlu0 %2047
        %2049 = vrot.lane.b32.xlu0 %v2044, 24
        %v2050 = vpop.permute.xlu0 %2049
        %v2053 = vsel %vm1460, %v2035, %v2046
        %vm2054 = vcmask 130048
        %v2056 = vsel %vm2054, %v2053, %v2048
        %vm2057 = vcmask 195584
        %v2059 = vsel %vm2057, %v2056, %v2050
        %v2060 = vld [vmem:[#allocation10] sm:$0xf]
        %v2061 = vld [vmem:[#allocation10 + $0x4] sm:$0xf]
        %v2062 = vld [vmem:[#allocation10 + $0x8] sm:$0xf]
        %v2063 = vld [vmem:[#allocation10 + $0xc] sm:$0xf]
        %v2064 = vld [vmem:[%s9] sm:$0x1]
        %v2066 = vlaneseq
        %v2067 = vshrl.u32 %v2066, 7
        %v2068 = vsub.s32 0, %v2067
        %v2069 = vrot.slane %v2064, %v2068
        %v2075 = vunpack.c.l.b16 %v2060
        %v2076 = vunpack.c.l.b16 %v2061
        %v2077 = vunpack.c.l.b16 %v2062
        %v2078 = vunpack.c.l.b16 %v2063
        %v2079 = vpack.c.b16 %v2076, %v2075
        %v2080 = vpack.c.b16 %v2078, %v2077
        %v2083 = vsel %vm1238, %v2059, 0
        %2085 = vmatprep.subr.bf16.mxu0 0
        %2086 = vmatpush1.bf16.msra.mxu0 0
        %2087 = vmatprep.subr.bf16.mxu0 0
        %2088 = vmatpush1.bf16.msra.mxu0 0
        %2089 = vmatprep.subr.bf16.mxu0 0
        %2090 = vmatpush1.bf16.msra.mxu0 0
        %2091 = vmatprep.subr.bf16.mxu0 0
        %2092 = vmatpush1.bf16.msra.mxu0 0
        %2093 = vmatprep.subr.bf16.mxu0 0
        %2094 = vmatpush1.bf16.msra.mxu0 0
        %2095 = vmatprep.subr.bf16.mxu0 0
        %2096 = vmatpush1.bf16.msra.mxu0 0
        %2097 = vmatprep.subr.bf16.mxu0 0
        %2098 = vmatpush1.bf16.msra.mxu0 %v2080
        %2099 = vmatprep.subr.bf16.mxu0 0
        %2100 = vmatpush1.bf16.msra.mxu0 %v2079
        %2101 = vmatprep.subr.bf16.mxu0 0
        %2102 = vmatpush2.bf16.msra.mxu0 0
        %2103 = vmatprep.subr.bf16.mxu0 0
        %2104 = vmatpush2.bf16.msra.mxu0 0
        %2105 = vmatprep.subr.bf16.mxu0 0
        %2106 = vmatpush2.bf16.msra.mxu0 0
        %2107 = vmatprep.subr.bf16.mxu0 0
        %2108 = vmatpush2.bf16.msra.mxu0 0
        %2109 = vmatprep.subr.bf16.mxu0 0
        %2110 = vmatpush2.bf16.msra.mxu0 0
        %2111 = vmatprep.subr.bf16.mxu0 0
        %2112 = vmatpush2.bf16.msra.mxu0 0
        %2113 = vmatprep.subr.bf16.mxu0 0
        %2114 = vmatpush2.bf16.msra.mxu0 0
        %2115 = vmatprep.subr.bf16.mxu0 0
        %2116 = vmatpush2.bf16.msra.mxu0 0
        %2117 = vmatprep.mubr.bf16.mxu0 0
        %2118 = vmatmul.mubr.bf16.gmra.mxu0 %v2083
        %v2119 = vpop.f32.mrf.mxu0
        %v2120 = vadd.f32 %v2069, %v2119
        %v2121 = vpop.f32.mrf.mxu0
        %v2122 = vpop.f32.mrf.mxu0
        %v2123 = vpop.f32.mrf.mxu0
        %2124 = vdwg.mxu0
        %v2125 = vadd.f32 %v2120, %v1212
        %v2126 = vld [vmem:[%s10] sm:$0x1]
        %v2127 = vld [vmem:[%s11] sm:$0x1]
        %v2128 = vsel %vm1238, %v2125, 0.0
        %2129 = vadd.xlane.f32.xlu0 %v2128
        %v2130 = vpop.xlane.xlu0 %2129
        %v2131 = vrcp.pop 32.0
        %v2132 = vmul.f32 %v2130, %v2131
        %v2133 = vsub.f32 %v2125, %v2132
        %v2134 = vmul.f32 %v2133, %v2133
        %v2135 = vsel %vm1238, %v2134, 0.0
        %2136 = vadd.xlane.f32.xlu0 %v2135
        %v2137 = vpop.xlane.xlu0 %2136
        %v2138 = vmul.f32 %v2137, %v2131
        %v2139 = vadd.f32 %v2138, 1e-05
        %v2140 = vrsqrt.pop %v2139
        %v2141 = vmul.f32 %v2133, %v2140
        %v2143 = vlaneseq
        %v2144 = vshrl.u32 %v2143, 7
        %v2145 = vsub.s32 0, %v2144
        %v2146 = vrot.slane %v2126, %v2145
        %v2148 = vmul.f32 %v2141, %v2146
        %v2150 = vlaneseq
        %v2151 = vshrl.u32 %v2150, 7
        %v2152 = vsub.s32 0, %v2151
        %v2153 = vrot.slane %v2127, %v2152
        %v2155 = vadd.f32 %v2148, %v2153
        %2157 = vset.pattern.permute.xlu0 0
        %2158 = vperm.xlu0 %2157, %v1213
        %v2159 = vpop.permute.xlu0 %2158
        %v2161 = vmul.f32 %v2155, %v2159
        %v2162 = vpack.c.bf16 %v2161, %v2161
        %v2163 = vld [vmem:[#allocation12] sm:$0xf]
        %v2164 = vld [vmem:[#allocation12 + $0x4] sm:$0xf]
        %v2165 = vld [vmem:[#allocation12 + $0x8] sm:$0xf]
        %v2166 = vld [vmem:[#allocation12 + $0xc] sm:$0xf]
        %v2167 = vld [vmem:[%s13] sm:$0x1]
        %v2169 = vlaneseq
        %v2170 = vshrl.u32 %v2169, 7
        %v2171 = vsub.s32 0, %v2170
        %v2172 = vrot.slane %v2167, %v2171
        %v2178 = vunpack.c.l.b16 %v2163
        %v2179 = vunpack.c.l.b16 %v2164
        %v2180 = vunpack.c.l.b16 %v2165
        %v2181 = vunpack.c.l.b16 %v2166
        %v2182 = vpack.c.b16 %v2179, %v2178
        %v2183 = vpack.c.b16 %v2181, %v2180
        %v2187 = vsel %vm1238, %v2162, 0
        %2189 = vmatprep.subr.bf16.mxu0 0
        %2190 = vmatpush1.bf16.msra.mxu0 0
        %2191 = vmatprep.subr.bf16.mxu0 0
        %2192 = vmatpush1.bf16.msra.mxu0 0
        %2193 = vmatprep.subr.bf16.mxu0 0
        %2194 = vmatpush1.bf16.msra.mxu0 0
        %2195 = vmatprep.subr.bf16.mxu0 0
        %2196 = vmatpush1.bf16.msra.mxu0 0
        %2197 = vmatprep.subr.bf16.mxu0 0
        %2198 = vmatpush1.bf16.msra.mxu0 0
        %2199 = vmatprep.subr.bf16.mxu0 0
        %2200 = vmatpush1.bf16.msra.mxu0 0
        %2201 = vmatprep.subr.bf16.mxu0 0
        %2202 = vmatpush1.bf16.msra.mxu0 %v2183
        %2203 = vmatprep.subr.bf16.mxu0 0
        %2204 = vmatpush1.bf16.msra.mxu0 %v2182
        %2205 = vmatprep.subr.bf16.mxu0 0
        %2206 = vmatpush2.bf16.msra.mxu0 0
        %2207 = vmatprep.subr.bf16.mxu0 0
        %2208 = vmatpush2.bf16.msra.mxu0 0
        %2209 = vmatprep.subr.bf16.mxu0 0
        %2210 = vmatpush2.bf16.msra.mxu0 0
        %2211 = vmatprep.subr.bf16.mxu0 0
        %2212 = vmatpush2.bf16.msra.mxu0 0
        %2213 = vmatprep.subr.bf16.mxu0 0
        %2214 = vmatpush2.bf16.msra.mxu0 0
        %2215 = vmatprep.subr.bf16.mxu0 0
        %2216 = vmatpush2.bf16.msra.mxu0 0
        %2217 = vmatprep.subr.bf16.mxu0 0
        %2218 = vmatpush2.bf16.msra.mxu0 0
        %2219 = vmatprep.subr.bf16.mxu0 0
        %2220 = vmatpush2.bf16.msra.mxu0 0
        %2221 = vmatprep.mubr.bf16.mxu0 0
        %2222 = vmatmul.mubr.bf16.gmra.mxu0 %v2187
        %v2223 = vpop.f32.mrf.mxu0
        %v2224 = vadd.f32 %v2172, %v2223
        %v2225 = vpop.f32.mrf.mxu0
        %v2226 = vpop.f32.mrf.mxu0
        %v2227 = vpop.f32.mrf.mxu0
        %2228 = vdwg.mxu0
        %v2229 = vmax.f32 %v2224, 0.0
        %v2230 = vpack.c.bf16 %v2229, %v2229
        %v2231 = vld [vmem:[%s14] sm:$0xf]
        %v2232 = vld [vmem:[%s14 + $0x4] sm:$0xf]
        %v2233 = vld [vmem:[%s14 + $0x8] sm:$0xf]
        %v2234 = vld [vmem:[%s14 + $0xc] sm:$0xf]
        %v2235 = vld [vmem:[%s14 + $0x10] sm:$0xf]
        %v2236 = vld [vmem:[%s14 + $0x14] sm:$0xf]
        %v2237 = vld [vmem:[%s14 + $0x18] sm:$0xf]
        %v2238 = vld [vmem:[%s14 + $0x1c] sm:$0xf]
        %v2239 = vld [vmem:[%s15] sm:$0x1]
        %v2241 = vlaneseq
        %v2242 = vshrl.u32 %v2241, 7
        %v2243 = vsub.s32 0, %v2242
        %v2244 = vrot.slane %v2239, %v2243
        %v2254 = vunpack.c.l.b16 %v2231
        %v2255 = vunpack.c.l.b16 %v2232
        %v2256 = vunpack.c.l.b16 %v2233
        %v2257 = vunpack.c.l.b16 %v2234
        %v2258 = vunpack.c.l.b16 %v2235
        %v2259 = vunpack.c.l.b16 %v2236
        %v2260 = vunpack.c.l.b16 %v2237
        %v2261 = vunpack.c.l.b16 %v2238
        %v2262 = vpack.c.b16 %v2255, %v2254
        %v2263 = vpack.c.b16 %v2257, %v2256
        %v2264 = vpack.c.b16 %v2259, %v2258
        %v2265 = vpack.c.b16 %v2261, %v2260
        %vm2270 = vcmask 523264
        %v2272 = vsel %vm2270, %v2230, 0
        %2274 = vmatprep.subr.bf16.mxu0 0
        %2275 = vmatpush1.bf16.msra.mxu0 0
        %2276 = vmatprep.subr.bf16.mxu0 0
        %2277 = vmatpush1.bf16.msra.mxu0 0
        %2278 = vmatprep.subr.bf16.mxu0 0
        %2279 = vmatpush1.bf16.msra.mxu0 0
        %2280 = vmatprep.subr.bf16.mxu0 0
        %2281 = vmatpush1.bf16.msra.mxu0 0
        %2282 = vmatprep.subr.bf16.mxu0 0
        %2283 = vmatpush1.bf16.msra.mxu0 %v2265
        %2284 = vmatprep.subr.bf16.mxu0 0
        %2285 = vmatpush1.bf16.msra.mxu0 %v2264
        %2286 = vmatprep.subr.bf16.mxu0 0
        %2287 = vmatpush1.bf16.msra.mxu0 %v2263
        %2288 = vmatprep.subr.bf16.mxu0 0
        %2289 = vmatpush1.bf16.msra.mxu0 %v2262
        %2290 = vmatprep.subr.bf16.mxu0 0
        %2291 = vmatpush2.bf16.msra.mxu0 0
        %2292 = vmatprep.subr.bf16.mxu0 0
        %2293 = vmatpush2.bf16.msra.mxu0 0
        %2294 = vmatprep.subr.bf16.mxu0 0
        %2295 = vmatpush2.bf16.msra.mxu0 0
        %2296 = vmatprep.subr.bf16.mxu0 0
        %2297 = vmatpush2.bf16.msra.mxu0 0
        %2298 = vmatprep.subr.bf16.mxu0 0
        %2299 = vmatpush2.bf16.msra.mxu0 0
        %2300 = vmatprep.subr.bf16.mxu0 0
        %2301 = vmatpush2.bf16.msra.mxu0 0
        %2302 = vmatprep.subr.bf16.mxu0 0
        %2303 = vmatpush2.bf16.msra.mxu0 0
        %2304 = vmatprep.subr.bf16.mxu0 0
        %2305 = vmatpush2.bf16.msra.mxu0 0
        %2306 = vmatprep.mubr.bf16.mxu0 0
        %2307 = vmatmul.mubr.bf16.gmra.mxu0 %v2272
        %v2308 = vpop.f32.mrf.mxu0
        %v2309 = vadd.f32 %v2244, %v2308
        %v2310 = vpop.f32.mrf.mxu0
        %v2311 = vpop.f32.mrf.mxu0
        %v2312 = vpop.f32.mrf.mxu0
        %2313 = vdwg.mxu0
        %v2314 = vadd.f32 %v2309, %v2161
        %v2315 = vld [vmem:[%s16] sm:$0x1]
        %v2316 = vld [vmem:[%s17] sm:$0x1]
        %v2317 = vsel %vm1238, %v2314, 0.0
        %2318 = vadd.xlane.f32.xlu0 %v2317
        %v2319 = vpop.xlane.xlu0 %2318
        %v2320 = vmul.f32 %v2319, %v2131
        %v2321 = vsub.f32 %v2314, %v2320
        %v2322 = vmul.f32 %v2321, %v2321
        %v2323 = vsel %vm1238, %v2322, 0.0
        %2324 = vadd.xlane.f32.xlu0 %v2323
        %v2325 = vpop.xlane.xlu0 %2324
        %v2326 = vmul.f32 %v2325, %v2131
        %v2327 = vadd.f32 %v2326, 1e-05
        %v2328 = vrsqrt.pop %v2327
        %v2329 = vmul.f32 %v2321, %v2328
        %v2331 = vlaneseq
        %v2332 = vshrl.u32 %v2331, 7
        %v2333 = vsub.s32 0, %v2332
        %v2334 = vrot.slane %v2315, %v2333
        %v2336 = vmul.f32 %v2329, %v2334
        %v2338 = vlaneseq
        %v2339 = vshrl.u32 %v2338, 7
        %v2340 = vsub.s32 0, %v2339
        %v2341 = vrot.slane %v2316, %v2340
        %v2343 = vadd.f32 %v2336, %v2341
        %v2344 = vmul.f32 %v2343, %v2159
        %2345 = vst.msk [vmem:[%s701] sm:$0xff] %vm1238, %v2344
        %s2346 = sand.u32 %s452, 1
        %s2347 = scalar_lea.sflag [#allocation6], %s2346
        %s2348 = sand.u32 %s452, 1
        %s2349 = smul.addr %s2348, 8
        %s2350 = scalar_lea.vmem [#allocation13], %s2349
        %s2351 = sand.u32 %s480, 1
        %s2352 = scalar_lea.sflag [#allocation15], %s2351
        %s2353 = sand.u32 %s480, 1
        %s2354 = smul.addr %s2353, 16
        %s2355 = scalar_lea.vmem [#allocation14], %s2354
        // Predicated region
        $region117: #{tpu_custom_call.1} parent=91 // pred_check
          %p2356 = pneg %p462
        $region118: #{tpu_custom_call.1} parent=91 // pred_check_branch
          %2358 = sbr.rel (%p2356) target = $region120
        $region119: #{tpu_custom_call.1} parent=91 // pred_region
          %s2360 = ssub.s32 128, 128
          %2361 = vsyncadd %s2347, %s2360
          %s2362 = sadd.s32 %s45, %s44
          %s2363 = smul.addr %s2362, 128
          %s2364 = scalar_lea.hbm %s18, %s2363
          %s2366 = sshll.u32 %s2350, 4
          %s2367 = int_to_ptr.vmem [resolvable:$true] %s2366
          %2369 = dma.vmem_to_hbm [thread:$0]  %s2367, 128, %s2364, %s2347
        $region120: #{tpu_custom_call.1} parent=91 // pred_fallthru
          _
        // Predicated region
        $region121: #{tpu_custom_call.1} parent=91 // pred_check
          %p2370 = pneg %p490
        $region122: #{tpu_custom_call.1} parent=91 // pred_check_branch
          %2372 = sbr.rel (%p2370) target = $region124
        $region123: #{tpu_custom_call.1} parent=91 // pred_region
          %s2374 = ssub.s32 256, 256
          %2375 = vsyncadd %s2352, %s2374
          %s2376 = sadd.s32 %s45, %s44
          %s2377 = smul.addr %s2376, 64
          %s2378 = scalar_lea.hbm %s19, %s2377
          %s2379 = sshll.u32 %s2355, 4
          %s2380 = int_to_ptr.vmem [resolvable:$true] %s2379
          %2385 = dma.vmem_to_hbm [thread:$0]  %s2380, 256, %s2378, %s2352, 64, 128, 4
        $region124: #{tpu_custom_call.1} parent=91 // pred_fallthru
          _
      $region92: #{tpu_custom_call.1} parent=5 // pred_fallthru
        _
      %p2386 = scmp.le.s32.totalorder 2, %s35
      // Predicated region
      $region125: #{tpu_custom_call.1} parent=5 // pred_check
        %p2387 = pneg %p2386
      $region126: #{tpu_custom_call.1} parent=5 // pred_check_branch
        %2389 = sbr.rel (%p2387) target = $region128
      $region127: #{tpu_custom_call.1} parent=5 // pred_region
        %s2390 = ssub.s32 %s35, 2
        // Predicated region
        $region129: #{tpu_custom_call.1} parent=127 // pred_check
          %p2391 = pneg %p468
        $region130: #{tpu_custom_call.1} parent=127 // pred_check_branch
          %2393 = sbr.rel (%p2391) target = $region132
        $region131: #{tpu_custom_call.1} parent=127 // pred_region
          %s2394 = sand.u32 %s453, 1
          %s2395 = scalar_lea.sflag [#allocation6], %s2394
          %s2396 = sand.u32 %s453, 1
          %s2397 = smul.addr %s2396, 8
          %s2398 = scalar_lea.vmem [#allocation13], %s2397
          %2399 = dma.done %s2395, 128
        $region132: #{tpu_custom_call.1} parent=127 // pred_fallthru
          _
        // Predicated region
        $region133: #{tpu_custom_call.1} parent=127 // pred_check
          %p2400 = pneg %p496
        $region134: #{tpu_custom_call.1} parent=127 // pred_check_branch
          %2402 = sbr.rel (%p2400) target = $region136
        $region135: #{tpu_custom_call.1} parent=127 // pred_region
          %s2403 = sand.u32 %s481, 1
          %s2404 = scalar_lea.sflag [#allocation15], %s2403
          %s2405 = sand.u32 %s481, 1
          %s2406 = smul.addr %s2405, 16
          %s2407 = scalar_lea.vmem [#allocation14], %s2406
          %2408 = dma.done %s2404, 256
        $region136: #{tpu_custom_call.1} parent=127 // pred_fallthru
          _
      $region128: #{tpu_custom_call.1} parent=5 // pred_fallthru
        _
    $region6: #{tpu_custom_call.1} parent=1 // loop_footer
      %s39 = sadd.s32 1, %s35
    $region7: #{tpu_custom_call.1} parent=1 // loop_footer_branch
      %34 = sbr.rel target = $region3
    $region8: #{tpu_custom_call.1} parent=1 // loop_exit
      _
    %2409 = vsyncpa [#allocation5], 1
    %s2410 = scalar_lea.sflag [#allocation5], 1
    %2411 = vsyncpa %s2410, 1
    %2412 = vsyncpa [#allocation8], 1
    %2413 = vsyncpa [#allocation11], 1
    %2414 = vsyncpa [#allocation6], 1
    %s2415 = scalar_lea.sflag [#allocation6], 1
    %2416 = vsyncpa %s2415, 1
    %2417 = vsyncpa [#allocation15], 1
    %s2418 = scalar_lea.sflag [#allocation15], 1
    %2419 = vsyncpa %s2418, 1

// kernel: tpu_custom_call.1
$region0: #{tpu_custom_call.1}
  #allocation0 [shape = 'u32[]', space=smem, size = 0x4, offset = 0x4, fixed_abs, tag = 'smem constant byte address 0x4 - core index']
  #allocation1 [shape = 'u32[144,128]{1,0:T(1,128)}', space=vmem, size = 0x12000, scoped, tag = 'internal scratch']
  #allocation2 [shape = 'bf16[4,8,8]{2,1,0:T(8,128)(2,1)}', space=vmem, size = 0x2000, scoped, tag = 'scratch operand']
  #allocation3 [shape = 'bf16[4,8,8]{2,1,0:T(8,128)(2,1)}', space=vmem, size = 0x2000, scoped, tag = 'scratch operand']
  %s0 = inlined_call_operand.vmem [shape: f32[2,8,32], index: 0, kind: input, shape index: {}]
  %s1 = inlined_call_operand.vmem [shape: f32[2,8,1], index: 1, kind: input, shape index: {}]
  %s2 = inlined_call_operand.vmem [shape: bf16[32,32], index: 2, kind: input, shape index: {}]
  %s3 = inlined_call_operand.hbm [shape: f32[1,32], index: 3, kind: input, shape index: {}]
  %s4 = inlined_call_operand.vmem [shape: bf16[32,32], index: 4, kind: input, shape index: {}]
  %s5 = inlined_call_operand.hbm [shape: f32[1,32], index: 5, kind: input, shape index: {}]
  %s6 = inlined_call_operand.vmem [shape: bf16[32,32], index: 6, kind: input, shape index: {}]
  %s7 = inlined_call_operand.hbm [shape: f32[1,32], index: 7, kind: input, shape index: {}]
  %s8 = inlined_call_operand.hbm [shape: bf16[32,32], index: 8, kind: input, shape index: {}]
  %s9 = inlined_call_operand.vmem [shape: f32[1,32], index: 9, kind: input, shape index: {}]
  %s10 = inlined_call_operand.vmem [shape: f32[1,32], index: 10, kind: input, shape index: {}]
  %s11 = inlined_call_operand.vmem [shape: f32[1,32], index: 11, kind: input, shape index: {}]
  %s12 = inlined_call_operand.hbm [shape: bf16[32,64], index: 12, kind: input, shape index: {}]
  %s13 = inlined_call_operand.vmem [shape: f32[1,64], index: 13, kind: input, shape index: {}]
  %s14 = inlined_call_operand.vmem [shape: bf16[64,32], index: 14, kind: input, shape index: {}]
  %s15 = inlined_call_operand.vmem [shape: f32[1,32], index: 15, kind: input, shape index: {}]
  %s16 = inlined_call_operand.vmem [shape: f32[1,32], index: 16, kind: input, shape index: {}]
  %s17 = inlined_call_operand.vmem [shape: f32[1,32], index: 17, kind: input, shape index: {}]
  %s18 = inlined_call_operand.hbm [shape: f32[2,8,32], index: 18, kind: output, shape index: {0}]
  %s19 = inlined_call_operand.hbm [shape: bf16[4,2,8,8], index: 19, kind: output, shape index: {1}]
  %20 = xla_tuple %s18, %s19
  %s21 = sld [smem:[#allocation0]]
  $region137: #{tpu_custom_call.1} parent=0
    _
  %s23 = ssub.s32 1, %s21
  %s24 = scalar_select 0, %s23, %s21
  $region1: #{tpu_custom_call.1} parent=0
    #allocation4 [shape = 'u8[512]{0}', space=vmem, size = 0x400, scoped, tag = 'input window, operand 3, single buffered']
    #allocation5 [shape = 's32[2]{0}', space=sflag, size = 0x8, scoped, tag = 'scoped memory for tpu_custom_call.1']
    #allocation6 [shape = 's32[2]{0}', space=sflag, size = 0x8, scoped, tag = 'scoped memory for tpu_custom_call.1']
    #allocation7 [shape = 'u8[512]{0}', space=vmem, size = 0x400, scoped, tag = 'input window, operand 5, single buffered']
    #allocation8 [shape = 's32[1]{0}', space=sflag, size = 0x4, scoped, tag = 'scoped memory for tpu_custom_call.1']
    #allocation9 [shape = 'u8[512]{0}', space=vmem, size = 0x400, scoped, tag = 'input window, operand 7, single buffered']
    #allocation10 [shape = 'u8[8192]{0}', space=vmem, size = 0x2000, scoped, tag = 'input window, operand 8, single buffered']
    #allocation11 [shape = 's32[1]{0}', space=sflag, size = 0x4, scoped, tag = 'scoped memory for tpu_custom_call.1']
    #allocation12 [shape = 'u8[8192]{0}', space=vmem, size = 0x2000, scoped, tag = 'input window, operand 12, single buffered']
    #allocation13 [shape = 'u8[8192]{0}', space=vmem, size = 0x2000, scoped, tag = 'output window, operand 0']
    #allocation14 [shape = 'u8[16384]{0}', space=vmem, size = 0x4000, scoped, tag = 'output window, operand 1']
    #allocation15 [shape = 's32[2]{0}', space=sflag, size = 0x8, scoped, tag = 'scoped memory for tpu_custom_call.1']
    %25 = vsyncpa [#allocation5], 0
    %26 = vsyncpa [#allocation8], 0
    %27 = vsyncpa [#allocation11], 0
    %28 = vsyncpa [#allocation6], 0
    %s29 = scalar_lea.sflag [#allocation6], 1
    %30 = vsyncpa %s29, 0
    %31 = vsyncpa [#allocation15], 0
    %s32 = scalar_lea.sflag [#allocation15], 1
    %33 = vsyncpa %s32, 0
    loop: start=0, step=1, limit=4
    $region2: #{tpu_custom_call.1} parent=1 // loop_pre_header
      _
    $region3: #{tpu_custom_call.1} parent=1 // loop_header
      %s35 = sphi 0, %s39
      %p36 = scmp.ge.s32.totalorder %s35, 4
      %s42 = sphi 0, %s54
      %s43 = sphi 0, %s50
      %s44 = sphi 0, %s42
      %s45 = sphi 0, %s43
      %s46 = sphi 0, %s44
      %s47 = sphi 0, %s45
      %s57 = sphi 0, %s59
      %s60 = sphi 0, %s57
      %s61 = sphi 0, %s60
      %s77 = sphi 0, %s61
      %s85 = sphi 0, %s87
      %s88 = sphi 0, %s85
      %s89 = sphi 0, %s88
      %s105 = sphi 0, %s89
      %s109 = sphi 0, %s109
      %s111 = sphi 0, %s109
      %s112 = sphi 0, %s111
      %s126 = sphi 0, %s112
      %s130 = sphi 0, %s130
      %s132 = sphi 0, %s130
      %s133 = sphi 0, %s132
      %s147 = sphi 0, %s133
      %s151 = sphi 0, %s151
      %s153 = sphi 0, %s151
      %s154 = sphi 0, %s153
      %s168 = sphi 0, %s154
      %s172 = sphi 0, %s172
      %s174 = sphi 0, %s172
      %s175 = sphi 0, %s174
      %s189 = sphi 0, %s175
      %s193 = sphi 0, %s193
      %s195 = sphi 0, %s193
      %s196 = sphi 0, %s195
      %s210 = sphi 0, %s196
      %s214 = sphi 0, %s214
      %s216 = sphi 0, %s214
      %s217 = sphi 0, %s216
      %s231 = sphi 0, %s217
      %s235 = sphi 0, %s235
      %s237 = sphi 0, %s235
      %s238 = sphi 0, %s237
      %s252 = sphi 0, %s238
      %s256 = sphi 0, %s256
      %s258 = sphi 0, %s256
      %s259 = sphi 0, %s258
      %s273 = sphi 0, %s259
      %s277 = sphi 0, %s277
      %s279 = sphi 0, %s277
      %s280 = sphi 0, %s279
      %s294 = sphi 0, %s280
      %s298 = sphi 0, %s298
      %s300 = sphi 0, %s298
      %s301 = sphi 0, %s300
      %s315 = sphi 0, %s301
      %s319 = sphi 0, %s319
      %s321 = sphi 0, %s319
      %s322 = sphi 0, %s321
      %s336 = sphi 0, %s322
      %s340 = sphi 0, %s340
      %s342 = sphi 0, %s340
      %s343 = sphi 0, %s342
      %s357 = sphi 0, %s343
      %s361 = sphi 0, %s361
      %s363 = sphi 0, %s361
      %s364 = sphi 0, %s363
      %s378 = sphi 0, %s364
      %s382 = sphi 0, %s382
      %s384 = sphi 0, %s382
      %s385 = sphi 0, %s384
      %s399 = sphi 0, %s385
      %s403 = sphi 0, %s403
      %s405 = sphi 0, %s403
      %s406 = sphi 0, %s405
      %s420 = sphi 0, %s406
      %s424 = sphi 0, %s424
      %s426 = sphi 0, %s424
      %s427 = sphi 0, %s426
      %s441 = sphi 0, %s427
      %s449 = sphi 0, %s451
      %s452 = sphi 0, %s449
      %s453 = sphi 0, %s452
      %s469 = sphi 0, %s453
      %s477 = sphi 0, %s479
      %s480 = sphi 0, %s477
      %s481 = sphi 0, %s480
      %s497 = sphi 0, %s481
    $region4: #{tpu_custom_call.1} parent=1 // loop_header_branch
      %38 = sbr.rel (%p36) target = $region8
    $region5: #{tpu_custom_call.1} parent=1 // loop_body
      %s40 = ssub.s32 %s35, 1
      %s41 = ssub.s32 %s35, 2
      %s48 = sadd.s32 1, %s43
      %p49 = scmp.ge.s32.totalorder %s48, 1
      %s50 = scalar_select %p49, 0, %s48
      %s51 = sadd.s32 1, %s42
      %s52 = scalar_select %p49, %s51, %s42
      %p53 = scmp.ge.s32.totalorder %s52, 2
      %s54 = scalar_select %p53, 0, %s52
      %s55 = ssub.s32 %s42, %s54
      %p56 = scmp.eq.s32.totalorder %s55, 0
      %s58 = sadd.s32 %s57, 1
      %s59 = scalar_select %p56, %s57, %s58
      %p62 = pneg %p56
      %p63 = scmp.eq.s32.totalorder %s35, 1
      %p64 = por %p62, %p63
      %p65 = scmp.ne.s32.totalorder %s57, %s60
      %p66 = scmp.eq.s32.totalorder %s35, 0
      %p67 = por %p65, %p66
      %p68 = scmp.ne.s32.totalorder %s57, %s60
      %p69 = scmp.eq.s32.totalorder %s40, 1
      %p70 = por %p68, %p69
      %p71 = scmp.ne.s32.totalorder %s60, %s61
      %p72 = scmp.eq.s32.totalorder %s40, 0
      %p73 = por %p71, %p72
      %p74 = scmp.ne.s32.totalorder %s60, %s61
      %p75 = scmp.eq.s32.totalorder %s41, 1
      %p76 = por %p74, %p75
      %p78 = scmp.ne.s32.totalorder %s61, %s77
      %p79 = scmp.eq.s32.totalorder %s41, 0
      %p80 = por %p78, %p79
      %s81 = ssub.s32 %s42, %s54
      %s82 = ssub.s32 %s43, %s50
      %s83 = sor.u32 %s81, %s82
      %p84 = scmp.eq.s32.totalorder %s83, 0
      %s86 = sadd.s32 %s85, 1
      %s87 = scalar_select %p84, %s85, %s86
      %p90 = pneg %p84
      %p91 = scmp.eq.s32.totalorder %s35, 1
      %p92 = por %p90, %p91
      %p93 = scmp.ne.s32.totalorder %s85, %s88
      %p94 = scmp.eq.s32.totalorder %s35, 0
      %p95 = por %p93, %p94
      %p96 = scmp.ne.s32.totalorder %s85, %s88
      %p97 = scmp.eq.s32.totalorder %s40, 1
      %p98 = por %p96, %p97
      %p99 = scmp.ne.s32.totalorder %s88, %s89
      %p100 = scmp.eq.s32.totalorder %s40, 0
      %p101 = por %p99, %p100
      %p102 = scmp.ne.s32.totalorder %s88, %s89
      %p103 = scmp.eq.s32.totalorder %s41, 1
      %p104 = por %p102, %p103
      %p106 = scmp.ne.s32.totalorder %s89, %s105
      %p107 = scmp.eq.s32.totalorder %s41, 0
      %p108 = por %p106, %p107
      %s110 = sadd.s32 %s109, 1
      %p113 = scmp.eq.s32.totalorder %s35, 1
      %p114 = scmp.ne.s32.totalorder %s109, %s111
      %p115 = scmp.eq.s32.totalorder %s35, 0
      %p116 = por %p114, %p115
      %p117 = scmp.ne.s32.totalorder %s109, %s111
      %p118 = scmp.eq.s32.totalorder %s40, 1
      %p119 = por %p117, %p118
      %p120 = scmp.ne.s32.totalorder %s111, %s112
      %p121 = scmp.eq.s32.totalorder %s40, 0
      %p122 = por %p120, %p121
      %p123 = scmp.ne.s32.totalorder %s111, %s112
      %p124 = scmp.eq.s32.totalorder %s41, 1
      %p125 = por %p123, %p124
      %p127 = scmp.ne.s32.totalorder %s112, %s126
      %p128 = scmp.eq.s32.totalorder %s41, 0
      %p129 = por %p127, %p128
      %s131 = sadd.s32 %s130, 1
      %p134 = scmp.eq.s32.totalorder %s35, 1
      %p135 = scmp.ne.s32.totalorder %s130, %s132
      %p136 = scmp.eq.s32.totalorder %s35, 0
      %p137 = por %p135, %p136
      %p138 = scmp.ne.s32.totalorder %s130, %s132
      %p139 = scmp.eq.s32.totalorder %s40, 1
      %p140 = por %p138, %p139
      %p141 = scmp.ne.s32.totalorder %s132, %s133
      %p142 = scmp.eq.s32.totalorder %s40, 0
      %p143 = por %p141, %p142
      %p144 = scmp.ne.s32.totalorder %s132, %s133
      %p145 = scmp.eq.s32.totalorder %s41, 1
      %p146 = por %p144, %p145
      %p148 = scmp.ne.s32.totalorder %s133, %s147
      %p149 = scmp.eq.s32.totalorder %s41, 0
      %p150 = por %p148, %p149
      %s152 = sadd.s32 %s151, 1
      %p155 = scmp.eq.s32.totalorder %s35, 1
      %p156 = scmp.ne.s32.totalorder %s151, %s153
      %p157 = scmp.eq.s32.totalorder %s35, 0
      %p158 = por %p156, %p157
      %p159 = scmp.ne.s32.totalorder %s151, %s153
      %p160 = scmp.eq.s32.totalorder %s40, 1
      %p161 = por %p159, %p160
      %p162 = scmp.ne.s32.totalorder %s153, %s154
      %p163 = scmp.eq.s32.totalorder %s40, 0
      %p164 = por %p162, %p163
      %p165 = scmp.ne.s32.totalorder %s153, %s154
      %p166 = scmp.eq.s32.totalorder %s41, 1
      %p167 = por %p165, %p166
      %p169 = scmp.ne.s32.totalorder %s154, %s168
      %p170 = scmp.eq.s32.totalorder %s41, 0
      %p171 = por %p169, %p170
      %s173 = sadd.s32 %s172, 1
      %p176 = scmp.eq.s32.totalorder %s35, 1
      %p177 = scmp.ne.s32.totalorder %s172, %s174
      %p178 = scmp.eq.s32.totalorder %s35, 0
      %p179 = por %p177, %p178
      %p180 = scmp.ne.s32.totalorder %s172, %s174
      %p181 = scmp.eq.s32.totalorder %s40, 1
      %p182 = por %p180, %p181
      %p183 = scmp.ne.s32.totalorder %s174, %s175
      %p184 = scmp.eq.s32.totalorder %s40, 0
      %p185 = por %p183, %p184
      %p186 = scmp.ne.s32.totalorder %s174, %s175
      %p187 = scmp.eq.s32.totalorder %s41, 1
      %p188 = por %p186, %p187
      %p190 = scmp.ne.s32.totalorder %s175, %s189
      %p191 = scmp.eq.s32.totalorder %s41, 0
      %p192 = por %p190, %p191
      %s194 = sadd.s32 %s193, 1
      %p197 = scmp.eq.s32.totalorder %s35, 1
      %p198 = scmp.ne.s32.totalorder %s193, %s195
      %p199 = scmp.eq.s32.totalorder %s35, 0
      %p200 = por %p198, %p199
      %p201 = scmp.ne.s32.totalorder %s193, %s195
      %p202 = scmp.eq.s32.totalorder %s40, 1
      %p203 = por %p201, %p202
      %p204 = scmp.ne.s32.totalorder %s195, %s196
      %p205 = scmp.eq.s32.totalorder %s40, 0
      %p206 = por %p204, %p205
      %p207 = scmp.ne.s32.totalorder %s195, %s196
      %p208 = scmp.eq.s32.totalorder %s41, 1
      %p209 = por %p207, %p208
      %p211 = scmp.ne.s32.totalorder %s196, %s210
      %p212 = scmp.eq.s32.totalorder %s41, 0
      %p213 = por %p211, %p212
      %s215 = sadd.s32 %s214, 1
      %p218 = scmp.eq.s32.totalorder %s35, 1
      %p219 = scmp.ne.s32.totalorder %s214, %s216
      %p220 = scmp.eq.s32.totalorder %s35, 0
      %p221 = por %p219, %p220
      %p222 = scmp.ne.s32.totalorder %s214, %s216
      %p223 = scmp.eq.s32.totalorder %s40, 1
      %p224 = por %p222, %p223
      %p225 = scmp.ne.s32.totalorder %s216, %s217
      %p226 = scmp.eq.s32.totalorder %s40, 0
      %p227 = por %p225, %p226
      %p228 = scmp.ne.s32.totalorder %s216, %s217
      %p229 = scmp.eq.s32.totalorder %s41, 1
      %p230 = por %p228, %p229
      %p232 = scmp.ne.s32.totalorder %s217, %s231
      %p233 = scmp.eq.s32.totalorder %s41, 0
      %p234 = por %p232, %p233
      %s236 = sadd.s32 %s235, 1
      %p239 = scmp.eq.s32.totalorder %s35, 1
      %p240 = scmp.ne.s32.totalorder %s235, %s237
      %p241 = scmp.eq.s32.totalorder %s35, 0
      %p242 = por %p240, %p241
      %p243 = scmp.ne.s32.totalorder %s235, %s237
      %p244 = scmp.eq.s32.totalorder %s40, 1
      %p245 = por %p243, %p244
      %p246 = scmp.ne.s32.totalorder %s237, %s238
      %p247 = scmp.eq.s32.totalorder %s40, 0
      %p248 = por %p246, %p247
      %p249 = scmp.ne.s32.totalorder %s237, %s238
      %p250 = scmp.eq.s32.totalorder %s41, 1
      %p251 = por %p249, %p250
      %p253 = scmp.ne.s32.totalorder %s238, %s252
      %p254 = scmp.eq.s32.totalorder %s41, 0
      %p255 = por %p253, %p254
      %s257 = sadd.s32 %s256, 1
      %p260 = scmp.eq.s32.totalorder %s35, 1
      %p261 = scmp.ne.s32.totalorder %s256, %s258
      %p262 = scmp.eq.s32.totalorder %s35, 0
      %p263 = por %p261, %p262
      %p264 = scmp.ne.s32.totalorder %s256, %s258
      %p265 = scmp.eq.s32.totalorder %s40, 1
      %p266 = por %p264, %p265
      %p267 = scmp.ne.s32.totalorder %s258, %s259
      %p268 = scmp.eq.s32.totalorder %s40, 0
      %p269 = por %p267, %p268
      %p270 = scmp.ne.s32.totalorder %s258, %s259
      %p271 = scmp.eq.s32.totalorder %s41, 1
      %p272 = por %p270, %p271
      %p274 = scmp.ne.s32.totalorder %s259, %s273
      %p275 = scmp.eq.s32.totalorder %s41, 0
      %p276 = por %p274, %p275
      %s278 = sadd.s32 %s277, 1
      %p281 = scmp.eq.s32.totalorder %s35, 1
      %p282 = scmp.ne.s32.totalorder %s277, %s279
      %p283 = scmp.eq.s32.totalorder %s35, 0
      %p284 = por %p282, %p283
      %p285 = scmp.ne.s32.totalorder %s277, %s279
      %p286 = scmp.eq.s32.totalorder %s40, 1
      %p287 = por %p285, %p286
      %p288 = scmp.ne.s32.totalorder %s279, %s280
      %p289 = scmp.eq.s32.totalorder %s40, 0
      %p290 = por %p288, %p289
      %p291 = scmp.ne.s32.totalorder %s279, %s280
      %p292 = scmp.eq.s32.totalorder %s41, 1
      %p293 = por %p291, %p292
      %p295 = scmp.ne.s32.totalorder %s280, %s294
      %p296 = scmp.eq.s32.totalorder %s41, 0
      %p297 = por %p295, %p296
      %s299 = sadd.s32 %s298, 1
      %p302 = scmp.eq.s32.totalorder %s35, 1
      %p303 = scmp.ne.s32.totalorder %s298, %s300
      %p304 = scmp.eq.s32.totalorder %s35, 0
      %p305 = por %p303, %p304
      %p306 = scmp.ne.s32.totalorder %s298, %s300
      %p307 = scmp.eq.s32.totalorder %s40, 1
      %p308 = por %p306, %p307
      %p309 = scmp.ne.s32.totalorder %s300, %s301
      %p310 = scmp.eq.s32.totalorder %s40, 0
      %p311 = por %p309, %p310
      %p312 = scmp.ne.s32.totalorder %s300, %s301
      %p313 = scmp.eq.s32.totalorder %s41, 1
      %p314 = por %p312, %p313
      %p316 = scmp.ne.s32.totalorder %s301, %s315
      %p317 = scmp.eq.s32.totalorder %s41, 0
      %p318 = por %p316, %p317
      %s320 = sadd.s32 %s319, 1
      %p323 = scmp.eq.s32.totalorder %s35, 1
      %p324 = scmp.ne.s32.totalorder %s319, %s321
      %p325 = scmp.eq.s32.totalorder %s35, 0
      %p326 = por %p324, %p325
      %p327 = scmp.ne.s32.totalorder %s319, %s321
      %p328 = scmp.eq.s32.totalorder %s40, 1
      %p329 = por %p327, %p328
      %p330 = scmp.ne.s32.totalorder %s321, %s322
      %p331 = scmp.eq.s32.totalorder %s40, 0
      %p332 = por %p330, %p331
      %p333 = scmp.ne.s32.totalorder %s321, %s322
      %p334 = scmp.eq.s32.totalorder %s41, 1
      %p335 = por %p333, %p334
      %p337 = scmp.ne.s32.totalorder %s322, %s336
      %p338 = scmp.eq.s32.totalorder %s41, 0
      %p339 = por %p337, %p338
      %s341 = sadd.s32 %s340, 1
      %p344 = scmp.eq.s32.totalorder %s35, 1
      %p345 = scmp.ne.s32.totalorder %s340, %s342
      %p346 = scmp.eq.s32.totalorder %s35, 0
      %p347 = por %p345, %p346
      %p348 = scmp.ne.s32.totalorder %s340, %s342
      %p349 = scmp.eq.s32.totalorder %s40, 1
      %p350 = por %p348, %p349
      %p351 = scmp.ne.s32.totalorder %s342, %s343
      %p352 = scmp.eq.s32.totalorder %s40, 0
      %p353 = por %p351, %p352
      %p354 = scmp.ne.s32.totalorder %s342, %s343
      %p355 = scmp.eq.s32.totalorder %s41, 1
      %p356 = por %p354, %p355
      %p358 = scmp.ne.s32.totalorder %s343, %s357
      %p359 = scmp.eq.s32.totalorder %s41, 0
      %p360 = por %p358, %p359
      %s362 = sadd.s32 %s361, 1
      %p365 = scmp.eq.s32.totalorder %s35, 1
      %p366 = scmp.ne.s32.totalorder %s361, %s363
      %p367 = scmp.eq.s32.totalorder %s35, 0
      %p368 = por %p366, %p367
      %p369 = scmp.ne.s32.totalorder %s361, %s363
      %p370 = scmp.eq.s32.totalorder %s40, 1
      %p371 = por %p369, %p370
      %p372 = scmp.ne.s32.totalorder %s363, %s364
      %p373 = scmp.eq.s32.totalorder %s40, 0
      %p374 = por %p372, %p373
      %p375 = scmp.ne.s32.totalorder %s363, %s364
      %p376 = scmp.eq.s32.totalorder %s41, 1
      %p377 = por %p375, %p376
      %p379 = scmp.ne.s32.totalorder %s364, %s378
      %p380 = scmp.eq.s32.totalorder %s41, 0
      %p381 = por %p379, %p380
      %s383 = sadd.s32 %s382, 1
      %p386 = scmp.eq.s32.totalorder %s35, 1
      %p387 = scmp.ne.s32.totalorder %s382, %s384
      %p388 = scmp.eq.s32.totalorder %s35, 0
      %p389 = por %p387, %p388
      %p390 = scmp.ne.s32.totalorder %s382, %s384
      %p391 = scmp.eq.s32.totalorder %s40, 1
      %p392 = por %p390, %p391
      %p393 = scmp.ne.s32.totalorder %s384, %s385
      %p394 = scmp.eq.s32.totalorder %s40, 0
      %p395 = por %p393, %p394
      %p396 = scmp.ne.s32.totalorder %s384, %s385
      %p397 = scmp.eq.s32.totalorder %s41, 1
      %p398 = por %p396, %p397
      %p400 = scmp.ne.s32.totalorder %s385, %s399
      %p401 = scmp.eq.s32.totalorder %s41, 0
      %p402 = por %p400, %p401
      %s404 = sadd.s32 %s403, 1
      %p407 = scmp.eq.s32.totalorder %s35, 1
      %p408 = scmp.ne.s32.totalorder %s403, %s405
      %p409 = scmp.eq.s32.totalorder %s35, 0
      %p410 = por %p408, %p409
      %p411 = scmp.ne.s32.totalorder %s403, %s405
      %p412 = scmp.eq.s32.totalorder %s40, 1
      %p413 = por %p411, %p412
      %p414 = scmp.ne.s32.totalorder %s405, %s406
      %p415 = scmp.eq.s32.totalorder %s40, 0
      %p416 = por %p414, %p415
      %p417 = scmp.ne.s32.totalorder %s405, %s406
      %p418 = scmp.eq.s32.totalorder %s41, 1
      %p419 = por %p417, %p418
      %p421 = scmp.ne.s32.totalorder %s406, %s420
      %p422 = scmp.eq.s32.totalorder %s41, 0
      %p423 = por %p421, %p422
      %s425 = sadd.s32 %s424, 1
      %p428 = scmp.eq.s32.totalorder %s35, 1
      %p429 = scmp.ne.s32.totalorder %s424, %s426
      %p430 = scmp.eq.s32.totalorder %s35, 0
      %p431 = por %p429, %p430
      %p432 = scmp.ne.s32.totalorder %s424, %s426
      %p433 = scmp.eq.s32.totalorder %s40, 1
      %p434 = por %p432, %p433
      %p435 = scmp.ne.s32.totalorder %s426, %s427
      %p436 = scmp.eq.s32.totalorder %s40, 0
      %p437 = por %p435, %p436
      %p438 = scmp.ne.s32.totalorder %s426, %s427
      %p439 = scmp.eq.s32.totalorder %s41, 1
      %p440 = por %p438, %p439
      %p442 = scmp.ne.s32.totalorder %s427, %s441
      %p443 = scmp.eq.s32.totalorder %s41, 0
      %p444 = por %p442, %p443
      %s445 = ssub.s32 %s42, %s54
      %s446 = ssub.s32 %s43, %s50
      %s447 = sor.u32 %s445, %s446
      %p448 = scmp.eq.s32.totalorder %s447, 0
      %s450 = sadd.s32 %s449, 1
      %s451 = scalar_select %p448, %s449, %s450
      %p454 = pneg %p448
      %p455 = scmp.eq.s32.totalorder %s35, 1
      %p456 = por %p454, %p455
      %p457 = scmp.ne.s32.totalorder %s449, %s452
      %p458 = scmp.eq.s32.totalorder %s35, 0
      %p459 = por %p457, %p458
      %p460 = scmp.ne.s32.totalorder %s449, %s452
      %p461 = scmp.eq.s32.totalorder %s40, 1
      %p462 = por %p460, %p461
      %p463 = scmp.ne.s32.totalorder %s452, %s453
      %p464 = scmp.eq.s32.totalorder %s40, 0
      %p465 = por %p463, %p464
      %p466 = scmp.ne.s32.totalorder %s452, %s453
      %p467 = scmp.eq.s32.totalorder %s41, 1
      %p468 = por %p466, %p467
      %p470 = scmp.ne.s32.totalorder %s453, %s469
      %p471 = scmp.eq.s32.totalorder %s41, 0
      %p472 = por %p470, %p471
      %s473 = ssub.s32 %s42, %s54
      %s474 = ssub.s32 %s43, %s50
      %s475 = sor.u32 %s473, %s474
      %p476 = scmp.eq.s32.totalorder %s475, 0
      %s478 = sadd.s32 %s477, 1
      %s479 = scalar_select %p476, %s477, %s478
      %p482 = pneg %p476
      %p483 = scmp.eq.s32.totalorder %s35, 1
      %p484 = por %p482, %p483
      %p485 = scmp.ne.s32.totalorder %s477, %s480
      %p486 = scmp.eq.s32.totalorder %s35, 0
      %p487 = por %p485, %p486
      %p488 = scmp.ne.s32.totalorder %s477, %s480
      %p489 = scmp.eq.s32.totalorder %s40, 1
      %p490 = por %p488, %p489
      %p491 = scmp.ne.s32.totalorder %s480, %s481
      %p492 = scmp.eq.s32.totalorder %s40, 0
      %p493 = por %p491, %p492
      %p494 = scmp.ne.s32.totalorder %s480, %s481
      %p495 = scmp.eq.s32.totalorder %s41, 1
      %p496 = por %p494, %p495
      %p498 = scmp.ne.s32.totalorder %s481, %s497
      %p499 = scmp.eq.s32.totalorder %s41, 0
      %p500 = por %p498, %p499
      %p501 = scmp.le.s32.totalorder 1, %s35
      %p502 = scmp.lt.s32.totalorder %s35, 3
      %p503 = pnand %p501, %p502
      %p504 = pneg %p503
      // Predicated region
      $region9: #{tpu_custom_call.1} parent=5 // pred_check
        _
      $region10: #{tpu_custom_call.1} parent=5 // pred_check_branch
        %506 = sbr.rel (%p503) target = $region12
      $region11: #{tpu_custom_call.1} parent=5 // pred_region
        %s507 = ssub.s32 %s35, 1
        // Predicated region
        $region13: #{tpu_custom_call.1} parent=11 // pred_check
          %p508 = pneg %p122
        $region14: #{tpu_custom_call.1} parent=11 // pred_check_branch
          %510 = sbr.rel (%p508) target = $region16
        $region15: #{tpu_custom_call.1} parent=11 // pred_region
          _
        $region16: #{tpu_custom_call.1} parent=11 // pred_fallthru
          _
        // Predicated region
        $region17: #{tpu_custom_call.1} parent=11 // pred_check
          %p511 = pneg %p143
        $region18: #{tpu_custom_call.1} parent=11 // pred_check_branch
          %513 = sbr.rel (%p511) target = $region20
        $region19: #{tpu_custom_call.1} parent=11 // pred_region
          %s515 = ssub.s32 16, 16
          %516 = vsyncadd [#allocation5], %s515
          %s518 = sshll.u32 [#allocation4], 4
          %s519 = int_to_ptr.vmem [resolvable:$true] %s518
          %521 = dma.hbm_to_vmem [thread:$0]  %s3, 16, %s519, [#allocation5]
        $region20: #{tpu_custom_call.1} parent=11 // pred_fallthru
          _
        // Predicated region
        $region21: #{tpu_custom_call.1} parent=11 // pred_check
          %p522 = pneg %p164
        $region22: #{tpu_custom_call.1} parent=11 // pred_check_branch
          %524 = sbr.rel (%p522) target = $region24
        $region23: #{tpu_custom_call.1} parent=11 // pred_region
          _
        $region24: #{tpu_custom_call.1} parent=11 // pred_fallthru
          _
        // Predicated region
        $region25: #{tpu_custom_call.1} parent=11 // pred_check
          %p525 = pneg %p185
        $region26: #{tpu_custom_call.1} parent=11 // pred_check_branch
          %527 = sbr.rel (%p525) target = $region28
        $region27: #{tpu_custom_call.1} parent=11 // pred_region
          %s529 = ssub.s32 16, 16
          %530 = vsyncadd [#allocation8], %s529
          %s532 = sshll.u32 [#allocation7], 4
          %s533 = int_to_ptr.vmem [resolvable:$true] %s532
          %535 = dma.hbm_to_vmem [thread:$0]  %s5, 16, %s533, [#allocation8]
        $region28: #{tpu_custom_call.1} parent=11 // pred_fallthru
          _
        // Predicated region
        $region29: #{tpu_custom_call.1} parent=11 // pred_check
          %p536 = pneg %p206
        $region30: #{tpu_custom_call.1} parent=11 // pred_check_branch
          %538 = sbr.rel (%p536) target = $region32
        $region31: #{tpu_custom_call.1} parent=11 // pred_region
          _
        $region32: #{tpu_custom_call.1} parent=11 // pred_fallthru
          _
        // Predicated region
        $region33: #{tpu_custom_call.1} parent=11 // pred_check
          %p539 = pneg %p227
        $region34: #{tpu_custom_call.1} parent=11 // pred_check_branch
          %541 = sbr.rel (%p539) target = $region36
        $region35: #{tpu_custom_call.1} parent=11 // pred_region
          %s543 = ssub.s32 16, 16
          %544 = vsyncadd [#allocation8], %s543
          %s546 = sshll.u32 [#allocation9], 4
          %s547 = int_to_ptr.vmem [resolvable:$true] %s546
          %549 = dma.hbm_to_vmem [thread:$0]  %s7, 16, %s547, [#allocation8]
        $region36: #{tpu_custom_call.1} parent=11 // pred_fallthru
          _
        // Predicated region
        $region37: #{tpu_custom_call.1} parent=11 // pred_check
          %p550 = pneg %p248
        $region38: #{tpu_custom_call.1} parent=11 // pred_check_branch
          %552 = sbr.rel (%p550) target = $region40
        $region39: #{tpu_custom_call.1} parent=11 // pred_region
          %s554 = ssub.s32 256, 256
          %555 = vsyncadd [#allocation11], %s554
          %s556 = sshll.u32 [#allocation10], 4
          %s557 = int_to_ptr.vmem [resolvable:$true] %s556
          %562 = dma.hbm_to_vmem [thread:$0]  %s8, 256, %s557, [#allocation11], 64, 64, 4
        $region40: #{tpu_custom_call.1} parent=11 // pred_fallthru
          _
        // Predicated region
        $region41: #{tpu_custom_call.1} parent=11 // pred_check
          %p563 = pneg %p269
        $region42: #{tpu_custom_call.1} parent=11 // pred_check_branch
          %565 = sbr.rel (%p563) target = $region44
        $region43: #{tpu_custom_call.1} parent=11 // pred_region
          _
        $region44: #{tpu_custom_call.1} parent=11 // pred_fallthru
          _
        // Predicated region
        $region45: #{tpu_custom_call.1} parent=11 // pred_check
          %p566 = pneg %p290
        $region46: #{tpu_custom_call.1} parent=11 // pred_check_branch
          %568 = sbr.rel (%p566) target = $region48
        $region47: #{tpu_custom_call.1} parent=11 // pred_region
          _
        $region48: #{tpu_custom_call.1} parent=11 // pred_fallthru
          _
        // Predicated region
        $region49: #{tpu_custom_call.1} parent=11 // pred_check
          %p569 = pneg %p311
        $region50: #{tpu_custom_call.1} parent=11 // pred_check_branch
          %571 = sbr.rel (%p569) target = $region52
        $region51: #{tpu_custom_call.1} parent=11 // pred_region
          _
        $region52: #{tpu_custom_call.1} parent=11 // pred_fallthru
          _
        // Predicated region
        $region53: #{tpu_custom_call.1} parent=11 // pred_check
          %p572 = pneg %p332
        $region54: #{tpu_custom_call.1} parent=11 // pred_check_branch
          %574 = sbr.rel (%p572) target = $region56
        $region55: #{tpu_custom_call.1} parent=11 // pred_region
          %s576 = ssub.s32 256, 256
          %577 = vsyncadd [#allocation11], %s576
          %s578 = sshll.u32 [#allocation12], 4
          %s579 = int_to_ptr.vmem [resolvable:$true] %s578
          %584 = dma.hbm_to_vmem [thread:$0]  %s12, 256, %s579, [#allocation11], 64, 64, 4
        $region56: #{tpu_custom_call.1} parent=11 // pred_fallthru
          _
        // Predicated region
        $region57: #{tpu_custom_call.1} parent=11 // pred_check
          %p585 = pneg %p353
        $region58: #{tpu_custom_call.1} parent=11 // pred_check_branch
          %587 = sbr.rel (%p585) target = $region60
        $region59: #{tpu_custom_call.1} parent=11 // pred_region
          _
        $region60: #{tpu_custom_call.1} parent=11 // pred_fallthru
          _
        // Predicated region
        $region61: #{tpu_custom_call.1} parent=11 // pred_check
          %p588 = pneg %p374
        $region62: #{tpu_custom_call.1} parent=11 // pred_check_branch
          %590 = sbr.rel (%p588) target = $region64
        $region63: #{tpu_custom_call.1} parent=11 // pred_region
          _
        $region64: #{tpu_custom_call.1} parent=11 // pred_fallthru
          _
        // Predicated region
        $region65: #{tpu_custom_call.1} parent=11 // pred_check
          %p591 = pneg %p395
        $region66: #{tpu_custom_call.1} parent=11 // pred_check_branch
          %593 = sbr.rel (%p591) target = $region68
        $region67: #{tpu_custom_call.1} parent=11 // pred_region
          _
        $region68: #{tpu_custom_call.1} parent=11 // pred_fallthru
          _
        // Predicated region
        $region69: #{tpu_custom_call.1} parent=11 // pred_check
          %p594 = pneg %p416
        $region70: #{tpu_custom_call.1} parent=11 // pred_check_branch
          %596 = sbr.rel (%p594) target = $region72
        $region71: #{tpu_custom_call.1} parent=11 // pred_region
          _
        $region72: #{tpu_custom_call.1} parent=11 // pred_fallthru
          _
        // Predicated region
        $region73: #{tpu_custom_call.1} parent=11 // pred_check
          %p597 = pneg %p437
        $region74: #{tpu_custom_call.1} parent=11 // pred_check_branch
          %599 = sbr.rel (%p597) target = $region76
        $region75: #{tpu_custom_call.1} parent=11 // pred_region
          _
        $region76: #{tpu_custom_call.1} parent=11 // pred_fallthru
          _
      $region12: #{tpu_custom_call.1} parent=5 // pred_fallthru
        _
      %p600 = scmp.lt.s32.totalorder %s35, 2
      // Predicated region
      $region77: #{tpu_custom_call.1} parent=5 // pred_check
        %p601 = pneg %p600
      $region78: #{tpu_custom_call.1} parent=5 // pred_check_branch
        %603 = sbr.rel (%p601) target = $region80
      $region79: #{tpu_custom_call.1} parent=5 // pred_region
        // Predicated region
        $region81: #{tpu_custom_call.1} parent=79 // pred_check
          %p604 = pneg %p67
        $region82: #{tpu_custom_call.1} parent=79 // pred_check_branch
          %606 = sbr.rel (%p604) target = $region84
        $region83: #{tpu_custom_call.1} parent=79 // pred_region
          %p607 = scmp.lt.s32.totalorder %s42, 1
          %s608 = scalar_select %p607, %s42, 1
          %s609 = smul.addr %s608, 8
          %s610 = scalar_lea.vmem %s0, %s609
        $region84: #{tpu_custom_call.1} parent=79 // pred_fallthru
          _
        // Predicated region
        $region85: #{tpu_custom_call.1} parent=79 // pred_check
          %p611 = pneg %p95
        $region86: #{tpu_custom_call.1} parent=79 // pred_check_branch
          %613 = sbr.rel (%p611) target = $region88
        $region87: #{tpu_custom_call.1} parent=79 // pred_region
          %p614 = scmp.lt.s32.totalorder %s42, 1
          %s615 = scalar_select %p614, %s42, 1
          %p616 = scmp.lt.s32.totalorder %s43, 0
          %s617 = scalar_select %p616, %s43, 0
          %s618 = sadd.s32 %s617, %s615
          %s619 = smul.addr %s618, 8
          %s620 = scalar_lea.vmem %s1, %s619
        $region88: #{tpu_custom_call.1} parent=79 // pred_fallthru
          _
      $region80: #{tpu_custom_call.1} parent=5 // pred_fallthru
        _
      %p621 = scmp.le.s32.totalorder 1, %s35
      %p622 = scmp.lt.s32.totalorder %s35, 3
      %p623 = pnand %p621, %p622
      %p624 = pneg %p623
      // Predicated region
      $region89: #{tpu_custom_call.1} parent=5 // pred_check
        _
      $region90: #{tpu_custom_call.1} parent=5 // pred_check_branch
        %626 = sbr.rel (%p623) target = $region92
      $region91: #{tpu_custom_call.1} parent=5 // pred_region
        %s627 = ssub.s32 %s35, 1
        // Predicated region
        $region93: #{tpu_custom_call.1} parent=91 // pred_check
          %p628 = pneg %p143
        $region94: #{tpu_custom_call.1} parent=91 // pred_check_branch
          %630 = sbr.rel (%p628) target = $region96
        $region95: #{tpu_custom_call.1} parent=91 // pred_region
          %631 = dma.done [#allocation5], 16
        $region96: #{tpu_custom_call.1} parent=91 // pred_fallthru
          _
        // Predicated region
        $region97: #{tpu_custom_call.1} parent=91 // pred_check
          %p632 = pneg %p185
        $region98: #{tpu_custom_call.1} parent=91 // pred_check_branch
          %634 = sbr.rel (%p632) target = $region100
        $region99: #{tpu_custom_call.1} parent=91 // pred_region
          %635 = dma.done [#allocation8], 16
        $region100: #{tpu_custom_call.1} parent=91 // pred_fallthru
          _
        // Predicated region
        $region101: #{tpu_custom_call.1} parent=91 // pred_check
          %p636 = pneg %p227
        $region102: #{tpu_custom_call.1} parent=91 // pred_check_branch
          %638 = sbr.rel (%p636) target = $region104
        $region103: #{tpu_custom_call.1} parent=91 // pred_region
          %639 = dma.done [#allocation8], 16
        $region104: #{tpu_custom_call.1} parent=91 // pred_fallthru
          _
        // Predicated region
        $region105: #{tpu_custom_call.1} parent=91 // pred_check
          %p640 = pneg %p248
        $region106: #{tpu_custom_call.1} parent=91 // pred_check_branch
          %642 = sbr.rel (%p640) target = $region108
        $region107: #{tpu_custom_call.1} parent=91 // pred_region
          %643 = dma.done [#allocation11], 256
        $region108: #{tpu_custom_call.1} parent=91 // pred_fallthru
          _
        // Predicated region
        $region109: #{tpu_custom_call.1} parent=91 // pred_check
          %p644 = pneg %p332
        $region110: #{tpu_custom_call.1} parent=91 // pred_check_branch
          %646 = sbr.rel (%p644) target = $region112
        $region111: #{tpu_custom_call.1} parent=91 // pred_region
          %647 = dma.done [#allocation11], 256
        $region112: #{tpu_custom_call.1} parent=91 // pred_fallthru
          _
        %p648 = scmp.lt.s32.totalorder %s44, 1
        %s649 = scalar_select %p648, %s44, 1
        %s650 = smul.addr %s649, 8
        %s651 = scalar_lea.vmem %s0, %s650
        %p652 = pneg %p73
        %p653 = pneg %p70
        %p654 = scmp.lt.s32.totalorder %s44, 1
        %s655 = scalar_select %p654, %s44, 1
        %p656 = scmp.lt.s32.totalorder %s45, 0
        %s657 = scalar_select %p656, %s45, 0
        %s658 = sadd.s32 %s657, %s655
        %s659 = smul.addr %s658, 8
        %s660 = scalar_lea.vmem %s1, %s659
        %p661 = pneg %p101
        %p662 = pneg %p98
        %p663 = pneg %p122
        %p664 = pneg %p119
        %p665 = pneg %p143
        %p666 = pneg %p140
        %p667 = pneg %p164
        %p668 = pneg %p161
        %p669 = pneg %p185
        %p670 = pneg %p182
        %p671 = pneg %p206
        %p672 = pneg %p203
        %p673 = pneg %p227
        %p674 = pneg %p224
        %p675 = pneg %p248
        %p676 = pneg %p245
        %p677 = pneg %p269
        %p678 = pneg %p266
        %p679 = pneg %p290
        %p680 = pneg %p287
        %p681 = pneg %p311
        %p682 = pneg %p308
        %p683 = pneg %p332
        %p684 = pneg %p329
        %p685 = pneg %p353
        %p686 = pneg %p350
        %p687 = pneg %p374
        %p688 = pneg %p371
        %p689 = pneg %p395
        %p690 = pneg %p392
        %p691 = pneg %p416
        %p692 = pneg %p413
        %p693 = pneg %p437
        %p694 = pneg %p434
        %p695 = pneg %p465
        %p696 = pneg %p462
        %s697 = sand.u32 %s452, 1
        %s698 = scalar_lea.sflag [#allocation6], %s697
        %s699 = sand.u32 %s452, 1
        %s700 = smul.addr %s699, 8
        %s701 = scalar_lea.vmem [#allocation13], %s700
        %p702 = pneg %p493
        %p703 = pneg %p490
        %s704 = sand.u32 %s480, 1
        %s705 = scalar_lea.sflag [#allocation15], %s704
        %s706 = sand.u32 %s480, 1
        %s707 = smul.addr %s706, 16
        %s708 = scalar_lea.vmem [#allocation14], %s707
        %p709 = scmp.lt.s32.totalorder %s44, 1
        %s710 = scalar_select %p709, %s44, 1
        %s711 = smul.addr %s710, 8
        %s712 = scalar_lea.vmem %s0, %s711
        %p713 = scmp.lt.s32.totalorder %s44, 1
        %s714 = scalar_select %p713, %s44, 1
        %p715 = scmp.lt.s32.totalorder %s45, 0
        %s716 = scalar_select %p715, %s45, 0
        %s717 = sadd.s32 %s716, %s714
        %s718 = smul.addr %s717, 8
        %s719 = scalar_lea.vmem %s1, %s718
        %p721 = scmp.eq.s32.totalorder %s45, 0
        // Predicated region
        $region113: #{tpu_custom_call.1} parent=91 // pred_check
          %p722 = pneg %p721
        $region114: #{tpu_custom_call.1} parent=91 // pred_check_branch
          %724 = sbr.rel (%p722) target = $region116
        $region115: #{tpu_custom_call.1} parent=91 // pred_region
          %v725 = vld [vmem:[%s712] sm:$0xff]
          %v726 = vpack.c.bf16 %v725, %v725
          %v727 = vld [vmem:[%s4] sm:$0xf]
          %v728 = vld [vmem:[%s4 + $0x4] sm:$0xf]
          %v729 = vld [vmem:[%s4 + $0x8] sm:$0xf]
          %v730 = vld [vmem:[%s4 + $0xc] sm:$0xf]
          %v731 = vld [vmem:[#allocation7] sm:$0x1]
          %v733 = vlaneseq
          %v734 = vshrl.u32 %v733, 7
          %v735 = vsub.s32 0, %v734
          %v736 = vrot.slane %v731, %v735
          %v742 = vunpack.c.l.b16 %v727
          %v743 = vunpack.c.l.b16 %v728
          %v744 = vunpack.c.l.b16 %v729
          %v745 = vunpack.c.l.b16 %v730
          %v746 = vpack.c.b16 %v743, %v742
          %v747 = vpack.c.b16 %v745, %v744
          %vm750 = vcmask 261120
          %v752 = vsel %vm750, %v726, 0
          %754 = vmatprep.subr.bf16.mxu0 0
          %755 = vmatpush1.bf16.msra.mxu0 0
          %756 = vmatprep.subr.bf16.mxu0 0
          %757 = vmatpush1.bf16.msra.mxu0 0
          %758 = vmatprep.subr.bf16.mxu0 0
          %759 = vmatpush1.bf16.msra.mxu0 0
          %760 = vmatprep.subr.bf16.mxu0 0
          %761 = vmatpush1.bf16.msra.mxu0 0
          %762 = vmatprep.subr.bf16.mxu0 0
          %763 = vmatpush1.bf16.msra.mxu0 0
          %764 = vmatprep.subr.bf16.mxu0 0
          %765 = vmatpush1.bf16.msra.mxu0 0
          %766 = vmatprep.subr.bf16.mxu0 0
          %767 = vmatpush1.bf16.msra.mxu0 %v747
          %768 = vmatprep.subr.bf16.mxu0 0
          %769 = vmatpush1.bf16.msra.mxu0 %v746
          %770 = vmatprep.subr.bf16.mxu0 0
          %771 = vmatpush2.bf16.msra.mxu0 0
          %772 = vmatprep.subr.bf16.mxu0 0
          %773 = vmatpush2.bf16.msra.mxu0 0
          %774 = vmatprep.subr.bf16.mxu0 0
          %775 = vmatpush2.bf16.msra.mxu0 0
          %776 = vmatprep.subr.bf16.mxu0 0
          %777 = vmatpush2.bf16.msra.mxu0 0
          %778 = vmatprep.subr.bf16.mxu0 0
          %779 = vmatpush2.bf16.msra.mxu0 0
          %780 = vmatprep.subr.bf16.mxu0 0
          %781 = vmatpush2.bf16.msra.mxu0 0
          %782 = vmatprep.subr.bf16.mxu0 0
          %783 = vmatpush2.bf16.msra.mxu0 0
          %784 = vmatprep.subr.bf16.mxu0 0
          %785 = vmatpush2.bf16.msra.mxu0 0
          %786 = vmatprep.mubr.bf16.mxu0 0
          %787 = vmatmul.mubr.bf16.gmra.mxu0 %v752
          %v788 = vpop.f32.mrf.mxu0
          %v789 = vadd.f32 %v736, %v788
          %v790 = vpop.f32.mrf.mxu0
          %v791 = vpop.f32.mrf.mxu0
          %v792 = vpop.f32.mrf.mxu0
          %793 = vdwg.mxu0
          %v794 = vld [vmem:[%s6] sm:$0xf]
          %v795 = vld [vmem:[%s6 + $0x4] sm:$0xf]
          %v796 = vld [vmem:[%s6 + $0x8] sm:$0xf]
          %v797 = vld [vmem:[%s6 + $0xc] sm:$0xf]
          %v798 = vld [vmem:[#allocation9] sm:$0x1]
          %v800 = vlaneseq
          %v801 = vshrl.u32 %v800, 7
          %v802 = vsub.s32 0, %v801
          %v803 = vrot.slane %v798, %v802
          %v809 = vunpack.c.l.b16 %v794
          %v810 = vunpack.c.l.b16 %v795
          %v811 = vunpack.c.l.b16 %v796
          %v812 = vunpack.c.l.b16 %v797
          %v813 = vpack.c.b16 %v810, %v809
          %v814 = vpack.c.b16 %v812, %v811
          %817 = vmatprep.subr.bf16.mxu0 0
          %818 = vmatpush1.bf16.msra.mxu0 0
          %819 = vmatprep.subr.bf16.mxu0 0
          %820 = vmatpush1.bf16.msra.mxu0 0
          %821 = vmatprep.subr.bf16.mxu0 0
          %822 = vmatpush1.bf16.msra.mxu0 0
          %823 = vmatprep.subr.bf16.mxu0 0
          %824 = vmatpush1.bf16.msra.mxu0 0
          %825 = vmatprep.subr.bf16.mxu0 0
          %826 = vmatpush1.bf16.msra.mxu0 0
          %827 = vmatprep.subr.bf16.mxu0 0
          %828 = vmatpush1.bf16.msra.mxu0 0
          %829 = vmatprep.subr.bf16.mxu0 0
          %830 = vmatpush1.bf16.msra.mxu0 %v814
          %831 = vmatprep.subr.bf16.mxu0 0
          %832 = vmatpush1.bf16.msra.mxu0 %v813
          %833 = vmatprep.subr.bf16.mxu0 0
          %834 = vmatpush2.bf16.msra.mxu0 0
          %835 = vmatprep.subr.bf16.mxu0 0
          %836 = vmatpush2.bf16.msra.mxu0 0
          %837 = vmatprep.subr.bf16.mxu0 0
          %838 = vmatpush2.bf16.msra.mxu0 0
          %839 = vmatprep.subr.bf16.mxu0 0
          %840 = vmatpush2.bf16.msra.mxu0 0
          %841 = vmatprep.subr.bf16.mxu0 0
          %842 = vmatpush2.bf16.msra.mxu0 0
          %843 = vmatprep.subr.bf16.mxu0 0
          %844 = vmatpush2.bf16.msra.mxu0 0
          %845 = vmatprep.subr.bf16.mxu0 0
          %846 = vmatpush2.bf16.msra.mxu0 0
          %847 = vmatprep.subr.bf16.mxu0 0
          %848 = vmatpush2.bf16.msra.mxu0 0
          %849 = vmatprep.mubr.bf16.mxu0 0
          %850 = vmatmul.mubr.bf16.gmra.mxu0 %v752
          %v851 = vpop.f32.mrf.mxu0
          %v852 = vadd.f32 %v803, %v851
          %v853 = vpop.f32.mrf.mxu0
          %v854 = vpop.f32.mrf.mxu0
          %v855 = vpop.f32.mrf.mxu0
          %856 = vdwg.mxu0
          %858 = vrot.lane.b32.xlu0 %v789, 120
          %v859 = vpop.permute.xlu0 %858
          %861 = vrot.lane.b32.xlu0 %v789, 112
          %v862 = vpop.permute.xlu0 %861
          %864 = vrot.lane.b32.xlu0 %v789, 104
          %v865 = vpop.permute.xlu0 %864
          %v867 = vcombine.low %v789, %v862
          %v868 = vcombine.high %v789, %v862
          %v870 = vunpack.c.l.s4 1983009808
          %v871 = vunpack.c.0.s8 %v870
          %v872 = vlaneseq
          %v873 = vshrl.u32 %v872, 7
          %v874 = vsub.s32 %v871, %v873
          %v875 = vrot.slane %v867, %v874
          %v877 = vunpack.c.l.s4 1983009808
          %v878 = vunpack.c.0.s8 %v877
          %v879 = vlaneseq
          %v880 = vshrl.u32 %v879, 7
          %v881 = vsub.s32 %v878, %v880
          %v882 = vrot.slane %v868, %v881
          %v883 = vcombine.low %v859, %v865
          %v884 = vcombine.high %v859, %v865
          %v886 = vunpack.c.l.s4 1983009808
          %v887 = vunpack.c.0.s8 %v886
          %v888 = vlaneseq
          %v889 = vshrl.u32 %v888, 7
          %v890 = vsub.s32 %v887, %v889
          %v891 = vrot.slane %v883, %v890
          %v893 = vunpack.c.l.s4 1983009808
          %v894 = vunpack.c.0.s8 %v893
          %v895 = vlaneseq
          %v896 = vshrl.u32 %v895, 7
          %v897 = vsub.s32 %v894, %v896
          %v898 = vrot.slane %v884, %v897
          %v899 = vcombine.low %v875, %v891
          %v900 = vcombine.high %v875, %v891
          %v902 = vunpack.c.l.s4 1934713408
          %v903 = vunpack.c.0.s8 %v902
          %v904 = vlaneseq
          %v905 = vshrl.u32 %v904, 7
          %v906 = vsub.s32 %v903, %v905
          %v907 = vrot.slane %v899, %v906
          %v909 = vunpack.c.l.s4 1934713408
          %v910 = vunpack.c.0.s8 %v909
          %v911 = vlaneseq
          %v912 = vshrl.u32 %v911, 7
          %v913 = vsub.s32 %v910, %v912
          %v914 = vrot.slane %v900, %v913
          %v915 = vcombine.low %v882, %v898
          %v916 = vcombine.high %v882, %v898
          %v918 = vunpack.c.l.s4 1934713408
          %v919 = vunpack.c.0.s8 %v918
          %v920 = vlaneseq
          %v921 = vshrl.u32 %v920, 7
          %v922 = vsub.s32 %v919, %v921
          %v923 = vrot.slane %v915, %v922
          %v925 = vunpack.c.l.s4 1934713408
          %v926 = vunpack.c.0.s8 %v925
          %v927 = vlaneseq
          %v928 = vshrl.u32 %v927, 7
          %v929 = vsub.s32 %v926, %v928
          %v930 = vrot.slane %v916, %v929
          %v931 = vcombine.high %v907, 0.0
          %v932 = vcombine.high %v914, 0.0
          %v933 = vcombine.high %v923, 0.0
          %v934 = vcombine.high %v930, 0.0
          %v935 = vcombine.low %v907, %v914
          %v937 = vunpack.c.l.s4 1983009808
          %v938 = vunpack.c.0.s8 %v937
          %v939 = vlaneseq
          %v940 = vshrl.u32 %v939, 7
          %v941 = vsub.s32 %v938, %v940
          %v942 = vrot.slane %v935, %v941
          %v943 = vcombine.low %v931, %v932
          %v945 = vunpack.c.l.s4 1983009808
          %v946 = vunpack.c.0.s8 %v945
          %v947 = vlaneseq
          %v948 = vshrl.u32 %v947, 7
          %v949 = vsub.s32 %v946, %v948
          %v950 = vrot.slane %v943, %v949
          %v951 = vcombine.low %v923, %v930
          %v953 = vunpack.c.l.s4 1983009808
          %v954 = vunpack.c.0.s8 %v953
          %v955 = vlaneseq
          %v956 = vshrl.u32 %v955, 7
          %v957 = vsub.s32 %v954, %v956
          %v958 = vrot.slane %v951, %v957
          %v959 = vcombine.low %v933, %v934
          %v961 = vunpack.c.l.s4 1983009808
          %v962 = vunpack.c.0.s8 %v961
          %v963 = vlaneseq
          %v964 = vshrl.u32 %v963, 7
          %v965 = vsub.s32 %v962, %v964
          %v966 = vrot.slane %v959, %v965
          %v967 = vcombine.low %v942, %v950
          %v968 = vcombine.high %v942, %v950
          %v970 = vunpack.c.l.s4 1934713408
          %v971 = vunpack.c.0.s8 %v970
          %v972 = vlaneseq
          %v973 = vshrl.u32 %v972, 7
          %v974 = vsub.s32 %v971, %v973
          %v975 = vrot.slane %v967, %v974
          %v977 = vunpack.c.l.s4 1934713408
          %v978 = vunpack.c.0.s8 %v977
          %v979 = vlaneseq
          %v980 = vshrl.u32 %v979, 7
          %v981 = vsub.s32 %v978, %v980
          %v982 = vrot.slane %v968, %v981
          %v983 = vcombine.low %v958, %v966
          %v984 = vcombine.high %v958, %v966
          %v986 = vunpack.c.l.s4 1934713408
          %v987 = vunpack.c.0.s8 %v986
          %v988 = vlaneseq
          %v989 = vshrl.u32 %v988, 7
          %v990 = vsub.s32 %v987, %v989
          %v991 = vrot.slane %v983, %v990
          %v993 = vunpack.c.l.s4 1934713408
          %v994 = vunpack.c.0.s8 %v993
          %v995 = vlaneseq
          %v996 = vshrl.u32 %v995, 7
          %v997 = vsub.s32 %v994, %v996
          %v998 = vrot.slane %v984, %v997
          %v999 = vcombine.low %v975, %v991
          %v1000 = vcombine.high %v975, %v991
          %v1001 = vcombine.low %v982, %v998
          %v1002 = vcombine.high %v982, %v998
          %v1003 = vpack.c.bf16 %v999, %v999
          %v1004 = vpack.c.bf16 %v1000, %v1000
          %v1005 = vpack.c.bf16 %v1001, %v1001
          %v1006 = vpack.c.bf16 %v1002, %v1002
          %vm1007 = vcmask 60416
          %1008 = vst.msk [vmem:[#allocation2] sm:$0xf] %vm1007, %v1003
          %1009 = vst.msk [vmem:[#allocation2 + $0x4] sm:$0xf] %vm1007, %v1004
          %1010 = vst.msk [vmem:[#allocation2 + $0x8] sm:$0xf] %vm1007, %v1005
          %1011 = vst.msk [vmem:[#allocation2 + $0xc] sm:$0xf] %vm1007, %v1006
          %1013 = vrot.lane.b32.xlu0 %v852, 120
          %v1014 = vpop.permute.xlu0 %1013
          %1016 = vrot.lane.b32.xlu0 %v852, 112
          %v1017 = vpop.permute.xlu0 %1016
          %1019 = vrot.lane.b32.xlu0 %v852, 104
          %v1020 = vpop.permute.xlu0 %1019
          %v1022 = vcombine.low %v852, %v1017
          %v1023 = vcombine.high %v852, %v1017
          %v1025 = vunpack.c.l.s4 1983009808
          %v1026 = vunpack.c.0.s8 %v1025
          %v1027 = vlaneseq
          %v1028 = vshrl.u32 %v1027, 7
          %v1029 = vsub.s32 %v1026, %v1028
          %v1030 = vrot.slane %v1022, %v1029
          %v1032 = vunpack.c.l.s4 1983009808
          %v1033 = vunpack.c.0.s8 %v1032
          %v1034 = vlaneseq
          %v1035 = vshrl.u32 %v1034, 7
          %v1036 = vsub.s32 %v1033, %v1035
          %v1037 = vrot.slane %v1023, %v1036
          %v1038 = vcombine.low %v1014, %v1020
          %v1039 = vcombine.high %v1014, %v1020
          %v1041 = vunpack.c.l.s4 1983009808
          %v1042 = vunpack.c.0.s8 %v1041
          %v1043 = vlaneseq
          %v1044 = vshrl.u32 %v1043, 7
          %v1045 = vsub.s32 %v1042, %v1044
          %v1046 = vrot.slane %v1038, %v1045
          %v1048 = vunpack.c.l.s4 1983009808
          %v1049 = vunpack.c.0.s8 %v1048
          %v1050 = vlaneseq
          %v1051 = vshrl.u32 %v1050, 7
          %v1052 = vsub.s32 %v1049, %v1051
          %v1053 = vrot.slane %v1039, %v1052
          %v1054 = vcombine.low %v1030, %v1046
          %v1055 = vcombine.high %v1030, %v1046
          %v1057 = vunpack.c.l.s4 1934713408
          %v1058 = vunpack.c.0.s8 %v1057
          %v1059 = vlaneseq
          %v1060 = vshrl.u32 %v1059, 7
          %v1061 = vsub.s32 %v1058, %v1060
          %v1062 = vrot.slane %v1054, %v1061
          %v1064 = vunpack.c.l.s4 1934713408
          %v1065 = vunpack.c.0.s8 %v1064
          %v1066 = vlaneseq
          %v1067 = vshrl.u32 %v1066, 7
          %v1068 = vsub.s32 %v1065, %v1067
          %v1069 = vrot.slane %v1055, %v1068
          %v1070 = vcombine.low %v1037, %v1053
          %v1071 = vcombine.high %v1037, %v1053
          %v1073 = vunpack.c.l.s4 1934713408
          %v1074 = vunpack.c.0.s8 %v1073
          %v1075 = vlaneseq
          %v1076 = vshrl.u32 %v1075, 7
          %v1077 = vsub.s32 %v1074, %v1076
          %v1078 = vrot.slane %v1070, %v1077
          %v1080 = vunpack.c.l.s4 1934713408
          %v1081 = vunpack.c.0.s8 %v1080
          %v1082 = vlaneseq
          %v1083 = vshrl.u32 %v1082, 7
          %v1084 = vsub.s32 %v1081, %v1083
          %v1085 = vrot.slane %v1071, %v1084
          %v1086 = vcombine.high %v1062, 0.0
          %v1087 = vcombine.high %v1069, 0.0
          %v1088 = vcombine.high %v1078, 0.0
          %v1089 = vcombine.high %v1085, 0.0
          %v1090 = vcombine.low %v1062, %v1069
          %v1092 = vunpack.c.l.s4 1983009808
          %v1093 = vunpack.c.0.s8 %v1092
          %v1094 = vlaneseq
          %v1095 = vshrl.u32 %v1094, 7
          %v1096 = vsub.s32 %v1093, %v1095
          %v1097 = vrot.slane %v1090, %v1096
          %v1098 = vcombine.low %v1086, %v1087
          %v1100 = vunpack.c.l.s4 1983009808
          %v1101 = vunpack.c.0.s8 %v1100
          %v1102 = vlaneseq
          %v1103 = vshrl.u32 %v1102, 7
          %v1104 = vsub.s32 %v1101, %v1103
          %v1105 = vrot.slane %v1098, %v1104
          %v1106 = vcombine.low %v1078, %v1085
          %v1108 = vunpack.c.l.s4 1983009808
          %v1109 = vunpack.c.0.s8 %v1108
          %v1110 = vlaneseq
          %v1111 = vshrl.u32 %v1110, 7
          %v1112 = vsub.s32 %v1109, %v1111
          %v1113 = vrot.slane %v1106, %v1112
          %v1114 = vcombine.low %v1088, %v1089
          %v1116 = vunpack.c.l.s4 1983009808
          %v1117 = vunpack.c.0.s8 %v1116
          %v1118 = vlaneseq
          %v1119 = vshrl.u32 %v1118, 7
          %v1120 = vsub.s32 %v1117, %v1119
          %v1121 = vrot.slane %v1114, %v1120
          %v1122 = vcombine.low %v1097, %v1105
          %v1123 = vcombine.high %v1097, %v1105
          %v1125 = vunpack.c.l.s4 1934713408
          %v1126 = vunpack.c.0.s8 %v1125
          %v1127 = vlaneseq
          %v1128 = vshrl.u32 %v1127, 7
          %v1129 = vsub.s32 %v1126, %v1128
          %v1130 = vrot.slane %v1122, %v1129
          %v1132 = vunpack.c.l.s4 1934713408
          %v1133 = vunpack.c.0.s8 %v1132
          %v1134 = vlaneseq
          %v1135 = vshrl.u32 %v1134, 7
          %v1136 = vsub.s32 %v1133, %v1135
          %v1137 = vrot.slane %v1123, %v1136
          %v1138 = vcombine.low %v1113, %v1121
          %v1139 = vcombine.high %v1113, %v1121
          %v1141 = vunpack.c.l.s4 1934713408
          %v1142 = vunpack.c.0.s8 %v1141
          %v1143 = vlaneseq
          %v1144 = vshrl.u32 %v1143, 7
          %v1145 = vsub.s32 %v1142, %v1144
          %v1146 = vrot.slane %v1138, %v1145
          %v1148 = vunpack.c.l.s4 1934713408
          %v1149 = vunpack.c.0.s8 %v1148
          %v1150 = vlaneseq
          %v1151 = vshrl.u32 %v1150, 7
          %v1152 = vsub.s32 %v1149, %v1151
          %v1153 = vrot.slane %v1139, %v1152
          %v1154 = vcombine.low %v1130, %v1146
          %v1155 = vcombine.high %v1130, %v1146
          %v1156 = vcombine.low %v1137, %v1153
          %v1157 = vcombine.high %v1137, %v1153
          %v1158 = vpack.c.bf16 %v1154, %v1154
          %v1159 = vpack.c.bf16 %v1155, %v1155
          %v1160 = vpack.c.bf16 %v1156, %v1156
          %v1161 = vpack.c.bf16 %v1157, %v1157
          %1162 = vst.msk [vmem:[#allocation3] sm:$0xf] %vm1007, %v1158
          %1163 = vst.msk [vmem:[#allocation3 + $0x4] sm:$0xf] %vm1007, %v1159
          %1164 = vst.msk [vmem:[#allocation3 + $0x8] sm:$0xf] %vm1007, %v1160
          %1165 = vst.msk [vmem:[#allocation3 + $0xc] sm:$0xf] %vm1007, %v1161
        $region116: #{tpu_custom_call.1} parent=91 // pred_fallthru
          _
        %v1166 = vld [vmem:[%s712] sm:$0xff]
        %v1167 = vld [vmem:[%s719] sm:$0xff]
        %v1168 = vpack.c.bf16 %v1166, %v1166
        %v1169 = vld [vmem:[%s2] sm:$0xf]
        %v1170 = vld [vmem:[%s2 + $0x4] sm:$0xf]
        %v1171 = vld [vmem:[%s2 + $0x8] sm:$0xf]
        %v1172 = vld [vmem:[%s2 + $0xc] sm:$0xf]
        %v1173 = vld [vmem:[#allocation4] sm:$0x1]
        %v1175 = vlaneseq
        %v1176 = vshrl.u32 %v1175, 7
        %v1177 = vsub.s32 0, %v1176
        %v1178 = vrot.slane %v1173, %v1177
        %v1184 = vunpack.c.l.b16 %v1169
        %v1185 = vunpack.c.l.b16 %v1170
        %v1186 = vunpack.c.l.b16 %v1171
        %v1187 = vunpack.c.l.b16 %v1172
        %v1188 = vpack.c.b16 %v1185, %v1184
        %v1189 = vpack.c.b16 %v1187, %v1186
        %vm1192 = vcmask 261120
        %v1194 = vsel %vm1192, %v1168, 0
        %1196 = vmatprep.subr.bf16.mxu0 0
        %1197 = vmatpush1.bf16.msra.mxu0 0
        %1198 = vmatprep.subr.bf16.mxu0 0
        %1199 = vmatpush1.bf16.msra.mxu0 0
        %1200 = vmatprep.subr.bf16.mxu0 0
        %1201 = vmatpush1.bf16.msra.mxu0 0
        %1202 = vmatprep.subr.bf16.mxu0 0
        %1203 = vmatpush1.bf16.msra.mxu0 0
        %1204 = vmatprep.subr.bf16.mxu0 0
        %1205 = vmatpush1.bf16.msra.mxu0 0
        %1206 = vmatprep.subr.bf16.mxu0 0
        %1207 = vmatpush1.bf16.msra.mxu0 0
        %1208 = vmatprep.subr.bf16.mxu0 0
        %1209 = vmatpush1.bf16.msra.mxu0 %v1189
        %1210 = vmatprep.subr.bf16.mxu0 0
        %1211 = vmatpush1.bf16.msra.mxu0 %v1188
        %1212 = vmatprep.subr.bf16.mxu0 0
        %1213 = vmatpush2.bf16.msra.mxu0 0
        %1214 = vmatprep.subr.bf16.mxu0 0
        %1215 = vmatpush2.bf16.msra.mxu0 0
        %1216 = vmatprep.subr.bf16.mxu0 0
        %1217 = vmatpush2.bf16.msra.mxu0 0
        %1218 = vmatprep.subr.bf16.mxu0 0
        %1219 = vmatpush2.bf16.msra.mxu0 0
        %1220 = vmatprep.subr.bf16.mxu0 0
        %1221 = vmatpush2.bf16.msra.mxu0 0
        %1222 = vmatprep.subr.bf16.mxu0 0
        %1223 = vmatpush2.bf16.msra.mxu0 0
        %1224 = vmatprep.subr.bf16.mxu0 0
        %1225 = vmatpush2.bf16.msra.mxu0 0
        %1226 = vmatprep.subr.bf16.mxu0 0
        %1227 = vmatpush2.bf16.msra.mxu0 0
        %1228 = vmatprep.mubr.bf16.mxu0 0
        %1229 = vmatmul.mubr.bf16.gmra.mxu0 %v1194
        %v1230 = vpop.f32.mrf.mxu0
        %v1231 = vadd.f32 %v1178, %v1230
        %v1232 = vpop.f32.mrf.mxu0
        %v1233 = vpop.f32.mrf.mxu0
        %v1234 = vpop.f32.mrf.mxu0
        %1235 = vdwg.mxu0
        %v1236 = vmul.f32 %v1231, 0.35355338
        %1238 = vrot.lane.b32.xlu0 %v1236, 120
        %v1239 = vpop.permute.xlu0 %1238
        %1241 = vrot.lane.b32.xlu0 %v1236, 112
        %v1242 = vpop.permute.xlu0 %1241
        %1244 = vrot.lane.b32.xlu0 %v1236, 104
        %v1245 = vpop.permute.xlu0 %1244
        %v1247 = vcombine.low %v1236, %v1242
        %v1248 = vcombine.high %v1236, %v1242
        %v1250 = vunpack.c.l.s4 1983009808
        %v1251 = vunpack.c.0.s8 %v1250
        %v1252 = vlaneseq
        %v1253 = vshrl.u32 %v1252, 7
        %v1254 = vsub.s32 %v1251, %v1253
        %v1255 = vrot.slane %v1247, %v1254
        %v1257 = vunpack.c.l.s4 1983009808
        %v1258 = vunpack.c.0.s8 %v1257
        %v1259 = vlaneseq
        %v1260 = vshrl.u32 %v1259, 7
        %v1261 = vsub.s32 %v1258, %v1260
        %v1262 = vrot.slane %v1248, %v1261
        %v1263 = vcombine.low %v1239, %v1245
        %v1264 = vcombine.high %v1239, %v1245
        %v1266 = vunpack.c.l.s4 1983009808
        %v1267 = vunpack.c.0.s8 %v1266
        %v1268 = vlaneseq
        %v1269 = vshrl.u32 %v1268, 7
        %v1270 = vsub.s32 %v1267, %v1269
        %v1271 = vrot.slane %v1263, %v1270
        %v1273 = vunpack.c.l.s4 1983009808
        %v1274 = vunpack.c.0.s8 %v1273
        %v1275 = vlaneseq
        %v1276 = vshrl.u32 %v1275, 7
        %v1277 = vsub.s32 %v1274, %v1276
        %v1278 = vrot.slane %v1264, %v1277
        %v1279 = vcombine.low %v1255, %v1271
        %v1280 = vcombine.high %v1255, %v1271
        %v1282 = vunpack.c.l.s4 1934713408
        %v1283 = vunpack.c.0.s8 %v1282
        %v1284 = vlaneseq
        %v1285 = vshrl.u32 %v1284, 7
        %v1286 = vsub.s32 %v1283, %v1285
        %v1287 = vrot.slane %v1279, %v1286
        %v1289 = vunpack.c.l.s4 1934713408
        %v1290 = vunpack.c.0.s8 %v1289
        %v1291 = vlaneseq
        %v1292 = vshrl.u32 %v1291, 7
        %v1293 = vsub.s32 %v1290, %v1292
        %v1294 = vrot.slane %v1280, %v1293
        %v1295 = vcombine.low %v1262, %v1278
        %v1296 = vcombine.high %v1262, %v1278
        %v1298 = vunpack.c.l.s4 1934713408
        %v1299 = vunpack.c.0.s8 %v1298
        %v1300 = vlaneseq
        %v1301 = vshrl.u32 %v1300, 7
        %v1302 = vsub.s32 %v1299, %v1301
        %v1303 = vrot.slane %v1295, %v1302
        %v1305 = vunpack.c.l.s4 1934713408
        %v1306 = vunpack.c.0.s8 %v1305
        %v1307 = vlaneseq
        %v1308 = vshrl.u32 %v1307, 7
        %v1309 = vsub.s32 %v1306, %v1308
        %v1310 = vrot.slane %v1296, %v1309
        %v1311 = vcombine.high %v1287, 0.0
        %v1312 = vcombine.high %v1294, 0.0
        %v1313 = vcombine.high %v1303, 0.0
        %v1314 = vcombine.high %v1310, 0.0
        %v1315 = vcombine.low %v1287, %v1294
        %v1317 = vunpack.c.l.s4 1983009808
        %v1318 = vunpack.c.0.s8 %v1317
        %v1319 = vlaneseq
        %v1320 = vshrl.u32 %v1319, 7
        %v1321 = vsub.s32 %v1318, %v1320
        %v1322 = vrot.slane %v1315, %v1321
        %v1323 = vcombine.low %v1311, %v1312
        %v1325 = vunpack.c.l.s4 1983009808
        %v1326 = vunpack.c.0.s8 %v1325
        %v1327 = vlaneseq
        %v1328 = vshrl.u32 %v1327, 7
        %v1329 = vsub.s32 %v1326, %v1328
        %v1330 = vrot.slane %v1323, %v1329
        %v1331 = vcombine.low %v1303, %v1310
        %v1333 = vunpack.c.l.s4 1983009808
        %v1334 = vunpack.c.0.s8 %v1333
        %v1335 = vlaneseq
        %v1336 = vshrl.u32 %v1335, 7
        %v1337 = vsub.s32 %v1334, %v1336
        %v1338 = vrot.slane %v1331, %v1337
        %v1339 = vcombine.low %v1313, %v1314
        %v1341 = vunpack.c.l.s4 1983009808
        %v1342 = vunpack.c.0.s8 %v1341
        %v1343 = vlaneseq
        %v1344 = vshrl.u32 %v1343, 7
        %v1345 = vsub.s32 %v1342, %v1344
        %v1346 = vrot.slane %v1339, %v1345
        %v1347 = vcombine.low %v1322, %v1330
        %v1348 = vcombine.high %v1322, %v1330
        %v1350 = vunpack.c.l.s4 1934713408
        %v1351 = vunpack.c.0.s8 %v1350
        %v1352 = vlaneseq
        %v1353 = vshrl.u32 %v1352, 7
        %v1354 = vsub.s32 %v1351, %v1353
        %v1355 = vrot.slane %v1347, %v1354
        %v1357 = vunpack.c.l.s4 1934713408
        %v1358 = vunpack.c.0.s8 %v1357
        %v1359 = vlaneseq
        %v1360 = vshrl.u32 %v1359, 7
        %v1361 = vsub.s32 %v1358, %v1360
        %v1362 = vrot.slane %v1348, %v1361
        %v1363 = vcombine.low %v1338, %v1346
        %v1364 = vcombine.high %v1338, %v1346
        %v1366 = vunpack.c.l.s4 1934713408
        %v1367 = vunpack.c.0.s8 %v1366
        %v1368 = vlaneseq
        %v1369 = vshrl.u32 %v1368, 7
        %v1370 = vsub.s32 %v1367, %v1369
        %v1371 = vrot.slane %v1363, %v1370
        %v1373 = vunpack.c.l.s4 1934713408
        %v1374 = vunpack.c.0.s8 %v1373
        %v1375 = vlaneseq
        %v1376 = vshrl.u32 %v1375, 7
        %v1377 = vsub.s32 %v1374, %v1376
        %v1378 = vrot.slane %v1364, %v1377
        %v1379 = vcombine.low %v1355, %v1371
        %v1380 = vcombine.high %v1355, %v1371
        %v1381 = vcombine.low %v1362, %v1378
        %v1382 = vcombine.high %v1362, %v1378
        %v1383 = vpack.c.bf16 %v1379, %v1379
        %v1384 = vpack.c.bf16 %v1380, %v1380
        %v1385 = vpack.c.bf16 %v1381, %v1381
        %v1386 = vpack.c.bf16 %v1382, %v1382
        %v1387 = vld [vmem:[#allocation2] sm:$0xf]
        %v1388 = vld [vmem:[#allocation2 + $0x4] sm:$0xf]
        %v1389 = vld [vmem:[#allocation2 + $0x8] sm:$0xf]
        %v1390 = vld [vmem:[#allocation2 + $0xc] sm:$0xf]
        %v1391 = vld [vmem:[#allocation3] sm:$0xf]
        %v1392 = vld [vmem:[#allocation3 + $0x4] sm:$0xf]
        %v1393 = vld [vmem:[#allocation3 + $0x8] sm:$0xf]
        %v1394 = vld [vmem:[#allocation3 + $0xc] sm:$0xf]
        %vm1395 = vcmask 64512
        %v1397 = vsel %vm1395, %v1383, 0
        %v1400 = vsel %vm1395, %v1387, 0
        %1402 = vmatprep.subr.bf16.mxu0 0
        %1403 = vmatpush1.bf16.xpose.msra.mxu0 0
        %1404 = vmatprep.subr.bf16.mxu0 0
        %1405 = vmatpush1.bf16.xpose.msra.mxu0 0
        %1406 = vmatprep.subr.bf16.mxu0 0
        %1407 = vmatpush1.bf16.xpose.msra.mxu0 0
        %1408 = vmatprep.subr.bf16.mxu0 0
        %1409 = vmatpush1.bf16.xpose.msra.mxu0 0
        %1410 = vmatprep.subr.bf16.mxu0 0
        %1411 = vmatpush1.bf16.xpose.msra.mxu0 0
        %1412 = vmatprep.subr.bf16.mxu0 0
        %1413 = vmatpush1.bf16.xpose.msra.mxu0 0
        %1414 = vmatprep.subr.bf16.mxu0 0
        %1415 = vmatpush1.bf16.xpose.msra.mxu0 0
        %1416 = vmatprep.subr.bf16.mxu0 0
        %1417 = vmatpush1.bf16.xpose.msra.mxu0 %v1400
        %1418 = vmatprep.subr.bf16.mxu0 0
        %1419 = vmatpush2.bf16.xpose.msra.mxu0 0
        %1420 = vmatprep.subr.bf16.mxu0 0
        %1421 = vmatpush2.bf16.xpose.msra.mxu0 0
        %1422 = vmatprep.subr.bf16.mxu0 0
        %1423 = vmatpush2.bf16.xpose.msra.mxu0 0
        %1424 = vmatprep.subr.bf16.mxu0 0
        %1425 = vmatpush2.bf16.xpose.msra.mxu0 0
        %1426 = vmatprep.subr.bf16.mxu0 0
        %1427 = vmatpush2.bf16.xpose.msra.mxu0 0
        %1428 = vmatprep.subr.bf16.mxu0 0
        %1429 = vmatpush2.bf16.xpose.msra.mxu0 0
        %1430 = vmatprep.subr.bf16.mxu0 0
        %1431 = vmatpush2.bf16.xpose.msra.mxu0 0
        %1432 = vmatprep.subr.bf16.mxu0 0
        %1433 = vmatpush2.bf16.xpose.msra.mxu0 0
        %1434 = vmatprep.mubr.bf16.mxu0 0
        %1435 = vmatmul.mubr.bf16.gmra.mxu0 %v1397
        %v1436 = vpop.f32.mrf.mxu0
        %v1437 = vadd.f32 0.0, %v1436
        %v1438 = vpop.f32.mrf.mxu0
        %v1439 = vpop.f32.mrf.mxu0
        %v1440 = vpop.f32.mrf.mxu0
        %1441 = vdwg.mxu0
        %v1443 = vsel %vm1395, %v1384, 0
        %v1446 = vsel %vm1395, %v1388, 0
        %1448 = vmatprep.subr.bf16.mxu0 0
        %1449 = vmatpush1.bf16.xpose.msra.mxu0 0
        %1450 = vmatprep.subr.bf16.mxu0 0
        %1451 = vmatpush1.bf16.xpose.msra.mxu0 0
        %1452 = vmatprep.subr.bf16.mxu0 0
        %1453 = vmatpush1.bf16.xpose.msra.mxu0 0
        %1454 = vmatprep.subr.bf16.mxu0 0
        %1455 = vmatpush1.bf16.xpose.msra.mxu0 0
        %1456 = vmatprep.subr.bf16.mxu0 0
        %1457 = vmatpush1.bf16.xpose.msra.mxu0 0
        %1458 = vmatprep.subr.bf16.mxu0 0
        %1459 = vmatpush1.bf16.xpose.msra.mxu0 0
        %1460 = vmatprep.subr.bf16.mxu0 0
        %1461 = vmatpush1.bf16.xpose.msra.mxu0 0
        %1462 = vmatprep.subr.bf16.mxu0 0
        %1463 = vmatpush1.bf16.xpose.msra.mxu0 %v1446
        %1464 = vmatprep.subr.bf16.mxu0 0
        %1465 = vmatpush2.bf16.xpose.msra.mxu0 0
        %1466 = vmatprep.subr.bf16.mxu0 0
        %1467 = vmatpush2.bf16.xpose.msra.mxu0 0
        %1468 = vmatprep.subr.bf16.mxu0 0
        %1469 = vmatpush2.bf16.xpose.msra.mxu0 0
        %1470 = vmatprep.subr.bf16.mxu0 0
        %1471 = vmatpush2.bf16.xpose.msra.mxu0 0
        %1472 = vmatprep.subr.bf16.mxu0 0
        %1473 = vmatpush2.bf16.xpose.msra.mxu0 0
        %1474 = vmatprep.subr.bf16.mxu0 0
        %1475 = vmatpush2.bf16.xpose.msra.mxu0 0
        %1476 = vmatprep.subr.bf16.mxu0 0
        %1477 = vmatpush2.bf16.xpose.msra.mxu0 0
        %1478 = vmatprep.subr.bf16.mxu0 0
        %1479 = vmatpush2.bf16.xpose.msra.mxu0 0
        %1480 = vmatprep.mubr.bf16.mxu0 0
        %1481 = vmatmul.mubr.bf16.gmra.mxu0 %v1443
        %v1482 = vpop.f32.mrf.mxu0
        %v1483 = vadd.f32 0.0, %v1482
        %v1484 = vpop.f32.mrf.mxu0
        %v1485 = vpop.f32.mrf.mxu0
        %v1486 = vpop.f32.mrf.mxu0
        %1487 = vdwg.mxu0
        %v1489 = vsel %vm1395, %v1385, 0
        %v1492 = vsel %vm1395, %v1389, 0
        %1494 = vmatprep.subr.bf16.mxu0 0
        %1495 = vmatpush1.bf16.xpose.msra.mxu0 0
        %1496 = vmatprep.subr.bf16.mxu0 0
        %1497 = vmatpush1.bf16.xpose.msra.mxu0 0
        %1498 = vmatprep.subr.bf16.mxu0 0
        %1499 = vmatpush1.bf16.xpose.msra.mxu0 0
        %1500 = vmatprep.subr.bf16.mxu0 0
        %1501 = vmatpush1.bf16.xpose.msra.mxu0 0
        %1502 = vmatprep.subr.bf16.mxu0 0
        %1503 = vmatpush1.bf16.xpose.msra.mxu0 0
        %1504 = vmatprep.subr.bf16.mxu0 0
        %1505 = vmatpush1.bf16.xpose.msra.mxu0 0
        %1506 = vmatprep.subr.bf16.mxu0 0
        %1507 = vmatpush1.bf16.xpose.msra.mxu0 0
        %1508 = vmatprep.subr.bf16.mxu0 0
        %1509 = vmatpush1.bf16.xpose.msra.mxu0 %v1492
        %1510 = vmatprep.subr.bf16.mxu0 0
        %1511 = vmatpush2.bf16.xpose.msra.mxu0 0
        %1512 = vmatprep.subr.bf16.mxu0 0
        %1513 = vmatpush2.bf16.xpose.msra.mxu0 0
        %1514 = vmatprep.subr.bf16.mxu0 0
        %1515 = vmatpush2.bf16.xpose.msra.mxu0 0
        %1516 = vmatprep.subr.bf16.mxu0 0
        %1517 = vmatpush2.bf16.xpose.msra.mxu0 0
        %1518 = vmatprep.subr.bf16.mxu0 0
        %1519 = vmatpush2.bf16.xpose.msra.mxu0 0
        %1520 = vmatprep.subr.bf16.mxu0 0
        %1521 = vmatpush2.bf16.xpose.msra.mxu0 0
        %1522 = vmatprep.subr.bf16.mxu0 0
        %1523 = vmatpush2.bf16.xpose.msra.mxu0 0
        %1524 = vmatprep.subr.bf16.mxu0 0
        %1525 = vmatpush2.bf16.xpose.msra.mxu0 0
        %1526 = vmatprep.mubr.bf16.mxu0 0
        %1527 = vmatmul.mubr.bf16.gmra.mxu0 %v1489
        %v1528 = vpop.f32.mrf.mxu0
        %v1529 = vadd.f32 0.0, %v1528
        %v1530 = vpop.f32.mrf.mxu0
        %v1531 = vpop.f32.mrf.mxu0
        %v1532 = vpop.f32.mrf.mxu0
        %1533 = vdwg.mxu0
        %v1535 = vsel %vm1395, %v1386, 0
        %v1538 = vsel %vm1395, %v1390, 0
        %1540 = vmatprep.subr.bf16.mxu0 0
        %1541 = vmatpush1.bf16.xpose.msra.mxu0 0
        %1542 = vmatprep.subr.bf16.mxu0 0
        %1543 = vmatpush1.bf16.xpose.msra.mxu0 0
        %1544 = vmatprep.subr.bf16.mxu0 0
        %1545 = vmatpush1.bf16.xpose.msra.mxu0 0
        %1546 = vmatprep.subr.bf16.mxu0 0
        %1547 = vmatpush1.bf16.xpose.msra.mxu0 0
        %1548 = vmatprep.subr.bf16.mxu0 0
        %1549 = vmatpush1.bf16.xpose.msra.mxu0 0
        %1550 = vmatprep.subr.bf16.mxu0 0
        %1551 = vmatpush1.bf16.xpose.msra.mxu0 0
        %1552 = vmatprep.subr.bf16.mxu0 0
        %1553 = vmatpush1.bf16.xpose.msra.mxu0 0
        %1554 = vmatprep.subr.bf16.mxu0 0
        %1555 = vmatpush1.bf16.xpose.msra.mxu0 %v1538
        %1556 = vmatprep.subr.bf16.mxu0 0
        %1557 = vmatpush2.bf16.xpose.msra.mxu0 0
        %1558 = vmatprep.subr.bf16.mxu0 0
        %1559 = vmatpush2.bf16.xpose.msra.mxu0 0
        %1560 = vmatprep.subr.bf16.mxu0 0
        %1561 = vmatpush2.bf16.xpose.msra.mxu0 0
        %1562 = vmatprep.subr.bf16.mxu0 0
        %1563 = vmatpush2.bf16.xpose.msra.mxu0 0
        %1564 = vmatprep.subr.bf16.mxu0 0
        %1565 = vmatpush2.bf16.xpose.msra.mxu0 0
        %1566 = vmatprep.subr.bf16.mxu0 0
        %1567 = vmatpush2.bf16.xpose.msra.mxu0 0
        %1568 = vmatprep.subr.bf16.mxu0 0
        %1569 = vmatpush2.bf16.xpose.msra.mxu0 0
        %1570 = vmatprep.subr.bf16.mxu0 0
        %1571 = vmatpush2.bf16.xpose.msra.mxu0 0
        %1572 = vmatprep.mubr.bf16.mxu0 0
        %1573 = vmatmul.mubr.bf16.gmra.mxu0 %v1535
        %v1574 = vpop.f32.mrf.mxu0
        %v1575 = vadd.f32 0.0, %v1574
        %v1576 = vpop.f32.mrf.mxu0
        %v1577 = vpop.f32.mrf.mxu0
        %v1578 = vpop.f32.mrf.mxu0
        %1579 = vdwg.mxu0
        %v1580 = vsel %vm1395, %v1437, -inf
        %1581 = vmax.xlane.f32.xlu0 %v1580
        %v1582 = vpop.xlane.xlu0 %1581
        %v1583 = vsel %vm1395, %v1483, -inf
        %1584 = vmax.xlane.f32.xlu0 %v1583
        %v1585 = vpop.xlane.xlu0 %1584
        %v1586 = vsel %vm1395, %v1529, -inf
        %1587 = vmax.xlane.f32.xlu0 %v1586
        %v1588 = vpop.xlane.xlu0 %1587
        %v1589 = vsel %vm1395, %v1575, -inf
        %1590 = vmax.xlane.f32.xlu0 %v1589
        %v1591 = vpop.xlane.xlu0 %1590
        %v1592 = vsub.f32 %v1437, %v1582
        %v1593 = vsub.f32 %v1483, %v1585
        %v1594 = vsub.f32 %v1529, %v1588
        %v1595 = vsub.f32 %v1575, %v1591
        %v1596 = vmul.f32 %v1592, 1.442695
        %v1597 = vpow.pop %v1596
        %v1598 = vmul.f32 %v1593, 1.442695
        %v1599 = vpow.pop %v1598
        %v1600 = vmul.f32 %v1594, 1.442695
        %v1601 = vpow.pop %v1600
        %v1602 = vmul.f32 %v1595, 1.442695
        %v1603 = vpow.pop %v1602
        %v1604 = vsel %vm1395, %v1597, 0.0
        %1605 = vadd.xlane.f32.xlu0 %v1604
        %v1606 = vpop.xlane.xlu0 %1605
        %v1607 = vsel %vm1395, %v1599, 0.0
        %1608 = vadd.xlane.f32.xlu0 %v1607
        %v1609 = vpop.xlane.xlu0 %1608
        %v1610 = vsel %vm1395, %v1601, 0.0
        %1611 = vadd.xlane.f32.xlu0 %v1610
        %v1612 = vpop.xlane.xlu0 %1611
        %v1613 = vsel %vm1395, %v1603, 0.0
        %1614 = vadd.xlane.f32.xlu0 %v1613
        %v1615 = vpop.xlane.xlu0 %1614
        %v1616 = vrcp.pop %v1606
        %v1617 = vrcp.pop %v1609
        %v1618 = vrcp.pop %v1612
        %v1619 = vrcp.pop %v1615
        %v1620 = vmul.f32 %v1597, %v1616
        %v1621 = vmul.f32 %v1599, %v1617
        %v1622 = vmul.f32 %v1601, %v1618
        %v1623 = vmul.f32 %v1603, %v1619
        %v1624 = vpack.c.bf16 %v1620, %v1620
        %v1625 = vpack.c.bf16 %v1621, %v1621
        %v1626 = vpack.c.bf16 %v1622, %v1622
        %v1627 = vpack.c.bf16 %v1623, %v1623
        %vm1628 = vcmask 60416
        %1629 = vst.msk [vmem:[%s708] sm:$0xf] %vm1628, %v1624
        %1630 = vst.msk [vmem:[%s708 + $0x4] sm:$0xf] %vm1628, %v1625
        %1631 = vst.msk [vmem:[%s708 + $0x8] sm:$0xf] %vm1628, %v1626
        %1632 = vst.msk [vmem:[%s708 + $0xc] sm:$0xf] %vm1628, %v1627
        %v1634 = vsel %vm1395, %v1624, 0
        %vm1636 = vcmask 1043456
        %v1638 = vsel %vm1636, %v1391, 0
        %1640 = vmatprep.subr.bf16.mxu0 0
        %1641 = vmatpush1.bf16.msra.mxu0 0
        %1642 = vmatprep.subr.bf16.mxu0 0
        %1643 = vmatpush1.bf16.msra.mxu0 0
        %1644 = vmatprep.subr.bf16.mxu0 0
        %1645 = vmatpush1.bf16.msra.mxu0 0
        %1646 = vmatprep.subr.bf16.mxu0 0
        %1647 = vmatpush1.bf16.msra.mxu0 0
        %1648 = vmatprep.subr.bf16.mxu0 0
        %1649 = vmatpush1.bf16.msra.mxu0 0
        %1650 = vmatprep.subr.bf16.mxu0 0
        %1651 = vmatpush1.bf16.msra.mxu0 0
        %1652 = vmatprep.subr.bf16.mxu0 0
        %1653 = vmatpush1.bf16.msra.mxu0 0
        %1654 = vmatprep.subr.bf16.mxu0 0
        %1655 = vmatpush1.bf16.msra.mxu0 %v1638
        %1656 = vmatprep.subr.bf16.mxu0 0
        %1657 = vmatpush2.bf16.msra.mxu0 0
        %1658 = vmatprep.subr.bf16.mxu0 0
        %1659 = vmatpush2.bf16.msra.mxu0 0
        %1660 = vmatprep.subr.bf16.mxu0 0
        %1661 = vmatpush2.bf16.msra.mxu0 0
        %1662 = vmatprep.subr.bf16.mxu0 0
        %1663 = vmatpush2.bf16.msra.mxu0 0
        %1664 = vmatprep.subr.bf16.mxu0 0
        %1665 = vmatpush2.bf16.msra.mxu0 0
        %1666 = vmatprep.subr.bf16.mxu0 0
        %1667 = vmatpush2.bf16.msra.mxu0 0
        %1668 = vmatprep.subr.bf16.mxu0 0
        %1669 = vmatpush2.bf16.msra.mxu0 0
        %1670 = vmatprep.subr.bf16.mxu0 0
        %1671 = vmatpush2.bf16.msra.mxu0 0
        %1672 = vmatprep.mubr.bf16.mxu0 0
        %1673 = vmatmul.mubr.bf16.gmra.mxu0 %v1634
        %v1674 = vpop.f32.mrf.mxu0
        %v1675 = vadd.f32 0.0, %v1674
        %v1676 = vpop.f32.mrf.mxu0
        %v1677 = vpop.f32.mrf.mxu0
        %v1678 = vpop.f32.mrf.mxu0
        %1679 = vdwg.mxu0
        %v1681 = vsel %vm1395, %v1625, 0
        %v1684 = vsel %vm1636, %v1392, 0
        %1686 = vmatprep.subr.bf16.mxu0 0
        %1687 = vmatpush1.bf16.msra.mxu0 0
        %1688 = vmatprep.subr.bf16.mxu0 0
        %1689 = vmatpush1.bf16.msra.mxu0 0
        %1690 = vmatprep.subr.bf16.mxu0 0
        %1691 = vmatpush1.bf16.msra.mxu0 0
        %1692 = vmatprep.subr.bf16.mxu0 0
        %1693 = vmatpush1.bf16.msra.mxu0 0
        %1694 = vmatprep.subr.bf16.mxu0 0
        %1695 = vmatpush1.bf16.msra.mxu0 0
        %1696 = vmatprep.subr.bf16.mxu0 0
        %1697 = vmatpush1.bf16.msra.mxu0 0
        %1698 = vmatprep.subr.bf16.mxu0 0
        %1699 = vmatpush1.bf16.msra.mxu0 0
        %1700 = vmatprep.subr.bf16.mxu0 0
        %1701 = vmatpush1.bf16.msra.mxu0 %v1684
        %1702 = vmatprep.subr.bf16.mxu0 0
        %1703 = vmatpush2.bf16.msra.mxu0 0
        %1704 = vmatprep.subr.bf16.mxu0 0
        %1705 = vmatpush2.bf16.msra.mxu0 0
        %1706 = vmatprep.subr.bf16.mxu0 0
        %1707 = vmatpush2.bf16.msra.mxu0 0
        %1708 = vmatprep.subr.bf16.mxu0 0
        %1709 = vmatpush2.bf16.msra.mxu0 0
        %1710 = vmatprep.subr.bf16.mxu0 0
        %1711 = vmatpush2.bf16.msra.mxu0 0
        %1712 = vmatprep.subr.bf16.mxu0 0
        %1713 = vmatpush2.bf16.msra.mxu0 0
        %1714 = vmatprep.subr.bf16.mxu0 0
        %1715 = vmatpush2.bf16.msra.mxu0 0
        %1716 = vmatprep.subr.bf16.mxu0 0
        %1717 = vmatpush2.bf16.msra.mxu0 0
        %1718 = vmatprep.mubr.bf16.mxu0 0
        %1719 = vmatmul.mubr.bf16.gmra.mxu0 %v1681
        %v1720 = vpop.f32.mrf.mxu0
        %v1721 = vadd.f32 0.0, %v1720
        %v1722 = vpop.f32.mrf.mxu0
        %v1723 = vpop.f32.mrf.mxu0
        %v1724 = vpop.f32.mrf.mxu0
        %1725 = vdwg.mxu0
        %v1727 = vsel %vm1395, %v1626, 0
        %v1730 = vsel %vm1636, %v1393, 0
        %1732 = vmatprep.subr.bf16.mxu0 0
        %1733 = vmatpush1.bf16.msra.mxu0 0
        %1734 = vmatprep.subr.bf16.mxu0 0
        %1735 = vmatpush1.bf16.msra.mxu0 0
        %1736 = vmatprep.subr.bf16.mxu0 0
        %1737 = vmatpush1.bf16.msra.mxu0 0
        %1738 = vmatprep.subr.bf16.mxu0 0
        %1739 = vmatpush1.bf16.msra.mxu0 0
        %1740 = vmatprep.subr.bf16.mxu0 0
        %1741 = vmatpush1.bf16.msra.mxu0 0
        %1742 = vmatprep.subr.bf16.mxu0 0
        %1743 = vmatpush1.bf16.msra.mxu0 0
        %1744 = vmatprep.subr.bf16.mxu0 0
        %1745 = vmatpush1.bf16.msra.mxu0 0
        %1746 = vmatprep.subr.bf16.mxu0 0
        %1747 = vmatpush1.bf16.msra.mxu0 %v1730
        %1748 = vmatprep.subr.bf16.mxu0 0
        %1749 = vmatpush2.bf16.msra.mxu0 0
        %1750 = vmatprep.subr.bf16.mxu0 0
        %1751 = vmatpush2.bf16.msra.mxu0 0
        %1752 = vmatprep.subr.bf16.mxu0 0
        %1753 = vmatpush2.bf16.msra.mxu0 0
        %1754 = vmatprep.subr.bf16.mxu0 0
        %1755 = vmatpush2.bf16.msra.mxu0 0
        %1756 = vmatprep.subr.bf16.mxu0 0
        %1757 = vmatpush2.bf16.msra.mxu0 0
        %1758 = vmatprep.subr.bf16.mxu0 0
        %1759 = vmatpush2.bf16.msra.mxu0 0
        %1760 = vmatprep.subr.bf16.mxu0 0
        %1761 = vmatpush2.bf16.msra.mxu0 0
        %1762 = vmatprep.subr.bf16.mxu0 0
        %1763 = vmatpush2.bf16.msra.mxu0 0
        %1764 = vmatprep.mubr.bf16.mxu0 0
        %1765 = vmatmul.mubr.bf16.gmra.mxu0 %v1727
        %v1766 = vpop.f32.mrf.mxu0
        %v1767 = vadd.f32 0.0, %v1766
        %v1768 = vpop.f32.mrf.mxu0
        %v1769 = vpop.f32.mrf.mxu0
        %v1770 = vpop.f32.mrf.mxu0
        %1771 = vdwg.mxu0
        %v1773 = vsel %vm1395, %v1627, 0
        %v1776 = vsel %vm1636, %v1394, 0
        %1778 = vmatprep.subr.bf16.mxu0 0
        %1779 = vmatpush1.bf16.msra.mxu0 0
        %1780 = vmatprep.subr.bf16.mxu0 0
        %1781 = vmatpush1.bf16.msra.mxu0 0
        %1782 = vmatprep.subr.bf16.mxu0 0
        %1783 = vmatpush1.bf16.msra.mxu0 0
        %1784 = vmatprep.subr.bf16.mxu0 0
        %1785 = vmatpush1.bf16.msra.mxu0 0
        %1786 = vmatprep.subr.bf16.mxu0 0
        %1787 = vmatpush1.bf16.msra.mxu0 0
        %1788 = vmatprep.subr.bf16.mxu0 0
        %1789 = vmatpush1.bf16.msra.mxu0 0
        %1790 = vmatprep.subr.bf16.mxu0 0
        %1791 = vmatpush1.bf16.msra.mxu0 0
        %1792 = vmatprep.subr.bf16.mxu0 0
        %1793 = vmatpush1.bf16.msra.mxu0 %v1776
        %1794 = vmatprep.subr.bf16.mxu0 0
        %1795 = vmatpush2.bf16.msra.mxu0 0
        %1796 = vmatprep.subr.bf16.mxu0 0
        %1797 = vmatpush2.bf16.msra.mxu0 0
        %1798 = vmatprep.subr.bf16.mxu0 0
        %1799 = vmatpush2.bf16.msra.mxu0 0
        %1800 = vmatprep.subr.bf16.mxu0 0
        %1801 = vmatpush2.bf16.msra.mxu0 0
        %1802 = vmatprep.subr.bf16.mxu0 0
        %1803 = vmatpush2.bf16.msra.mxu0 0
        %1804 = vmatprep.subr.bf16.mxu0 0
        %1805 = vmatpush2.bf16.msra.mxu0 0
        %1806 = vmatprep.subr.bf16.mxu0 0
        %1807 = vmatpush2.bf16.msra.mxu0 0
        %1808 = vmatprep.subr.bf16.mxu0 0
        %1809 = vmatpush2.bf16.msra.mxu0 0
        %1810 = vmatprep.mubr.bf16.mxu0 0
        %1811 = vmatmul.mubr.bf16.gmra.mxu0 %v1773
        %v1812 = vpop.f32.mrf.mxu0
        %v1813 = vadd.f32 0.0, %v1812
        %v1814 = vpop.f32.mrf.mxu0
        %v1815 = vpop.f32.mrf.mxu0
        %v1816 = vpop.f32.mrf.mxu0
        %1817 = vdwg.mxu0
        %v1818 = vcombine.low %v1675, %v1767
        %v1819 = vcombine.high %v1675, %v1767
        %v1821 = vunpack.c.l.s4 1983009808
        %v1822 = vunpack.c.0.s8 %v1821
        %v1823 = vlaneseq
        %v1824 = vshrl.u32 %v1823, 7
        %v1825 = vsub.s32 %v1822, %v1824
        %v1826 = vrot.slane %v1818, %v1825
        %v1828 = vunpack.c.l.s4 1983009808
        %v1829 = vunpack.c.0.s8 %v1828
        %v1830 = vlaneseq
        %v1831 = vshrl.u32 %v1830, 7
        %v1832 = vsub.s32 %v1829, %v1831
        %v1833 = vrot.slane %v1819, %v1832
        %v1834 = vcombine.low %v1721, %v1813
        %v1835 = vcombine.high %v1721, %v1813
        %v1837 = vunpack.c.l.s4 1983009808
        %v1838 = vunpack.c.0.s8 %v1837
        %v1839 = vlaneseq
        %v1840 = vshrl.u32 %v1839, 7
        %v1841 = vsub.s32 %v1838, %v1840
        %v1842 = vrot.slane %v1834, %v1841
        %v1844 = vunpack.c.l.s4 1983009808
        %v1845 = vunpack.c.0.s8 %v1844
        %v1846 = vlaneseq
        %v1847 = vshrl.u32 %v1846, 7
        %v1848 = vsub.s32 %v1845, %v1847
        %v1849 = vrot.slane %v1835, %v1848
        %v1850 = vcombine.low %v1826, %v1842
        %v1851 = vcombine.high %v1826, %v1842
        %v1853 = vunpack.c.l.s4 1934713408
        %v1854 = vunpack.c.0.s8 %v1853
        %v1855 = vlaneseq
        %v1856 = vshrl.u32 %v1855, 7
        %v1857 = vsub.s32 %v1854, %v1856
        %v1858 = vrot.slane %v1850, %v1857
        %v1860 = vunpack.c.l.s4 1934713408
        %v1861 = vunpack.c.0.s8 %v1860
        %v1862 = vlaneseq
        %v1863 = vshrl.u32 %v1862, 7
        %v1864 = vsub.s32 %v1861, %v1863
        %v1865 = vrot.slane %v1851, %v1864
        %v1866 = vcombine.low %v1833, %v1849
        %v1867 = vcombine.high %v1833, %v1849
        %v1869 = vunpack.c.l.s4 1934713408
        %v1870 = vunpack.c.0.s8 %v1869
        %v1871 = vlaneseq
        %v1872 = vshrl.u32 %v1871, 7
        %v1873 = vsub.s32 %v1870, %v1872
        %v1874 = vrot.slane %v1866, %v1873
        %v1876 = vunpack.c.l.s4 1934713408
        %v1877 = vunpack.c.0.s8 %v1876
        %v1878 = vlaneseq
        %v1879 = vshrl.u32 %v1878, 7
        %v1880 = vsub.s32 %v1877, %v1879
        %v1881 = vrot.slane %v1867, %v1880
        %v1882 = vcombine.high %v1858, 0.0
        %v1883 = vcombine.high %v1865, 0.0
        %v1884 = vcombine.high %v1874, 0.0
        %v1885 = vcombine.high %v1881, 0.0
        %v1886 = vcombine.low %v1858, %v1865
        %v1888 = vunpack.c.l.s4 1983009808
        %v1889 = vunpack.c.0.s8 %v1888
        %v1890 = vlaneseq
        %v1891 = vshrl.u32 %v1890, 7
        %v1892 = vsub.s32 %v1889, %v1891
        %v1893 = vrot.slane %v1886, %v1892
        %v1894 = vcombine.low %v1882, %v1883
        %v1896 = vunpack.c.l.s4 1983009808
        %v1897 = vunpack.c.0.s8 %v1896
        %v1898 = vlaneseq
        %v1899 = vshrl.u32 %v1898, 7
        %v1900 = vsub.s32 %v1897, %v1899
        %v1901 = vrot.slane %v1894, %v1900
        %v1902 = vcombine.low %v1874, %v1881
        %v1904 = vunpack.c.l.s4 1983009808
        %v1905 = vunpack.c.0.s8 %v1904
        %v1906 = vlaneseq
        %v1907 = vshrl.u32 %v1906, 7
        %v1908 = vsub.s32 %v1905, %v1907
        %v1909 = vrot.slane %v1902, %v1908
        %v1910 = vcombine.low %v1884, %v1885
        %v1912 = vunpack.c.l.s4 1983009808
        %v1913 = vunpack.c.0.s8 %v1912
        %v1914 = vlaneseq
        %v1915 = vshrl.u32 %v1914, 7
        %v1916 = vsub.s32 %v1913, %v1915
        %v1917 = vrot.slane %v1910, %v1916
        %v1918 = vcombine.low %v1893, %v1901
        %v1919 = vcombine.high %v1893, %v1901
        %v1921 = vunpack.c.l.s4 1934713408
        %v1922 = vunpack.c.0.s8 %v1921
        %v1923 = vlaneseq
        %v1924 = vshrl.u32 %v1923, 7
        %v1925 = vsub.s32 %v1922, %v1924
        %v1926 = vrot.slane %v1918, %v1925
        %v1928 = vunpack.c.l.s4 1934713408
        %v1929 = vunpack.c.0.s8 %v1928
        %v1930 = vlaneseq
        %v1931 = vshrl.u32 %v1930, 7
        %v1932 = vsub.s32 %v1929, %v1931
        %v1933 = vrot.slane %v1919, %v1932
        %v1934 = vcombine.low %v1909, %v1917
        %v1935 = vcombine.high %v1909, %v1917
        %v1937 = vunpack.c.l.s4 1934713408
        %v1938 = vunpack.c.0.s8 %v1937
        %v1939 = vlaneseq
        %v1940 = vshrl.u32 %v1939, 7
        %v1941 = vsub.s32 %v1938, %v1940
        %v1942 = vrot.slane %v1934, %v1941
        %v1944 = vunpack.c.l.s4 1934713408
        %v1945 = vunpack.c.0.s8 %v1944
        %v1946 = vlaneseq
        %v1947 = vshrl.u32 %v1946, 7
        %v1948 = vsub.s32 %v1945, %v1947
        %v1949 = vrot.slane %v1935, %v1948
        %v1950 = vcombine.low %v1926, %v1942
        %v1951 = vcombine.high %v1926, %v1942
        %v1952 = vcombine.low %v1933, %v1949
        %v1953 = vcombine.high %v1933, %v1949
        %1955 = vrot.lane.b32.xlu0 %v1951, 8
        %v1956 = vpop.permute.xlu0 %1955
        %1959 = vrot.lane.b32.xlu0 %v1952, 16
        %v1960 = vpop.permute.xlu0 %1959
        %1963 = vrot.lane.b32.xlu0 %v1953, 24
        %v1964 = vpop.permute.xlu0 %1963
        %v1966 = vsel %vm1395, %v1950, %v1956
        %vm1967 = vcmask 130048
        %v1968 = vsel %vm1967, %v1966, %v1960
        %vm1969 = vcmask 195584
        %v1970 = vsel %vm1969, %v1968, %v1964
        %v1971 = vpack.c.bf16 %v1970, %v1970
        %v1972 = vld [vmem:[#allocation10] sm:$0xf]
        %v1973 = vld [vmem:[#allocation10 + $0x4] sm:$0xf]
        %v1974 = vld [vmem:[#allocation10 + $0x8] sm:$0xf]
        %v1975 = vld [vmem:[#allocation10 + $0xc] sm:$0xf]
        %v1976 = vld [vmem:[%s9] sm:$0x1]
        %v1978 = vlaneseq
        %v1979 = vshrl.u32 %v1978, 7
        %v1980 = vsub.s32 0, %v1979
        %v1981 = vrot.slane %v1976, %v1980
        %v1987 = vunpack.c.l.b16 %v1972
        %v1988 = vunpack.c.l.b16 %v1973
        %v1989 = vunpack.c.l.b16 %v1974
        %v1990 = vunpack.c.l.b16 %v1975
        %v1991 = vpack.c.b16 %v1988, %v1987
        %v1992 = vpack.c.b16 %v1990, %v1989
        %v1996 = vsel %vm1192, %v1971, 0
        %1998 = vmatprep.subr.bf16.mxu0 0
        %1999 = vmatpush1.bf16.msra.mxu0 0
        %2000 = vmatprep.subr.bf16.mxu0 0
        %2001 = vmatpush1.bf16.msra.mxu0 0
        %2002 = vmatprep.subr.bf16.mxu0 0
        %2003 = vmatpush1.bf16.msra.mxu0 0
        %2004 = vmatprep.subr.bf16.mxu0 0
        %2005 = vmatpush1.bf16.msra.mxu0 0
        %2006 = vmatprep.subr.bf16.mxu0 0
        %2007 = vmatpush1.bf16.msra.mxu0 0
        %2008 = vmatprep.subr.bf16.mxu0 0
        %2009 = vmatpush1.bf16.msra.mxu0 0
        %2010 = vmatprep.subr.bf16.mxu0 0
        %2011 = vmatpush1.bf16.msra.mxu0 %v1992
        %2012 = vmatprep.subr.bf16.mxu0 0
        %2013 = vmatpush1.bf16.msra.mxu0 %v1991
        %2014 = vmatprep.subr.bf16.mxu0 0
        %2015 = vmatpush2.bf16.msra.mxu0 0
        %2016 = vmatprep.subr.bf16.mxu0 0
        %2017 = vmatpush2.bf16.msra.mxu0 0
        %2018 = vmatprep.subr.bf16.mxu0 0
        %2019 = vmatpush2.bf16.msra.mxu0 0
        %2020 = vmatprep.subr.bf16.mxu0 0
        %2021 = vmatpush2.bf16.msra.mxu0 0
        %2022 = vmatprep.subr.bf16.mxu0 0
        %2023 = vmatpush2.bf16.msra.mxu0 0
        %2024 = vmatprep.subr.bf16.mxu0 0
        %2025 = vmatpush2.bf16.msra.mxu0 0
        %2026 = vmatprep.subr.bf16.mxu0 0
        %2027 = vmatpush2.bf16.msra.mxu0 0
        %2028 = vmatprep.subr.bf16.mxu0 0
        %2029 = vmatpush2.bf16.msra.mxu0 0
        %2030 = vmatprep.mubr.bf16.mxu0 0
        %2031 = vmatmul.mubr.bf16.gmra.mxu0 %v1996
        %v2032 = vpop.f32.mrf.mxu0
        %v2033 = vadd.f32 %v1981, %v2032
        %v2034 = vpop.f32.mrf.mxu0
        %v2035 = vpop.f32.mrf.mxu0
        %v2036 = vpop.f32.mrf.mxu0
        %2037 = vdwg.mxu0
        %v2038 = vadd.f32 %v2033, %v1166
        %v2039 = vld [vmem:[%s10] sm:$0x1]
        %v2040 = vld [vmem:[%s11] sm:$0x1]
        %v2041 = vsel %vm1192, %v2038, 0.0
        %2042 = vadd.xlane.f32.xlu0 %v2041
        %v2043 = vpop.xlane.xlu0 %2042
        %v2044 = vrcp.pop 32.0
        %v2045 = vmul.f32 %v2043, %v2044
        %v2046 = vsub.f32 %v2038, %v2045
        %v2047 = vmul.f32 %v2046, %v2046
        %v2048 = vsel %vm1192, %v2047, 0.0
        %2049 = vadd.xlane.f32.xlu0 %v2048
        %v2050 = vpop.xlane.xlu0 %2049
        %v2051 = vmul.f32 %v2050, %v2044
        %v2052 = vadd.f32 %v2051, 1e-05
        %v2053 = vrsqrt.pop %v2052
        %v2054 = vmul.f32 %v2046, %v2053
        %v2056 = vlaneseq
        %v2057 = vshrl.u32 %v2056, 7
        %v2058 = vsub.s32 0, %v2057
        %v2059 = vrot.slane %v2039, %v2058
        %v2061 = vmul.f32 %v2054, %v2059
        %v2063 = vlaneseq
        %v2064 = vshrl.u32 %v2063, 7
        %v2065 = vsub.s32 0, %v2064
        %v2066 = vrot.slane %v2040, %v2065
        %v2068 = vadd.f32 %v2061, %v2066
        %2070 = vset.pattern.permute.xlu0 0
        %2071 = vperm.xlu0 %2070, %v1167
        %v2072 = vpop.permute.xlu0 %2071
        %v2074 = vmul.f32 %v2068, %v2072
        %v2075 = vpack.c.bf16 %v2074, %v2074
        %v2076 = vld [vmem:[#allocation12] sm:$0xf]
        %v2077 = vld [vmem:[#allocation12 + $0x4] sm:$0xf]
        %v2078 = vld [vmem:[#allocation12 + $0x8] sm:$0xf]
        %v2079 = vld [vmem:[#allocation12 + $0xc] sm:$0xf]
        %v2080 = vld [vmem:[%s13] sm:$0x1]
        %v2082 = vlaneseq
        %v2083 = vshrl.u32 %v2082, 7
        %v2084 = vsub.s32 0, %v2083
        %v2085 = vrot.slane %v2080, %v2084
        %v2091 = vunpack.c.l.b16 %v2076
        %v2092 = vunpack.c.l.b16 %v2077
        %v2093 = vunpack.c.l.b16 %v2078
        %v2094 = vunpack.c.l.b16 %v2079
        %v2095 = vpack.c.b16 %v2092, %v2091
        %v2096 = vpack.c.b16 %v2094, %v2093
        %v2100 = vsel %vm1192, %v2075, 0
        %2102 = vmatprep.subr.bf16.mxu0 0
        %2103 = vmatpush1.bf16.msra.mxu0 0
        %2104 = vmatprep.subr.bf16.mxu0 0
        %2105 = vmatpush1.bf16.msra.mxu0 0
        %2106 = vmatprep.subr.bf16.mxu0 0
        %2107 = vmatpush1.bf16.msra.mxu0 0
        %2108 = vmatprep.subr.bf16.mxu0 0
        %2109 = vmatpush1.bf16.msra.mxu0 0
        %2110 = vmatprep.subr.bf16.mxu0 0
        %2111 = vmatpush1.bf16.msra.mxu0 0
        %2112 = vmatprep.subr.bf16.mxu0 0
        %2113 = vmatpush1.bf16.msra.mxu0 0
        %2114 = vmatprep.subr.bf16.mxu0 0
        %2115 = vmatpush1.bf16.msra.mxu0 %v2096
        %2116 = vmatprep.subr.bf16.mxu0 0
        %2117 = vmatpush1.bf16.msra.mxu0 %v2095
        %2118 = vmatprep.subr.bf16.mxu0 0
        %2119 = vmatpush2.bf16.msra.mxu0 0
        %2120 = vmatprep.subr.bf16.mxu0 0
        %2121 = vmatpush2.bf16.msra.mxu0 0
        %2122 = vmatprep.subr.bf16.mxu0 0
        %2123 = vmatpush2.bf16.msra.mxu0 0
        %2124 = vmatprep.subr.bf16.mxu0 0
        %2125 = vmatpush2.bf16.msra.mxu0 0
        %2126 = vmatprep.subr.bf16.mxu0 0
        %2127 = vmatpush2.bf16.msra.mxu0 0
        %2128 = vmatprep.subr.bf16.mxu0 0
        %2129 = vmatpush2.bf16.msra.mxu0 0
        %2130 = vmatprep.subr.bf16.mxu0 0
        %2131 = vmatpush2.bf16.msra.mxu0 0
        %2132 = vmatprep.subr.bf16.mxu0 0
        %2133 = vmatpush2.bf16.msra.mxu0 0
        %2134 = vmatprep.mubr.bf16.mxu0 0
        %2135 = vmatmul.mubr.bf16.gmra.mxu0 %v2100
        %v2136 = vpop.f32.mrf.mxu0
        %v2137 = vadd.f32 %v2085, %v2136
        %v2138 = vpop.f32.mrf.mxu0
        %v2139 = vpop.f32.mrf.mxu0
        %v2140 = vpop.f32.mrf.mxu0
        %2141 = vdwg.mxu0
        %v2142 = vmax.f32 %v2137, 0.0
        %v2143 = vpack.c.bf16 %v2142, %v2142
        %v2144 = vld [vmem:[%s14] sm:$0xf]
        %v2145 = vld [vmem:[%s14 + $0x4] sm:$0xf]
        %v2146 = vld [vmem:[%s14 + $0x8] sm:$0xf]
        %v2147 = vld [vmem:[%s14 + $0xc] sm:$0xf]
        %v2148 = vld [vmem:[%s14 + $0x10] sm:$0xf]
        %v2149 = vld [vmem:[%s14 + $0x14] sm:$0xf]
        %v2150 = vld [vmem:[%s14 + $0x18] sm:$0xf]
        %v2151 = vld [vmem:[%s14 + $0x1c] sm:$0xf]
        %v2152 = vld [vmem:[%s15] sm:$0x1]
        %v2154 = vlaneseq
        %v2155 = vshrl.u32 %v2154, 7
        %v2156 = vsub.s32 0, %v2155
        %v2157 = vrot.slane %v2152, %v2156
        %v2167 = vunpack.c.l.b16 %v2144
        %v2168 = vunpack.c.l.b16 %v2145
        %v2169 = vunpack.c.l.b16 %v2146
        %v2170 = vunpack.c.l.b16 %v2147
        %v2171 = vunpack.c.l.b16 %v2148
        %v2172 = vunpack.c.l.b16 %v2149
        %v2173 = vunpack.c.l.b16 %v2150
        %v2174 = vunpack.c.l.b16 %v2151
        %v2175 = vpack.c.b16 %v2168, %v2167
        %v2176 = vpack.c.b16 %v2170, %v2169
        %v2177 = vpack.c.b16 %v2172, %v2171
        %v2178 = vpack.c.b16 %v2174, %v2173
        %vm2183 = vcmask 523264
        %v2185 = vsel %vm2183, %v2143, 0
        %2187 = vmatprep.subr.bf16.mxu0 0
        %2188 = vmatpush1.bf16.msra.mxu0 0
        %2189 = vmatprep.subr.bf16.mxu0 0
        %2190 = vmatpush1.bf16.msra.mxu0 0
        %2191 = vmatprep.subr.bf16.mxu0 0
        %2192 = vmatpush1.bf16.msra.mxu0 0
        %2193 = vmatprep.subr.bf16.mxu0 0
        %2194 = vmatpush1.bf16.msra.mxu0 0
        %2195 = vmatprep.subr.bf16.mxu0 0
        %2196 = vmatpush1.bf16.msra.mxu0 %v2178
        %2197 = vmatprep.subr.bf16.mxu0 0
        %2198 = vmatpush1.bf16.msra.mxu0 %v2177
        %2199 = vmatprep.subr.bf16.mxu0 0
        %2200 = vmatpush1.bf16.msra.mxu0 %v2176
        %2201 = vmatprep.subr.bf16.mxu0 0
        %2202 = vmatpush1.bf16.msra.mxu0 %v2175
        %2203 = vmatprep.subr.bf16.mxu0 0
        %2204 = vmatpush2.bf16.msra.mxu0 0
        %2205 = vmatprep.subr.bf16.mxu0 0
        %2206 = vmatpush2.bf16.msra.mxu0 0
        %2207 = vmatprep.subr.bf16.mxu0 0
        %2208 = vmatpush2.bf16.msra.mxu0 0
        %2209 = vmatprep.subr.bf16.mxu0 0
        %2210 = vmatpush2.bf16.msra.mxu0 0
        %2211 = vmatprep.subr.bf16.mxu0 0
        %2212 = vmatpush2.bf16.msra.mxu0 0
        %2213 = vmatprep.subr.bf16.mxu0 0
        %2214 = vmatpush2.bf16.msra.mxu0 0
        %2215 = vmatprep.subr.bf16.mxu0 0
        %2216 = vmatpush2.bf16.msra.mxu0 0
        %2217 = vmatprep.subr.bf16.mxu0 0
        %2218 = vmatpush2.bf16.msra.mxu0 0
        %2219 = vmatprep.mubr.bf16.mxu0 0
        %2220 = vmatmul.mubr.bf16.gmra.mxu0 %v2185
        %v2221 = vpop.f32.mrf.mxu0
        %v2222 = vadd.f32 %v2157, %v2221
        %v2223 = vpop.f32.mrf.mxu0
        %v2224 = vpop.f32.mrf.mxu0
        %v2225 = vpop.f32.mrf.mxu0
        %2226 = vdwg.mxu0
        %v2227 = vadd.f32 %v2222, %v2074
        %v2228 = vld [vmem:[%s16] sm:$0x1]
        %v2229 = vld [vmem:[%s17] sm:$0x1]
        %v2230 = vsel %vm1192, %v2227, 0.0
        %2231 = vadd.xlane.f32.xlu0 %v2230
        %v2232 = vpop.xlane.xlu0 %2231
        %v2233 = vmul.f32 %v2232, %v2044
        %v2234 = vsub.f32 %v2227, %v2233
        %v2235 = vmul.f32 %v2234, %v2234
        %v2236 = vsel %vm1192, %v2235, 0.0
        %2237 = vadd.xlane.f32.xlu0 %v2236
        %v2238 = vpop.xlane.xlu0 %2237
        %v2239 = vmul.f32 %v2238, %v2044
        %v2240 = vadd.f32 %v2239, 1e-05
        %v2241 = vrsqrt.pop %v2240
        %v2242 = vmul.f32 %v2234, %v2241
        %v2244 = vlaneseq
        %v2245 = vshrl.u32 %v2244, 7
        %v2246 = vsub.s32 0, %v2245
        %v2247 = vrot.slane %v2228, %v2246
        %v2249 = vmul.f32 %v2242, %v2247
        %v2251 = vlaneseq
        %v2252 = vshrl.u32 %v2251, 7
        %v2253 = vsub.s32 0, %v2252
        %v2254 = vrot.slane %v2229, %v2253
        %v2256 = vadd.f32 %v2249, %v2254
        %v2257 = vmul.f32 %v2256, %v2072
        %2258 = vst.msk [vmem:[%s701] sm:$0xff] %vm1192, %v2257
        %s2259 = sand.u32 %s452, 1
        %s2260 = scalar_lea.sflag [#allocation6], %s2259
        %s2261 = sand.u32 %s452, 1
        %s2262 = smul.addr %s2261, 8
        %s2263 = scalar_lea.vmem [#allocation13], %s2262
        %s2264 = sand.u32 %s480, 1
        %s2265 = scalar_lea.sflag [#allocation15], %s2264
        %s2266 = sand.u32 %s480, 1
        %s2267 = smul.addr %s2266, 16
        %s2268 = scalar_lea.vmem [#allocation14], %s2267
        // Predicated region
        $region117: #{tpu_custom_call.1} parent=91 // pred_check
          %p2269 = pneg %p462
        $region118: #{tpu_custom_call.1} parent=91 // pred_check_branch
          %2271 = sbr.rel (%p2269) target = $region120
        $region119: #{tpu_custom_call.1} parent=91 // pred_region
          %s2273 = ssub.s32 128, 128
          %2274 = vsyncadd %s2260, %s2273
          %s2275 = sadd.s32 %s45, %s44
          %s2276 = smul.addr %s2275, 128
          %s2277 = scalar_lea.hbm %s18, %s2276
          %s2279 = sshll.u32 %s2263, 4
          %s2280 = int_to_ptr.vmem [resolvable:$true] %s2279
          %2282 = dma.vmem_to_hbm [thread:$0]  %s2280, 128, %s2277, %s2260
        $region120: #{tpu_custom_call.1} parent=91 // pred_fallthru
          _
        // Predicated region
        $region121: #{tpu_custom_call.1} parent=91 // pred_check
          %p2283 = pneg %p490
        $region122: #{tpu_custom_call.1} parent=91 // pred_check_branch
          %2285 = sbr.rel (%p2283) target = $region124
        $region123: #{tpu_custom_call.1} parent=91 // pred_region
          %s2287 = ssub.s32 256, 256
          %2288 = vsyncadd %s2265, %s2287
          %s2289 = sadd.s32 %s45, %s44
          %s2290 = smul.addr %s2289, 64
          %s2291 = scalar_lea.hbm %s19, %s2290
          %s2292 = sshll.u32 %s2268, 4
          %s2293 = int_to_ptr.vmem [resolvable:$true] %s2292
          %2298 = dma.vmem_to_hbm [thread:$0]  %s2293, 256, %s2291, %s2265, 64, 128, 4
        $region124: #{tpu_custom_call.1} parent=91 // pred_fallthru
          _
      $region92: #{tpu_custom_call.1} parent=5 // pred_fallthru
        _
      %p2299 = scmp.le.s32.totalorder 2, %s35
      // Predicated region
      $region125: #{tpu_custom_call.1} parent=5 // pred_check
        %p2300 = pneg %p2299
      $region126: #{tpu_custom_call.1} parent=5 // pred_check_branch
        %2302 = sbr.rel (%p2300) target = $region128
      $region127: #{tpu_custom_call.1} parent=5 // pred_region
        %s2303 = ssub.s32 %s35, 2
        // Predicated region
        $region129: #{tpu_custom_call.1} parent=127 // pred_check
          %p2304 = pneg %p468
        $region130: #{tpu_custom_call.1} parent=127 // pred_check_branch
          %2306 = sbr.rel (%p2304) target = $region132
        $region131: #{tpu_custom_call.1} parent=127 // pred_region
          %s2307 = sand.u32 %s453, 1
          %s2308 = scalar_lea.sflag [#allocation6], %s2307
          %s2309 = sand.u32 %s453, 1
          %s2310 = smul.addr %s2309, 8
          %s2311 = scalar_lea.vmem [#allocation13], %s2310
          %2312 = dma.done %s2308, 128
        $region132: #{tpu_custom_call.1} parent=127 // pred_fallthru
          _
        // Predicated region
        $region133: #{tpu_custom_call.1} parent=127 // pred_check
          %p2313 = pneg %p496
        $region134: #{tpu_custom_call.1} parent=127 // pred_check_branch
          %2315 = sbr.rel (%p2313) target = $region136
        $region135: #{tpu_custom_call.1} parent=127 // pred_region
          %s2316 = sand.u32 %s481, 1
          %s2317 = scalar_lea.sflag [#allocation15], %s2316
          %s2318 = sand.u32 %s481, 1
          %s2319 = smul.addr %s2318, 16
          %s2320 = scalar_lea.vmem [#allocation14], %s2319
          %2321 = dma.done %s2317, 256
        $region136: #{tpu_custom_call.1} parent=127 // pred_fallthru
          _
      $region128: #{tpu_custom_call.1} parent=5 // pred_fallthru
        _
    $region6: #{tpu_custom_call.1} parent=1 // loop_footer
      %s39 = sadd.s32 1, %s35
    $region7: #{tpu_custom_call.1} parent=1 // loop_footer_branch
      %34 = sbr.rel target = $region3
    $region8: #{tpu_custom_call.1} parent=1 // loop_exit
      _
    %2322 = vsyncpa [#allocation5], 1
    %s2323 = scalar_lea.sflag [#allocation5], 1
    %2324 = vsyncpa %s2323, 1
    %2325 = vsyncpa [#allocation8], 1
    %2326 = vsyncpa [#allocation11], 1
    %2327 = vsyncpa [#allocation6], 1
    %s2328 = scalar_lea.sflag [#allocation6], 1
    %2329 = vsyncpa %s2328, 1
    %2330 = vsyncpa [#allocation15], 1
    %s2331 = scalar_lea.sflag [#allocation15], 1
    %2332 = vsyncpa %s2331, 1

</llo_original>
